<compile_context>
chip_gen: v7x
topology: tpu7x:2x2x1
jax: 0.10.0
libtpu: 0.0.40
codegen_flags: <defaults>
</compile_context>

<pallas_src>
import functools

import jax
import jax.numpy as jnp
from jax.experimental import pallas as pl
from jax.experimental.pallas import tpu as pltpu

# Spatial size implied by fc1 = Linear(128 * 4 * 4, 1024) with no pooling.
H = W = 4
P = H * W                  # 16 spatial positions
C_OUT4 = 128               # channels entering the fused FC
N_CLS = 10


# ----------------------------------------------------------------------------
# Fused kernel (single grid step)
# ----------------------------------------------------------------------------
def fused_net_kernel(x_ref,
                     w1_ref, s1_ref, t1_ref,
                     w2_ref, s2_ref, t2_ref,
                     w3_ref, s3_ref, t3_ref,
                     w4_ref, s4_ref, t4_ref,
                     fcw_ref, fcb_ref,
                     out_ref,
                     pad_a, pad_b, pad_c,
                     *, B):
    WB = W * B

    def conv3x3_bn_relu(pad_ref, x, w_ref, s_ref, t_ref, cin, cout, im2col):
        """3x3 conv (pad=1, stride=1) + folded BN affine + ReLU.

        x: (H, W*B, cin) f32 with merged minor index m = w*B + b.  pad_ref
        halos were zeroed once at kernel start; only the interior is
        (re)written, so the halo stays zero.
        """
        pad_ref[1:H + 1, B:B + WB, :] = x
        # Cast once to the conv compute dtype (bf16 for conv2-4, f32 no-op for
        # conv1); taps then slice/reshape the narrow array.
        xpad = pad_ref[...].astype(w_ref.dtype)
        taps = [xpad[di:di + H, dj * B:dj * B + WB, :].reshape(H * WB, cin)
                for di in range(3) for dj in range(3)]
        if im2col:
            # cin % 128 == 0: lane-aligned concat -> one K = 9*cin bf16 matmul
            # (better MXU fill, single accumulator pass).
            patches = jnp.concatenate(taps, axis=-1)          # (H*W*B, 9*cin)
            acc = jnp.dot(patches, w_ref[...],
                          preferred_element_type=jnp.float32)
        else:
            # cin in {3, 64}: 9 native-lane-width matmuls; at M = H*W*B = 32 an
            # unaligned lane concatenation relayout would cost more than it saves.
            w = w_ref[...]                                    # (9, cin, cout)
            acc = jnp.zeros((H * WB, cout), jnp.float32)
            for t, tap in enumerate(taps):
                acc = acc + jnp.dot(tap, w[t],
                                    preferred_element_type=jnp.float32)
        y = jnp.maximum(acc * s_ref[...] + t_ref[...], 0.0)   # f32 BN + ReLU
        return y.reshape(H, WB, cout)

    # Zero the pad-buffer halos once (interiors are overwritten each layer).
    pad_a[...] = jnp.zeros_like(pad_a)
    pad_b[...] = jnp.zeros_like(pad_b)
    pad_c[...] = jnp.zeros_like(pad_c)

    # ---- four conv + BN + ReLU layers, activations never leave VMEM --------
    a = conv3x3_bn_relu(pad_a, x_ref[...], w1_ref, s1_ref, t1_ref, 3, 64, False)
    a = conv3x3_bn_relu(pad_b, a, w2_ref, s2_ref, t2_ref, 64, 64, False)
    a = conv3x3_bn_relu(pad_b, a, w3_ref, s3_ref, t3_ref, 64, 128, False)
    a = conv3x3_bn_relu(pad_c, a, w4_ref, s4_ref, t4_ref, 128, 128, True)

    # ---- fused fc1@fc2: logits[b,n] = sum_{p,c} a[p,b,c] * Wc[p,c,n] + bc ---
    # (H, W*B, 128) -> (P, B, 128): same (h, w, b) row order, leading-dim split.
    x4 = a.reshape(P, B, C_OUT4)
    wc = fcw_ref[...]                                         # (P, 128, 10) f32
    logits = jnp.zeros((B, N_CLS), jnp.float32)
    for p in range(P):                                        # 2048*10 MACs total
        logits = logits + jnp.dot(x4[p], wc[p],
                                  preferred_element_type=jnp.float32)
    # Lane-sparse (B, 10) store accepted: output is 80 bytes.
    out_ref[...] = logits + fcb_ref[...]


# ----------------------------------------------------------------------------
# Wrapper
# ----------------------------------------------------------------------------
def net_forward_pallas(x_nchw, prep):
    B = x_nchw.shape[0]
    # Only per-forward layout op: the tiny input (B*3*H*W elements) into the
    # kernel's (H, W*B, C) spatial-major layout.  Everything else is folded
    # into the one-time weight preprocessing.
    x_hwb = jnp.transpose(x_nchw, (2, 3, 0, 1)).reshape(H, W * B, 3)
    x_hwb = x_hwb.astype(jnp.float32)

    c3 = lambda k: (0, 0, 0)
    c2 = lambda k: (0, 0)
    kernel = functools.partial(fused_net_kernel, B=B)

    return pl.pallas_call(
        kernel,
        out_shape=jax.ShapeDtypeStruct((B, N_CLS), jnp.float32),
        grid=(1,),
        in_specs=[
            pl.BlockSpec((H, W * B, 3), c3),                      # input
            pl.BlockSpec((9, 3, 64), c3),                         # conv1 w (f32)
            pl.BlockSpec((1, 64), c2), pl.BlockSpec((1, 64), c2),  # bn1 s,t
            pl.BlockSpec((9, 64, 64), c3),                        # conv2 w (bf16)
            pl.BlockSpec((1, 64), c2), pl.BlockSpec((1, 64), c2),  # bn2 s,t
            pl.BlockSpec((9, 64, 128), c3),                       # conv3 w (bf16)
            pl.BlockSpec((1, 128), c2), pl.BlockSpec((1, 128), c2),  # bn3 s,t
            pl.BlockSpec((9 * 128, 128), c2),                     # conv4 w (bf16, im2col)
            pl.BlockSpec((1, 128), c2), pl.BlockSpec((1, 128), c2),  # bn4 s,t
            pl.BlockSpec((P, C_OUT4, N_CLS), c3),                 # fused fc1@fc2 weight (f32)
            pl.BlockSpec((1, N_CLS), c2),                         # fused fc1@fc2 bias
        ],
        out_specs=pl.BlockSpec((B, N_CLS), c2),
        scratch_shapes=[
            pltpu.VMEM((H + 2, (W + 2) * B, 3), jnp.float32),     # pad buf conv1
            pltpu.VMEM((H + 2, (W + 2) * B, 64), jnp.float32),    # pad buf conv2/3
            pltpu.VMEM((H + 2, (W + 2) * B, 128), jnp.float32),   # pad buf conv4
        ],
        compiler_params=pltpu.CompilerParams(
            dimension_semantics=("arbitrary",)),
    )(x_hwb,
      prep["w1"], prep["s1"], prep["t1"],
      prep["w2"], prep["s2"], prep["t2"],
      prep["w3"], prep["s3"], prep["t3"],
      prep["w4"], prep["s4"], prep["t4"],
      prep["fc_w"], prep["fc_b"])


# ----------------------------------------------------------------------------
# Parameter construction (deterministic, synthetic) + one-time preprocessing
# ----------------------------------------------------------------------------
def make_params(key):
    def nxt():
        nonlocal key
        key, sub = jax.random.split(key)
        return sub

    def conv_layer(cin, cout):
        w = jax.random.normal(nxt(), (cout, cin, 3, 3), jnp.float32) * 0.05  # OIHW
        b = jax.random.normal(nxt(), (cout,), jnp.float32) * 0.05
        gamma = jax.random.uniform(nxt(), (cout,), jnp.float32, 0.5, 1.5)
        beta = jax.random.normal(nxt(), (cout,), jnp.float32) * 0.1
        rmean = jax.random.normal(nxt(), (cout,), jnp.float32) * 0.1
        rvar = jax.random.uniform(nxt(), (cout,), jnp.float32, 0.5, 1.5)
        return dict(w=w, b=b, gamma=gamma, beta=beta, rmean=rmean, rvar=rvar)

    return {
        "conv1": conv_layer(3, 64),
        "conv2": conv_layer(64, 64),
        "conv3": conv_layer(64, 128),
        "conv4": conv_layer(128, 128),
        "fc1_w": jax.random.normal(nxt(), (1024, 128 * 4 * 4), jnp.float32) * 0.02,
        "fc1_b": jax.random.normal(nxt(), (1024,), jnp.float32) * 0.02,
        "fc2_w": jax.random.normal(nxt(), (10, 1024), jnp.float32) * 0.02,
        "fc2_b": jax.random.normal(nxt(), (10,), jnp.float32) * 0.02,
    }


def fold_bn(layer, eps=1e-5):
    scale = layer["gamma"] / jnp.sqrt(layer["rvar"] + eps)
    shift = layer["beta"] + (layer["b"] - layer["rmean"]) * scale
    return scale.reshape(1, -1), shift.reshape(1, -1)


def prepare_params(params):
    """One-time weight preprocessing: all transposes / flatten permutations,
    the fc1*fc2 pre-composition, and the bf16 down-casts happen here, never
    per-forward."""
    prep = {}
    for i, name in enumerate(("conv1", "conv2", "conv3", "conv4"), 1):
        layer = params[name]
        w = jnp.transpose(layer["w"], (2, 3, 1, 0))       # OIHW -> (kh,kw,ci,co)
        cin, cout = w.shape[2], w.shape[3]
        if cin % 128 == 0:
            w = w.reshape(9 * cin, cout)                  # im2col weight layout
        else:
            w = w.reshape(9, cin, cout)                   # per-tap weight layout
        if cin >= 64:
            w = w.astype(jnp.bfloat16)                    # conv2/3/4: bf16 stream
        scale, shift = fold_bn(layer)
        prep[f"w{i}"], prep[f"s{i}"], prep[f"t{i}"] = w, scale, shift

    # fc1 -> fc2 has no nonlinearity in Net.forward, so pre-compose them:
    #   z = (x @ W1.T + b1) @ W2.T + b2 = x @ (W1.T @ W2.T) + (b1 @ W2.T + b2)
    # torch flatten order is f = c*(H*W) + h*W + w; re-block the composed
    # (2048, 10) weight once to (p, c, n) with p = h*W + w so the kernel's
    # (h, w, b, c)-ordered conv4 activations contract against it with zero
    # runtime transposes.  Kept f32 (only ~80 KB).
    wc = params["fc1_w"].T @ params["fc2_w"].T            # (2048, 10)
    bc = params["fc1_b"] @ params["fc2_w"].T + params["fc2_b"]
    prep["fc_w"] = wc.reshape(C_OUT4, P, N_CLS).transpose(1, 0, 2)  # (P,128,10)
    prep["fc_b"] = bc.reshape(1, -1)
    return prep


# ----------------------------------------------------------------------------
# Pure-JAX reference (torch semantics, eval-mode BN)
# ----------------------------------------------------------------------------
def net_forward_ref(x_nchw, params, eps=1e-5):
    x = x_nchw
    for name in ("conv1", "conv2", "conv3", "conv4"):
        layer = params[name]
        z = jax.lax.conv_general_dilated(
            x, layer["w"], window_strides=(1, 1), padding=((1, 1), (1, 1)),
            dimension_numbers=("NCHW", "OIHW", "NCHW"))
        z = z + layer["b"][None, :, None, None]
        z = ((z - layer["rmean"][None, :, None, None])
             / jnp.sqrt(layer["rvar"] + eps)[None, :, None, None]
             * layer["gamma"][None, :, None, None]
             + layer["beta"][None, :, None, None])
        x = jnp.maximum(z, 0.0)
    x = x.reshape(x.shape[0], -1)
    x = x @ params["fc1_w"].T + params["fc1_b"]
    x = x @ params["fc2_w"].T + params["fc2_b"]
    return x


# ----------------------------------------------------------------------------
if __name__ == "__main__":
    key = jax.random.PRNGKey(0)
    key, xkey = jax.random.split(key)
    # fc1 expects 128*4*4 features with no pooling => input spatial is 4x4.
    x = jax.random.normal(xkey, (2, 3, H, W), jnp.float32)   # NCHW like torch
    params = make_params(key)
    prep = prepare_params(params)        # one-time weight preprocessing

    fwd = jax.jit(net_forward_pallas)
    out = jax.block_until_ready(fwd(x, prep))
    ref = jax.block_until_ready(net_forward_ref(x, params))

    assert out.shape == (2, 10), out.shape
    # Tolerance sized for the bf16 conv-weight/operand rounding (f32 accumulate,
    # f32 fused FC); typical normalized error is ~1e-3.
    rel_err = jnp.max(jnp.abs(out - ref)) / (jnp.max(jnp.abs(ref)) + 1e-6)
    assert float(rel_err) < 1e-2, f"mismatch: rel_err={float(rel_err)}"
    print("KERNEL_OK")
</pallas_src>

<mosaic_0001>
module attributes {stable_mosaic.version = 11 : i64} {
  func.func @fused_net_kernel(%arg0: i32, %arg1: memref<4x8x3xf32, #tpu.memory_space<vmem>>, %arg2: memref<9x3x64xf32, #tpu.memory_space<vmem>>, %arg3: memref<1x64xf32, #tpu.memory_space<vmem>>, %arg4: memref<1x64xf32, #tpu.memory_space<vmem>>, %arg5: memref<9x64x64xbf16, #tpu.memory_space<vmem>>, %arg6: memref<1x64xf32, #tpu.memory_space<vmem>>, %arg7: memref<1x64xf32, #tpu.memory_space<vmem>>, %arg8: memref<9x64x128xbf16, #tpu.memory_space<vmem>>, %arg9: memref<1x128xf32, #tpu.memory_space<vmem>>, %arg10: memref<1x128xf32, #tpu.memory_space<vmem>>, %arg11: memref<1152x128xbf16, #tpu.memory_space<vmem>>, %arg12: memref<1x128xf32, #tpu.memory_space<vmem>>, %arg13: memref<1x128xf32, #tpu.memory_space<vmem>>, %arg14: memref<16x128x10xf32, #tpu.memory_space<vmem>>, %arg15: memref<1x10xf32, #tpu.memory_space<vmem>>, %arg16: memref<2x10xf32, #tpu.memory_space<vmem>>, %arg17: memref<6x12x3xf32, #tpu.memory_space<vmem>>, %arg18: memref<6x12x64xf32, #tpu.memory_space<vmem>>, %arg19: memref<6x12x128xf32, #tpu.memory_space<vmem>>) attributes {dimension_semantics = [#tpu.dimension_semantics<arbitrary>], iteration_bounds = array<i64: 1>, scalar_prefetch = 0 : i64, scratch_operands = 3 : i64, tpu.core_type = #tpu.core_type<tc>, window_params = [{pipeline_mode = #tpu.pipeline_mode<synchronous>, transform_indices = @transform_0, window_bounds = array<i64: 4, 8, 3>}, {pipeline_mode = #tpu.pipeline_mode<synchronous>, transform_indices = @transform_1, window_bounds = array<i64: 9, 3, 64>}, {pipeline_mode = #tpu.pipeline_mode<synchronous>, transform_indices = @transform_2, window_bounds = array<i64: 1, 64>}, {pipeline_mode = #tpu.pipeline_mode<synchronous>, transform_indices = @transform_3, window_bounds = array<i64: 1, 64>}, {pipeline_mode = #tpu.pipeline_mode<synchronous>, transform_indices = @transform_4, window_bounds = array<i64: 9, 64, 64>}, {pipeline_mode = #tpu.pipeline_mode<synchronous>, transform_indices = @transform_5, window_bounds = array<i64: 1, 64>}, {pipeline_mode = #tpu.pipeline_mode<synchronous>, transform_indices = @transform_6, window_bounds = array<i64: 1, 64>}, {pipeline_mode = #tpu.pipeline_mode<synchronous>, transform_indices = @transform_7, window_bounds = array<i64: 9, 64, 128>}, {pipeline_mode = #tpu.pipeline_mode<synchronous>, transform_indices = @transform_8, window_bounds = array<i64: 1, 128>}, {pipeline_mode = #tpu.pipeline_mode<synchronous>, transform_indices = @transform_9, window_bounds = array<i64: 1, 128>}, {pipeline_mode = #tpu.pipeline_mode<synchronous>, transform_indices = @transform_10, window_bounds = array<i64: 1152, 128>}, {pipeline_mode = #tpu.pipeline_mode<synchronous>, transform_indices = @transform_11, window_bounds = array<i64: 1, 128>}, {pipeline_mode = #tpu.pipeline_mode<synchronous>, transform_indices = @transform_12, window_bounds = array<i64: 1, 128>}, {pipeline_mode = #tpu.pipeline_mode<synchronous>, transform_indices = @transform_13, window_bounds = array<i64: 16, 128, 10>}, {pipeline_mode = #tpu.pipeline_mode<synchronous>, transform_indices = @transform_14, window_bounds = array<i64: 1, 10>}, {pipeline_mode = #tpu.pipeline_mode<synchronous>, transform_indices = @transform_15, window_bounds = array<i64: 2, 10>}]} {
    %cst = arith.constant 0.000000e+00 : f32
    %0 = vector.broadcast %cst : f32 to vector<6x12x3xf32>
    %c0 = arith.constant 0 : index
    %c0_0 = arith.constant 0 : index
    %c0_1 = arith.constant 0 : index
    %1 = vector.load %arg17[%c0, %c0_0, %c0_1] : memref<6x12x3xf32, #tpu.memory_space<vmem>>, vector<6x12x3xf32>
    tpu.vector_store %arg17[%c0, %c0_0, %c0_1], %0 {strides = array<i32>} : memref<6x12x3xf32, #tpu.memory_space<vmem>>, vector<6x12x3xf32>,
    %cst_2 = arith.constant 0.000000e+00 : f32
    %2 = vector.broadcast %cst_2 : f32 to vector<6x12x64xf32>
    %c0_3 = arith.constant 0 : index
    %c0_4 = arith.constant 0 : index
    %c0_5 = arith.constant 0 : index
    %3 = vector.load %arg18[%c0_3, %c0_4, %c0_5] : memref<6x12x64xf32, #tpu.memory_space<vmem>>, vector<6x12x64xf32>
    tpu.vector_store %arg18[%c0_3, %c0_4, %c0_5], %2 {strides = array<i32>} : memref<6x12x64xf32, #tpu.memory_space<vmem>>, vector<6x12x64xf32>,
    %cst_6 = arith.constant 0.000000e+00 : f32
    %4 = vector.broadcast %cst_6 : f32 to vector<6x12x128xf32>
    %c0_7 = arith.constant 0 : index
    %c0_8 = arith.constant 0 : index
    %c0_9 = arith.constant 0 : index
    %5 = vector.load %arg19[%c0_7, %c0_8, %c0_9] : memref<6x12x128xf32, #tpu.memory_space<vmem>>, vector<6x12x128xf32>
    tpu.vector_store %arg19[%c0_7, %c0_8, %c0_9], %4 {strides = array<i32>} : memref<6x12x128xf32, #tpu.memory_space<vmem>>, vector<6x12x128xf32>,
    %c0_10 = arith.constant 0 : index
    %c0_11 = arith.constant 0 : index
    %c0_12 = arith.constant 0 : index
    %6 = vector.load %arg1[%c0_10, %c0_11, %c0_12] : memref<4x8x3xf32, #tpu.memory_space<vmem>>, vector<4x8x3xf32>
    %c1 = arith.constant 1 : index
    %c2 = arith.constant 2 : index
    %c0_13 = arith.constant 0 : index
    %7 = vector.load %arg17[%c1, %c2, %c0_13] : memref<6x12x3xf32, #tpu.memory_space<vmem>>, vector<4x8x3xf32>
    tpu.vector_store %arg17[%c1, %c2, %c0_13], %6 {strides = array<i32>} : memref<6x12x3xf32, #tpu.memory_space<vmem>>, vector<4x8x3xf32>,
    %c0_14 = arith.constant 0 : index
    %c0_15 = arith.constant 0 : index
    %c0_16 = arith.constant 0 : index
    %8 = vector.load %arg17[%c0_14, %c0_15, %c0_16] : memref<6x12x3xf32, #tpu.memory_space<vmem>>, vector<6x12x3xf32>
    %9 = vector.extract_strided_slice %8 {offsets = [0, 0, 0], sizes = [4, 8, 3], strides = [1, 1, 1]} : vector<6x12x3xf32> to vector<4x8x3xf32>
    %10 = vector.shape_cast %9 : vector<4x8x3xf32> to vector<32x3xf32>
    %11 = vector.extract_strided_slice %8 {offsets = [0, 2, 0], sizes = [4, 8, 3], strides = [1, 1, 1]} : vector<6x12x3xf32> to vector<4x8x3xf32>
    %12 = vector.shape_cast %11 : vector<4x8x3xf32> to vector<32x3xf32>
    %13 = vector.extract_strided_slice %8 {offsets = [0, 4, 0], sizes = [4, 8, 3], strides = [1, 1, 1]} : vector<6x12x3xf32> to vector<4x8x3xf32>
    %14 = vector.shape_cast %13 : vector<4x8x3xf32> to vector<32x3xf32>
    %15 = vector.extract_strided_slice %8 {offsets = [1, 0, 0], sizes = [4, 8, 3], strides = [1, 1, 1]} : vector<6x12x3xf32> to vector<4x8x3xf32>
    %16 = vector.shape_cast %15 : vector<4x8x3xf32> to vector<32x3xf32>
    %17 = vector.extract_strided_slice %8 {offsets = [1, 2, 0], sizes = [4, 8, 3], strides = [1, 1, 1]} : vector<6x12x3xf32> to vector<4x8x3xf32>
    %18 = vector.shape_cast %17 : vector<4x8x3xf32> to vector<32x3xf32>
    %19 = vector.extract_strided_slice %8 {offsets = [1, 4, 0], sizes = [4, 8, 3], strides = [1, 1, 1]} : vector<6x12x3xf32> to vector<4x8x3xf32>
    %20 = vector.shape_cast %19 : vector<4x8x3xf32> to vector<32x3xf32>
    %21 = vector.extract_strided_slice %8 {offsets = [2, 0, 0], sizes = [4, 8, 3], strides = [1, 1, 1]} : vector<6x12x3xf32> to vector<4x8x3xf32>
    %22 = vector.shape_cast %21 : vector<4x8x3xf32> to vector<32x3xf32>
    %23 = vector.extract_strided_slice %8 {offsets = [2, 2, 0], sizes = [4, 8, 3], strides = [1, 1, 1]} : vector<6x12x3xf32> to vector<4x8x3xf32>
    %24 = vector.shape_cast %23 : vector<4x8x3xf32> to vector<32x3xf32>
    %25 = vector.extract_strided_slice %8 {offsets = [2, 4, 0], sizes = [4, 8, 3], strides = [1, 1, 1]} : vector<6x12x3xf32> to vector<4x8x3xf32>
    %26 = vector.shape_cast %25 : vector<4x8x3xf32> to vector<32x3xf32>
    %c0_17 = arith.constant 0 : index
    %c0_18 = arith.constant 0 : index
    %c0_19 = arith.constant 0 : index
    %27 = vector.load %arg2[%c0_17, %c0_18, %c0_19] : memref<9x3x64xf32, #tpu.memory_space<vmem>>, vector<9x3x64xf32>
    %cst_20 = arith.constant 0.000000e+00 : f32
    %28 = vector.broadcast %cst_20 : f32 to vector<32x64xf32>
    %29 = vector.extract_strided_slice %27 {offsets = [0, 0, 0], sizes = [1, 3, 64], strides = [1, 1, 1]} : vector<9x3x64xf32> to vector<1x3x64xf32>
    %30 = vector.shape_cast %29 : vector<1x3x64xf32> to vector<3x64xf32>
    %cst_21 = arith.constant dense<0.000000e+00> : vector<32x64xf32>
    %31 = tpu.matmul %10, %30, %cst_21 {dimension_numbers = #tpu.dot_dimension_numbers<[1], [0], [0], [1], [0, 0, 1, 1], [], []>} : vector<32x3xf32>, vector<3x64xf32>, vector<32x64xf32> -> vector<32x64xf32>
    %32 = arith.addf %28, %31 : vector<32x64xf32>
    %33 = vector.extract_strided_slice %27 {offsets = [1, 0, 0], sizes = [1, 3, 64], strides = [1, 1, 1]} : vector<9x3x64xf32> to vector<1x3x64xf32>
    %34 = vector.shape_cast %33 : vector<1x3x64xf32> to vector<3x64xf32>
    %cst_22 = arith.constant dense<0.000000e+00> : vector<32x64xf32>
    %35 = tpu.matmul %12, %34, %cst_22 {dimension_numbers = #tpu.dot_dimension_numbers<[1], [0], [0], [1], [0, 0, 1, 1], [], []>} : vector<32x3xf32>, vector<3x64xf32>, vector<32x64xf32> -> vector<32x64xf32>
    %36 = arith.addf %32, %35 : vector<32x64xf32>
    %37 = vector.extract_strided_slice %27 {offsets = [2, 0, 0], sizes = [1, 3, 64], strides = [1, 1, 1]} : vector<9x3x64xf32> to vector<1x3x64xf32>
    %38 = vector.shape_cast %37 : vector<1x3x64xf32> to vector<3x64xf32>
    %cst_23 = arith.constant dense<0.000000e+00> : vector<32x64xf32>
    %39 = tpu.matmul %14, %38, %cst_23 {dimension_numbers = #tpu.dot_dimension_numbers<[1], [0], [0], [1], [0, 0, 1, 1], [], []>} : vector<32x3xf32>, vector<3x64xf32>, vector<32x64xf32> -> vector<32x64xf32>
    %40 = arith.addf %36, %39 : vector<32x64xf32>
    %41 = vector.extract_strided_slice %27 {offsets = [3, 0, 0], sizes = [1, 3, 64], strides = [1, 1, 1]} : vector<9x3x64xf32> to vector<1x3x64xf32>
    %42 = vector.shape_cast %41 : vector<1x3x64xf32> to vector<3x64xf32>
    %cst_24 = arith.constant dense<0.000000e+00> : vector<32x64xf32>
    %43 = tpu.matmul %16, %42, %cst_24 {dimension_numbers = #tpu.dot_dimension_numbers<[1], [0], [0], [1], [0, 0, 1, 1], [], []>} : vector<32x3xf32>, vector<3x64xf32>, vector<32x64xf32> -> vector<32x64xf32>
    %44 = arith.addf %40, %43 : vector<32x64xf32>
    %45 = vector.extract_strided_slice %27 {offsets = [4, 0, 0], sizes = [1, 3, 64], strides = [1, 1, 1]} : vector<9x3x64xf32> to vector<1x3x64xf32>
    %46 = vector.shape_cast %45 : vector<1x3x64xf32> to vector<3x64xf32>
    %cst_25 = arith.constant dense<0.000000e+00> : vector<32x64xf32>
    %47 = tpu.matmul %18, %46, %cst_25 {dimension_numbers = #tpu.dot_dimension_numbers<[1], [0], [0], [1], [0, 0, 1, 1], [], []>} : vector<32x3xf32>, vector<3x64xf32>, vector<32x64xf32> -> vector<32x64xf32>
    %48 = arith.addf %44, %47 : vector<32x64xf32>
    %49 = vector.extract_strided_slice %27 {offsets = [5, 0, 0], sizes = [1, 3, 64], strides = [1, 1, 1]} : vector<9x3x64xf32> to vector<1x3x64xf32>
    %50 = vector.shape_cast %49 : vector<1x3x64xf32> to vector<3x64xf32>
    %cst_26 = arith.constant dense<0.000000e+00> : vector<32x64xf32>
    %51 = tpu.matmul %20, %50, %cst_26 {dimension_numbers = #tpu.dot_dimension_numbers<[1], [0], [0], [1], [0, 0, 1, 1], [], []>} : vector<32x3xf32>, vector<3x64xf32>, vector<32x64xf32> -> vector<32x64xf32>
    %52 = arith.addf %48, %51 : vector<32x64xf32>
    %53 = vector.extract_strided_slice %27 {offsets = [6, 0, 0], sizes = [1, 3, 64], strides = [1, 1, 1]} : vector<9x3x64xf32> to vector<1x3x64xf32>
    %54 = vector.shape_cast %53 : vector<1x3x64xf32> to vector<3x64xf32>
    %cst_27 = arith.constant dense<0.000000e+00> : vector<32x64xf32>
    %55 = tpu.matmul %22, %54, %cst_27 {dimension_numbers = #tpu.dot_dimension_numbers<[1], [0], [0], [1], [0, 0, 1, 1], [], []>} : vector<32x3xf32>, vector<3x64xf32>, vector<32x64xf32> -> vector<32x64xf32>
    %56 = arith.addf %52, %55 : vector<32x64xf32>
    %57 = vector.extract_strided_slice %27 {offsets = [7, 0, 0], sizes = [1, 3, 64], strides = [1, 1, 1]} : vector<9x3x64xf32> to vector<1x3x64xf32>
    %58 = vector.shape_cast %57 : vector<1x3x64xf32> to vector<3x64xf32>
    %cst_28 = arith.constant dense<0.000000e+00> : vector<32x64xf32>
    %59 = tpu.matmul %24, %58, %cst_28 {dimension_numbers = #tpu.dot_dimension_numbers<[1], [0], [0], [1], [0, 0, 1, 1], [], []>} : vector<32x3xf32>, vector<3x64xf32>, vector<32x64xf32> -> vector<32x64xf32>
    %60 = arith.addf %56, %59 : vector<32x64xf32>
    %61 = vector.extract_strided_slice %27 {offsets = [8, 0, 0], sizes = [1, 3, 64], strides = [1, 1, 1]} : vector<9x3x64xf32> to vector<1x3x64xf32>
    %62 = vector.shape_cast %61 : vector<1x3x64xf32> to vector<3x64xf32>
    %cst_29 = arith.constant dense<0.000000e+00> : vector<32x64xf32>
    %63 = tpu.matmul %26, %62, %cst_29 {dimension_numbers = #tpu.dot_dimension_numbers<[1], [0], [0], [1], [0, 0, 1, 1], [], []>} : vector<32x3xf32>, vector<3x64xf32>, vector<32x64xf32> -> vector<32x64xf32>
    %64 = arith.addf %60, %63 : vector<32x64xf32>
    %c0_30 = arith.constant 0 : index
    %c0_31 = arith.constant 0 : index
    %65 = vector.load %arg3[%c0_30, %c0_31] : memref<1x64xf32, #tpu.memory_space<vmem>>, vector<1x64xf32>
    %66 = vector.broadcast %65 : vector<1x64xf32> to vector<32x64xf32>
    %67 = arith.mulf %64, %66 : vector<32x64xf32>
    %c0_32 = arith.constant 0 : index
    %c0_33 = arith.constant 0 : index
    %68 = vector.load %arg4[%c0_32, %c0_33] : memref<1x64xf32, #tpu.memory_space<vmem>>, vector<1x64xf32>
    %69 = vector.broadcast %68 : vector<1x64xf32> to vector<32x64xf32>
    %70 = arith.addf %67, %69 : vector<32x64xf32>
    %cst_34 = arith.constant 0.000000e+00 : f32
    %71 = vector.broadcast %cst_34 : f32 to vector<32x64xf32>
    %72 = arith.maximumf %70, %71 : vector<32x64xf32>
    %73 = vector.shape_cast %72 : vector<32x64xf32> to vector<4x8x64xf32>
    %c1_35 = arith.constant 1 : index
    %c2_36 = arith.constant 2 : index
    %c0_37 = arith.constant 0 : index
    %74 = vector.load %arg18[%c1_35, %c2_36, %c0_37] : memref<6x12x64xf32, #tpu.memory_space<vmem>>, vector<4x8x64xf32>
    tpu.vector_store %arg18[%c1_35, %c2_36, %c0_37], %73 {strides = array<i32>} : memref<6x12x64xf32, #tpu.memory_space<vmem>>, vector<4x8x64xf32>,
    %c0_38 = arith.constant 0 : index
    %c0_39 = arith.constant 0 : index
    %c0_40 = arith.constant 0 : index
    %75 = vector.load %arg18[%c0_38, %c0_39, %c0_40] : memref<6x12x64xf32, #tpu.memory_space<vmem>>, vector<6x12x64xf32>
    %76 = arith.truncf %75 : vector<6x12x64xf32> to vector<6x12x64xbf16>
    %77 = vector.extract_strided_slice %76 {offsets = [0, 0, 0], sizes = [4, 8, 64], strides = [1, 1, 1]} : vector<6x12x64xbf16> to vector<4x8x64xbf16>
    %78 = vector.shape_cast %77 : vector<4x8x64xbf16> to vector<32x64xbf16>
    %79 = vector.extract_strided_slice %76 {offsets = [0, 2, 0], sizes = [4, 8, 64], strides = [1, 1, 1]} : vector<6x12x64xbf16> to vector<4x8x64xbf16>
    %80 = vector.shape_cast %79 : vector<4x8x64xbf16> to vector<32x64xbf16>
    %81 = vector.extract_strided_slice %76 {offsets = [0, 4, 0], sizes = [4, 8, 64], strides = [1, 1, 1]} : vector<6x12x64xbf16> to vector<4x8x64xbf16>
    %82 = vector.shape_cast %81 : vector<4x8x64xbf16> to vector<32x64xbf16>
    %83 = vector.extract_strided_slice %76 {offsets = [1, 0, 0], sizes = [4, 8, 64], strides = [1, 1, 1]} : vector<6x12x64xbf16> to vector<4x8x64xbf16>
    %84 = vector.shape_cast %83 : vector<4x8x64xbf16> to vector<32x64xbf16>
    %85 = vector.extract_strided_slice %76 {offsets = [1, 2, 0], sizes = [4, 8, 64], strides = [1, 1, 1]} : vector<6x12x64xbf16> to vector<4x8x64xbf16>
    %86 = vector.shape_cast %85 : vector<4x8x64xbf16> to vector<32x64xbf16>
    %87 = vector.extract_strided_slice %76 {offsets = [1, 4, 0], sizes = [4, 8, 64], strides = [1, 1, 1]} : vector<6x12x64xbf16> to vector<4x8x64xbf16>
    %88 = vector.shape_cast %87 : vector<4x8x64xbf16> to vector<32x64xbf16>
    %89 = vector.extract_strided_slice %76 {offsets = [2, 0, 0], sizes = [4, 8, 64], strides = [1, 1, 1]} : vector<6x12x64xbf16> to vector<4x8x64xbf16>
    %90 = vector.shape_cast %89 : vector<4x8x64xbf16> to vector<32x64xbf16>
    %91 = vector.extract_strided_slice %76 {offsets = [2, 2, 0], sizes = [4, 8, 64], strides = [1, 1, 1]} : vector<6x12x64xbf16> to vector<4x8x64xbf16>
    %92 = vector.shape_cast %91 : vector<4x8x64xbf16> to vector<32x64xbf16>
    %93 = vector.extract_strided_slice %76 {offsets = [2, 4, 0], sizes = [4, 8, 64], strides = [1, 1, 1]} : vector<6x12x64xbf16> to vector<4x8x64xbf16>
    %94 = vector.shape_cast %93 : vector<4x8x64xbf16> to vector<32x64xbf16>
    %c0_41 = arith.constant 0 : index
    %c0_42 = arith.constant 0 : index
    %c0_43 = arith.constant 0 : index
    %95 = vector.load %arg5[%c0_41, %c0_42, %c0_43] : memref<9x64x64xbf16, #tpu.memory_space<vmem>>, vector<9x64x64xbf16>
    %cst_44 = arith.constant 0.000000e+00 : f32
    %96 = vector.broadcast %cst_44 : f32 to vector<32x64xf32>
    %97 = vector.extract_strided_slice %95 {offsets = [0, 0, 0], sizes = [1, 64, 64], strides = [1, 1, 1]} : vector<9x64x64xbf16> to vector<1x64x64xbf16>
    %98 = vector.shape_cast %97 : vector<1x64x64xbf16> to vector<64x64xbf16>
    %cst_45 = arith.constant dense<0.000000e+00> : vector<32x64xf32>
    %99 = tpu.matmul %78, %98, %cst_45 {dimension_numbers = #tpu.dot_dimension_numbers<[1], [0], [0], [1], [0, 0, 1, 1], [], []>} : vector<32x64xbf16>, vector<64x64xbf16>, vector<32x64xf32> -> vector<32x64xf32>
    %100 = arith.addf %96, %99 : vector<32x64xf32>
    %101 = vector.extract_strided_slice %95 {offsets = [1, 0, 0], sizes = [1, 64, 64], strides = [1, 1, 1]} : vector<9x64x64xbf16> to vector<1x64x64xbf16>
    %102 = vector.shape_cast %101 : vector<1x64x64xbf16> to vector<64x64xbf16>
    %cst_46 = arith.constant dense<0.000000e+00> : vector<32x64xf32>
    %103 = tpu.matmul %80, %102, %cst_46 {dimension_numbers = #tpu.dot_dimension_numbers<[1], [0], [0], [1], [0, 0, 1, 1], [], []>} : vector<32x64xbf16>, vector<64x64xbf16>, vector<32x64xf32> -> vector<32x64xf32>
    %104 = arith.addf %100, %103 : vector<32x64xf32>
    %105 = vector.extract_strided_slice %95 {offsets = [2, 0, 0], sizes = [1, 64, 64], strides = [1, 1, 1]} : vector<9x64x64xbf16> to vector<1x64x64xbf16>
    %106 = vector.shape_cast %105 : vector<1x64x64xbf16> to vector<64x64xbf16>
    %cst_47 = arith.constant dense<0.000000e+00> : vector<32x64xf32>
    %107 = tpu.matmul %82, %106, %cst_47 {dimension_numbers = #tpu.dot_dimension_numbers<[1], [0], [0], [1], [0, 0, 1, 1], [], []>} : vector<32x64xbf16>, vector<64x64xbf16>, vector<32x64xf32> -> vector<32x64xf32>
    %108 = arith.addf %104, %107 : vector<32x64xf32>
    %109 = vector.extract_strided_slice %95 {offsets = [3, 0, 0], sizes = [1, 64, 64], strides = [1, 1, 1]} : vector<9x64x64xbf16> to vector<1x64x64xbf16>
    %110 = vector.shape_cast %109 : vector<1x64x64xbf16> to vector<64x64xbf16>
    %cst_48 = arith.constant dense<0.000000e+00> : vector<32x64xf32>
    %111 = tpu.matmul %84, %110, %cst_48 {dimension_numbers = #tpu.dot_dimension_numbers<[1], [0], [0], [1], [0, 0, 1, 1], [], []>} : vector<32x64xbf16>, vector<64x64xbf16>, vector<32x64xf32> -> vector<32x64xf32>
    %112 = arith.addf %108, %111 : vector<32x64xf32>
    %113 = vector.extract_strided_slice %95 {offsets = [4, 0, 0], sizes = [1, 64, 64], strides = [1, 1, 1]} : vector<9x64x64xbf16> to vector<1x64x64xbf16>
    %114 = vector.shape_cast %113 : vector<1x64x64xbf16> to vector<64x64xbf16>
    %cst_49 = arith.constant dense<0.000000e+00> : vector<32x64xf32>
    %115 = tpu.matmul %86, %114, %cst_49 {dimension_numbers = #tpu.dot_dimension_numbers<[1], [0], [0], [1], [0, 0, 1, 1], [], []>} : vector<32x64xbf16>, vector<64x64xbf16>, vector<32x64xf32> -> vector<32x64xf32>
    %116 = arith.addf %112, %115 : vector<32x64xf32>
    %117 = vector.extract_strided_slice %95 {offsets = [5, 0, 0], sizes = [1, 64, 64], strides = [1, 1, 1]} : vector<9x64x64xbf16> to vector<1x64x64xbf16>
    %118 = vector.shape_cast %117 : vector<1x64x64xbf16> to vector<64x64xbf16>
    %cst_50 = arith.constant dense<0.000000e+00> : vector<32x64xf32>
    %119 = tpu.matmul %88, %118, %cst_50 {dimension_numbers = #tpu.dot_dimension_numbers<[1], [0], [0], [1], [0, 0, 1, 1], [], []>} : vector<32x64xbf16>, vector<64x64xbf16>, vector<32x64xf32> -> vector<32x64xf32>
    %120 = arith.addf %116, %119 : vector<32x64xf32>
    %121 = vector.extract_strided_slice %95 {offsets = [6, 0, 0], sizes = [1, 64, 64], strides = [1, 1, 1]} : vector<9x64x64xbf16> to vector<1x64x64xbf16>
    %122 = vector.shape_cast %121 : vector<1x64x64xbf16> to vector<64x64xbf16>
    %cst_51 = arith.constant dense<0.000000e+00> : vector<32x64xf32>
    %123 = tpu.matmul %90, %122, %cst_51 {dimension_numbers = #tpu.dot_dimension_numbers<[1], [0], [0], [1], [0, 0, 1, 1], [], []>} : vector<32x64xbf16>, vector<64x64xbf16>, vector<32x64xf32> -> vector<32x64xf32>
    %124 = arith.addf %120, %123 : vector<32x64xf32>
    %125 = vector.extract_strided_slice %95 {offsets = [7, 0, 0], sizes = [1, 64, 64], strides = [1, 1, 1]} : vector<9x64x64xbf16> to vector<1x64x64xbf16>
    %126 = vector.shape_cast %125 : vector<1x64x64xbf16> to vector<64x64xbf16>
    %cst_52 = arith.constant dense<0.000000e+00> : vector<32x64xf32>
    %127 = tpu.matmul %92, %126, %cst_52 {dimension_numbers = #tpu.dot_dimension_numbers<[1], [0], [0], [1], [0, 0, 1, 1], [], []>} : vector<32x64xbf16>, vector<64x64xbf16>, vector<32x64xf32> -> vector<32x64xf32>
    %128 = arith.addf %124, %127 : vector<32x64xf32>
    %129 = vector.extract_strided_slice %95 {offsets = [8, 0, 0], sizes = [1, 64, 64], strides = [1, 1, 1]} : vector<9x64x64xbf16> to vector<1x64x64xbf16>
    %130 = vector.shape_cast %129 : vector<1x64x64xbf16> to vector<64x64xbf16>
    %cst_53 = arith.constant dense<0.000000e+00> : vector<32x64xf32>
    %131 = tpu.matmul %94, %130, %cst_53 {dimension_numbers = #tpu.dot_dimension_numbers<[1], [0], [0], [1], [0, 0, 1, 1], [], []>} : vector<32x64xbf16>, vector<64x64xbf16>, vector<32x64xf32> -> vector<32x64xf32>
    %132 = arith.addf %128, %131 : vector<32x64xf32>
    %c0_54 = arith.constant 0 : index
    %c0_55 = arith.constant 0 : index
    %133 = vector.load %arg6[%c0_54, %c0_55] : memref<1x64xf32, #tpu.memory_space<vmem>>, vector<1x64xf32>
    %134 = vector.broadcast %133 : vector<1x64xf32> to vector<32x64xf32>
    %135 = arith.mulf %132, %134 : vector<32x64xf32>
    %c0_56 = arith.constant 0 : index
    %c0_57 = arith.constant 0 : index
    %136 = vector.load %arg7[%c0_56, %c0_57] : memref<1x64xf32, #tpu.memory_space<vmem>>, vector<1x64xf32>
    %137 = vector.broadcast %136 : vector<1x64xf32> to vector<32x64xf32>
    %138 = arith.addf %135, %137 : vector<32x64xf32>
    %cst_58 = arith.constant 0.000000e+00 : f32
    %139 = vector.broadcast %cst_58 : f32 to vector<32x64xf32>
    %140 = arith.maximumf %138, %139 : vector<32x64xf32>
    %141 = vector.shape_cast %140 : vector<32x64xf32> to vector<4x8x64xf32>
    %c1_59 = arith.constant 1 : index
    %c2_60 = arith.constant 2 : index
    %c0_61 = arith.constant 0 : index
    %142 = vector.load %arg18[%c1_59, %c2_60, %c0_61] : memref<6x12x64xf32, #tpu.memory_space<vmem>>, vector<4x8x64xf32>
    tpu.vector_store %arg18[%c1_59, %c2_60, %c0_61], %141 {strides = array<i32>} : memref<6x12x64xf32, #tpu.memory_space<vmem>>, vector<4x8x64xf32>,
    %c0_62 = arith.constant 0 : index
    %c0_63 = arith.constant 0 : index
    %c0_64 = arith.constant 0 : index
    %143 = vector.load %arg18[%c0_62, %c0_63, %c0_64] : memref<6x12x64xf32, #tpu.memory_space<vmem>>, vector<6x12x64xf32>
    %144 = arith.truncf %143 : vector<6x12x64xf32> to vector<6x12x64xbf16>
    %145 = vector.extract_strided_slice %144 {offsets = [0, 0, 0], sizes = [4, 8, 64], strides = [1, 1, 1]} : vector<6x12x64xbf16> to vector<4x8x64xbf16>
    %146 = vector.shape_cast %145 : vector<4x8x64xbf16> to vector<32x64xbf16>
    %147 = vector.extract_strided_slice %144 {offsets = [0, 2, 0], sizes = [4, 8, 64], strides = [1, 1, 1]} : vector<6x12x64xbf16> to vector<4x8x64xbf16>
    %148 = vector.shape_cast %147 : vector<4x8x64xbf16> to vector<32x64xbf16>
    %149 = vector.extract_strided_slice %144 {offsets = [0, 4, 0], sizes = [4, 8, 64], strides = [1, 1, 1]} : vector<6x12x64xbf16> to vector<4x8x64xbf16>
    %150 = vector.shape_cast %149 : vector<4x8x64xbf16> to vector<32x64xbf16>
    %151 = vector.extract_strided_slice %144 {offsets = [1, 0, 0], sizes = [4, 8, 64], strides = [1, 1, 1]} : vector<6x12x64xbf16> to vector<4x8x64xbf16>
    %152 = vector.shape_cast %151 : vector<4x8x64xbf16> to vector<32x64xbf16>
    %153 = vector.extract_strided_slice %144 {offsets = [1, 2, 0], sizes = [4, 8, 64], strides = [1, 1, 1]} : vector<6x12x64xbf16> to vector<4x8x64xbf16>
    %154 = vector.shape_cast %153 : vector<4x8x64xbf16> to vector<32x64xbf16>
    %155 = vector.extract_strided_slice %144 {offsets = [1, 4, 0], sizes = [4, 8, 64], strides = [1, 1, 1]} : vector<6x12x64xbf16> to vector<4x8x64xbf16>
    %156 = vector.shape_cast %155 : vector<4x8x64xbf16> to vector<32x64xbf16>
    %157 = vector.extract_strided_slice %144 {offsets = [2, 0, 0], sizes = [4, 8, 64], strides = [1, 1, 1]} : vector<6x12x64xbf16> to vector<4x8x64xbf16>
    %158 = vector.shape_cast %157 : vector<4x8x64xbf16> to vector<32x64xbf16>
    %159 = vector.extract_strided_slice %144 {offsets = [2, 2, 0], sizes = [4, 8, 64], strides = [1, 1, 1]} : vector<6x12x64xbf16> to vector<4x8x64xbf16>
    %160 = vector.shape_cast %159 : vector<4x8x64xbf16> to vector<32x64xbf16>
    %161 = vector.extract_strided_slice %144 {offsets = [2, 4, 0], sizes = [4, 8, 64], strides = [1, 1, 1]} : vector<6x12x64xbf16> to vector<4x8x64xbf16>
    %162 = vector.shape_cast %161 : vector<4x8x64xbf16> to vector<32x64xbf16>
    %c0_65 = arith.constant 0 : index
    %c0_66 = arith.constant 0 : index
    %c0_67 = arith.constant 0 : index
    %163 = vector.load %arg8[%c0_65, %c0_66, %c0_67] : memref<9x64x128xbf16, #tpu.memory_space<vmem>>, vector<9x64x128xbf16>
    %cst_68 = arith.constant 0.000000e+00 : f32
    %164 = vector.broadcast %cst_68 : f32 to vector<32x128xf32>
    %165 = vector.extract_strided_slice %163 {offsets = [0, 0, 0], sizes = [1, 64, 128], strides = [1, 1, 1]} : vector<9x64x128xbf16> to vector<1x64x128xbf16>
    %166 = vector.shape_cast %165 : vector<1x64x128xbf16> to vector<64x128xbf16>
    %cst_69 = arith.constant dense<0.000000e+00> : vector<32x128xf32>
    %167 = tpu.matmul %146, %166, %cst_69 {dimension_numbers = #tpu.dot_dimension_numbers<[1], [0], [0], [1], [0, 0, 1, 1], [], []>} : vector<32x64xbf16>, vector<64x128xbf16>, vector<32x128xf32> -> vector<32x128xf32>
    %168 = arith.addf %164, %167 : vector<32x128xf32>
    %169 = vector.extract_strided_slice %163 {offsets = [1, 0, 0], sizes = [1, 64, 128], strides = [1, 1, 1]} : vector<9x64x128xbf16> to vector<1x64x128xbf16>
    %170 = vector.shape_cast %169 : vector<1x64x128xbf16> to vector<64x128xbf16>
    %cst_70 = arith.constant dense<0.000000e+00> : vector<32x128xf32>
    %171 = tpu.matmul %148, %170, %cst_70 {dimension_numbers = #tpu.dot_dimension_numbers<[1], [0], [0], [1], [0, 0, 1, 1], [], []>} : vector<32x64xbf16>, vector<64x128xbf16>, vector<32x128xf32> -> vector<32x128xf32>
    %172 = arith.addf %168, %171 : vector<32x128xf32>
    %173 = vector.extract_strided_slice %163 {offsets = [2, 0, 0], sizes = [1, 64, 128], strides = [1, 1, 1]} : vector<9x64x128xbf16> to vector<1x64x128xbf16>
    %174 = vector.shape_cast %173 : vector<1x64x128xbf16> to vector<64x128xbf16>
    %cst_71 = arith.constant dense<0.000000e+00> : vector<32x128xf32>
    %175 = tpu.matmul %150, %174, %cst_71 {dimension_numbers = #tpu.dot_dimension_numbers<[1], [0], [0], [1], [0, 0, 1, 1], [], []>} : vector<32x64xbf16>, vector<64x128xbf16>, vector<32x128xf32> -> vector<32x128xf32>
    %176 = arith.addf %172, %175 : vector<32x128xf32>
    %177 = vector.extract_strided_slice %163 {offsets = [3, 0, 0], sizes = [1, 64, 128], strides = [1, 1, 1]} : vector<9x64x128xbf16> to vector<1x64x128xbf16>
    %178 = vector.shape_cast %177 : vector<1x64x128xbf16> to vector<64x128xbf16>
    %cst_72 = arith.constant dense<0.000000e+00> : vector<32x128xf32>
    %179 = tpu.matmul %152, %178, %cst_72 {dimension_numbers = #tpu.dot_dimension_numbers<[1], [0], [0], [1], [0, 0, 1, 1], [], []>} : vector<32x64xbf16>, vector<64x128xbf16>, vector<32x128xf32> -> vector<32x128xf32>
    %180 = arith.addf %176, %179 : vector<32x128xf32>
    %181 = vector.extract_strided_slice %163 {offsets = [4, 0, 0], sizes = [1, 64, 128], strides = [1, 1, 1]} : vector<9x64x128xbf16> to vector<1x64x128xbf16>
    %182 = vector.shape_cast %181 : vector<1x64x128xbf16> to vector<64x128xbf16>
    %cst_73 = arith.constant dense<0.000000e+00> : vector<32x128xf32>
    %183 = tpu.matmul %154, %182, %cst_73 {dimension_numbers = #tpu.dot_dimension_numbers<[1], [0], [0], [1], [0, 0, 1, 1], [], []>} : vector<32x64xbf16>, vector<64x128xbf16>, vector<32x128xf32> -> vector<32x128xf32>
    %184 = arith.addf %180, %183 : vector<32x128xf32>
    %185 = vector.extract_strided_slice %163 {offsets = [5, 0, 0], sizes = [1, 64, 128], strides = [1, 1, 1]} : vector<9x64x128xbf16> to vector<1x64x128xbf16>
    %186 = vector.shape_cast %185 : vector<1x64x128xbf16> to vector<64x128xbf16>
    %cst_74 = arith.constant dense<0.000000e+00> : vector<32x128xf32>
    %187 = tpu.matmul %156, %186, %cst_74 {dimension_numbers = #tpu.dot_dimension_numbers<[1], [0], [0], [1], [0, 0, 1, 1], [], []>} : vector<32x64xbf16>, vector<64x128xbf16>, vector<32x128xf32> -> vector<32x128xf32>
    %188 = arith.addf %184, %187 : vector<32x128xf32>
    %189 = vector.extract_strided_slice %163 {offsets = [6, 0, 0], sizes = [1, 64, 128], strides = [1, 1, 1]} : vector<9x64x128xbf16> to vector<1x64x128xbf16>
    %190 = vector.shape_cast %189 : vector<1x64x128xbf16> to vector<64x128xbf16>
    %cst_75 = arith.constant dense<0.000000e+00> : vector<32x128xf32>
    %191 = tpu.matmul %158, %190, %cst_75 {dimension_numbers = #tpu.dot_dimension_numbers<[1], [0], [0], [1], [0, 0, 1, 1], [], []>} : vector<32x64xbf16>, vector<64x128xbf16>, vector<32x128xf32> -> vector<32x128xf32>
    %192 = arith.addf %188, %191 : vector<32x128xf32>
    %193 = vector.extract_strided_slice %163 {offsets = [7, 0, 0], sizes = [1, 64, 128], strides = [1, 1, 1]} : vector<9x64x128xbf16> to vector<1x64x128xbf16>
    %194 = vector.shape_cast %193 : vector<1x64x128xbf16> to vector<64x128xbf16>
    %cst_76 = arith.constant dense<0.000000e+00> : vector<32x128xf32>
    %195 = tpu.matmul %160, %194, %cst_76 {dimension_numbers = #tpu.dot_dimension_numbers<[1], [0], [0], [1], [0, 0, 1, 1], [], []>} : vector<32x64xbf16>, vector<64x128xbf16>, vector<32x128xf32> -> vector<32x128xf32>
    %196 = arith.addf %192, %195 : vector<32x128xf32>
    %197 = vector.extract_strided_slice %163 {offsets = [8, 0, 0], sizes = [1, 64, 128], strides = [1, 1, 1]} : vector<9x64x128xbf16> to vector<1x64x128xbf16>
    %198 = vector.shape_cast %197 : vector<1x64x128xbf16> to vector<64x128xbf16>
    %cst_77 = arith.constant dense<0.000000e+00> : vector<32x128xf32>
    %199 = tpu.matmul %162, %198, %cst_77 {dimension_numbers = #tpu.dot_dimension_numbers<[1], [0], [0], [1], [0, 0, 1, 1], [], []>} : vector<32x64xbf16>, vector<64x128xbf16>, vector<32x128xf32> -> vector<32x128xf32>
    %200 = arith.addf %196, %199 : vector<32x128xf32>
    %c0_78 = arith.constant 0 : index
    %c0_79 = arith.constant 0 : index
    %201 = vector.load %arg9[%c0_78, %c0_79] : memref<1x128xf32, #tpu.memory_space<vmem>>, vector<1x128xf32>
    %202 = vector.broadcast %201 : vector<1x128xf32> to vector<32x128xf32>
    %203 = arith.mulf %200, %202 : vector<32x128xf32>
    %c0_80 = arith.constant 0 : index
    %c0_81 = arith.constant 0 : index
    %204 = vector.load %arg10[%c0_80, %c0_81] : memref<1x128xf32, #tpu.memory_space<vmem>>, vector<1x128xf32>
    %205 = vector.broadcast %204 : vector<1x128xf32> to vector<32x128xf32>
    %206 = arith.addf %203, %205 : vector<32x128xf32>
    %cst_82 = arith.constant 0.000000e+00 : f32
    %207 = vector.broadcast %cst_82 : f32 to vector<32x128xf32>
    %208 = arith.maximumf %206, %207 : vector<32x128xf32>
    %209 = vector.shape_cast %208 : vector<32x128xf32> to vector<4x8x128xf32>
    %c1_83 = arith.constant 1 : index
    %c2_84 = arith.constant 2 : index
    %c0_85 = arith.constant 0 : index
    %210 = vector.load %arg19[%c1_83, %c2_84, %c0_85] : memref<6x12x128xf32, #tpu.memory_space<vmem>>, vector<4x8x128xf32>
    tpu.vector_store %arg19[%c1_83, %c2_84, %c0_85], %209 {strides = array<i32>} : memref<6x12x128xf32, #tpu.memory_space<vmem>>, vector<4x8x128xf32>,
    %c0_86 = arith.constant 0 : index
    %c0_87 = arith.constant 0 : index
    %c0_88 = arith.constant 0 : index
    %211 = vector.load %arg19[%c0_86, %c0_87, %c0_88] : memref<6x12x128xf32, #tpu.memory_space<vmem>>, vector<6x12x128xf32>
    %212 = arith.truncf %211 : vector<6x12x128xf32> to vector<6x12x128xbf16>
    %213 = vector.extract_strided_slice %212 {offsets = [0, 0, 0], sizes = [4, 8, 128], strides = [1, 1, 1]} : vector<6x12x128xbf16> to vector<4x8x128xbf16>
    %214 = vector.shape_cast %213 : vector<4x8x128xbf16> to vector<32x128xbf16>
    %215 = vector.extract_strided_slice %212 {offsets = [0, 2, 0], sizes = [4, 8, 128], strides = [1, 1, 1]} : vector<6x12x128xbf16> to vector<4x8x128xbf16>
    %216 = vector.shape_cast %215 : vector<4x8x128xbf16> to vector<32x128xbf16>
    %217 = vector.extract_strided_slice %212 {offsets = [0, 4, 0], sizes = [4, 8, 128], strides = [1, 1, 1]} : vector<6x12x128xbf16> to vector<4x8x128xbf16>
    %218 = vector.shape_cast %217 : vector<4x8x128xbf16> to vector<32x128xbf16>
    %219 = vector.extract_strided_slice %212 {offsets = [1, 0, 0], sizes = [4, 8, 128], strides = [1, 1, 1]} : vector<6x12x128xbf16> to vector<4x8x128xbf16>
    %220 = vector.shape_cast %219 : vector<4x8x128xbf16> to vector<32x128xbf16>
    %221 = vector.extract_strided_slice %212 {offsets = [1, 2, 0], sizes = [4, 8, 128], strides = [1, 1, 1]} : vector<6x12x128xbf16> to vector<4x8x128xbf16>
    %222 = vector.shape_cast %221 : vector<4x8x128xbf16> to vector<32x128xbf16>
    %223 = vector.extract_strided_slice %212 {offsets = [1, 4, 0], sizes = [4, 8, 128], strides = [1, 1, 1]} : vector<6x12x128xbf16> to vector<4x8x128xbf16>
    %224 = vector.shape_cast %223 : vector<4x8x128xbf16> to vector<32x128xbf16>
    %225 = vector.extract_strided_slice %212 {offsets = [2, 0, 0], sizes = [4, 8, 128], strides = [1, 1, 1]} : vector<6x12x128xbf16> to vector<4x8x128xbf16>
    %226 = vector.shape_cast %225 : vector<4x8x128xbf16> to vector<32x128xbf16>
    %227 = vector.extract_strided_slice %212 {offsets = [2, 2, 0], sizes = [4, 8, 128], strides = [1, 1, 1]} : vector<6x12x128xbf16> to vector<4x8x128xbf16>
    %228 = vector.shape_cast %227 : vector<4x8x128xbf16> to vector<32x128xbf16>
    %229 = vector.extract_strided_slice %212 {offsets = [2, 4, 0], sizes = [4, 8, 128], strides = [1, 1, 1]} : vector<6x12x128xbf16> to vector<4x8x128xbf16>
    %230 = vector.shape_cast %229 : vector<4x8x128xbf16> to vector<32x128xbf16>
    %231 = tpu.concatenate %214, %216, %218, %220, %222, %224, %226, %228, %230 in 1 : vector<32x128xbf16>, vector<32x128xbf16>, vector<32x128xbf16>, vector<32x128xbf16>, vector<32x128xbf16>, vector<32x128xbf16>, vector<32x128xbf16>, vector<32x128xbf16>, vector<32x128xbf16> -> vector<32x1152xbf16>
    %c0_89 = arith.constant 0 : index
    %c0_90 = arith.constant 0 : index
    %232 = vector.load %arg11[%c0_89, %c0_90] : memref<1152x128xbf16, #tpu.memory_space<vmem>>, vector<1152x128xbf16>
    %cst_91 = arith.constant dense<0.000000e+00> : vector<32x128xf32>
    %233 = tpu.matmul %231, %232, %cst_91 {dimension_numbers = #tpu.dot_dimension_numbers<[1], [0], [0], [1], [0, 0, 1, 1], [], []>} : vector<32x1152xbf16>, vector<1152x128xbf16>, vector<32x128xf32> -> vector<32x128xf32>
    %c0_92 = arith.constant 0 : index
    %c0_93 = arith.constant 0 : index
    %234 = vector.load %arg12[%c0_92, %c0_93] : memref<1x128xf32, #tpu.memory_space<vmem>>, vector<1x128xf32>
    %235 = vector.broadcast %234 : vector<1x128xf32> to vector<32x128xf32>
    %236 = arith.mulf %233, %235 : vector<32x128xf32>
    %c0_94 = arith.constant 0 : index
    %c0_95 = arith.constant 0 : index
    %237 = vector.load %arg13[%c0_94, %c0_95] : memref<1x128xf32, #tpu.memory_space<vmem>>, vector<1x128xf32>
    %238 = vector.broadcast %237 : vector<1x128xf32> to vector<32x128xf32>
    %239 = arith.addf %236, %238 : vector<32x128xf32>
    %cst_96 = arith.constant 0.000000e+00 : f32
    %240 = vector.broadcast %cst_96 : f32 to vector<32x128xf32>
    %241 = arith.maximumf %239, %240 : vector<32x128xf32>
    %242 = vector.shape_cast %241 : vector<32x128xf32> to vector<4x8x128xf32>
    %243 = vector.shape_cast %242 : vector<4x8x128xf32> to vector<16x2x128xf32>
    %c0_97 = arith.constant 0 : index
    %c0_98 = arith.constant 0 : index
    %c0_99 = arith.constant 0 : index
    %244 = vector.load %arg14[%c0_97, %c0_98, %c0_99] : memref<16x128x10xf32, #tpu.memory_space<vmem>>, vector<16x128x10xf32>
    %cst_100 = arith.constant 0.000000e+00 : f32
    %245 = vector.broadcast %cst_100 : f32 to vector<2x10xf32>
    %246 = vector.extract_strided_slice %243 {offsets = [0, 0, 0], sizes = [1, 2, 128], strides = [1, 1, 1]} : vector<16x2x128xf32> to vector<1x2x128xf32>
    %247 = vector.shape_cast %246 : vector<1x2x128xf32> to vector<2x128xf32>
    %248 = vector.extract_strided_slice %244 {offsets = [0, 0, 0], sizes = [1, 128, 10], strides = [1, 1, 1]} : vector<16x128x10xf32> to vector<1x128x10xf32>
    %249 = vector.shape_cast %248 : vector<1x128x10xf32> to vector<128x10xf32>
    %cst_101 = arith.constant dense<0.000000e+00> : vector<2x10xf32>
    %250 = tpu.matmul %247, %249, %cst_101 {dimension_numbers = #tpu.dot_dimension_numbers<[1], [0], [0], [1], [0, 0, 1, 1], [], []>} : vector<2x128xf32>, vector<128x10xf32>, vector<2x10xf32> -> vector<2x10xf32>
    %251 = arith.addf %245, %250 : vector<2x10xf32>
    %252 = vector.extract_strided_slice %243 {offsets = [1, 0, 0], sizes = [1, 2, 128], strides = [1, 1, 1]} : vector<16x2x128xf32> to vector<1x2x128xf32>
    %253 = vector.shape_cast %252 : vector<1x2x128xf32> to vector<2x128xf32>
    %254 = vector.extract_strided_slice %244 {offsets = [1, 0, 0], sizes = [1, 128, 10], strides = [1, 1, 1]} : vector<16x128x10xf32> to vector<1x128x10xf32>
    %255 = vector.shape_cast %254 : vector<1x128x10xf32> to vector<128x10xf32>
    %cst_102 = arith.constant dense<0.000000e+00> : vector<2x10xf32>
    %256 = tpu.matmul %253, %255, %cst_102 {dimension_numbers = #tpu.dot_dimension_numbers<[1], [0], [0], [1], [0, 0, 1, 1], [], []>} : vector<2x128xf32>, vector<128x10xf32>, vector<2x10xf32> -> vector<2x10xf32>
    %257 = arith.addf %251, %256 : vector<2x10xf32>
    %258 = vector.extract_strided_slice %243 {offsets = [2, 0, 0], sizes = [1, 2, 128], strides = [1, 1, 1]} : vector<16x2x128xf32> to vector<1x2x128xf32>
    %259 = vector.shape_cast %258 : vector<1x2x128xf32> to vector<2x128xf32>
    %260 = vector.extract_strided_slice %244 {offsets = [2, 0, 0], sizes = [1, 128, 10], strides = [1, 1, 1]} : vector<16x128x10xf32> to vector<1x128x10xf32>
    %261 = vector.shape_cast %260 : vector<1x128x10xf32> to vector<128x10xf32>
    %cst_103 = arith.constant dense<0.000000e+00> : vector<2x10xf32>
    %262 = tpu.matmul %259, %261, %cst_103 {dimension_numbers = #tpu.dot_dimension_numbers<[1], [0], [0], [1], [0, 0, 1, 1], [], []>} : vector<2x128xf32>, vector<128x10xf32>, vector<2x10xf32> -> vector<2x10xf32>
    %263 = arith.addf %257, %262 : vector<2x10xf32>
    %264 = vector.extract_strided_slice %243 {offsets = [3, 0, 0], sizes = [1, 2, 128], strides = [1, 1, 1]} : vector<16x2x128xf32> to vector<1x2x128xf32>
    %265 = vector.shape_cast %264 : vector<1x2x128xf32> to vector<2x128xf32>
    %266 = vector.extract_strided_slice %244 {offsets = [3, 0, 0], sizes = [1, 128, 10], strides = [1, 1, 1]} : vector<16x128x10xf32> to vector<1x128x10xf32>
    %267 = vector.shape_cast %266 : vector<1x128x10xf32> to vector<128x10xf32>
    %cst_104 = arith.constant dense<0.000000e+00> : vector<2x10xf32>
    %268 = tpu.matmul %265, %267, %cst_104 {dimension_numbers = #tpu.dot_dimension_numbers<[1], [0], [0], [1], [0, 0, 1, 1], [], []>} : vector<2x128xf32>, vector<128x10xf32>, vector<2x10xf32> -> vector<2x10xf32>
    %269 = arith.addf %263, %268 : vector<2x10xf32>
    %270 = vector.extract_strided_slice %243 {offsets = [4, 0, 0], sizes = [1, 2, 128], strides = [1, 1, 1]} : vector<16x2x128xf32> to vector<1x2x128xf32>
    %271 = vector.shape_cast %270 : vector<1x2x128xf32> to vector<2x128xf32>
    %272 = vector.extract_strided_slice %244 {offsets = [4, 0, 0], sizes = [1, 128, 10], strides = [1, 1, 1]} : vector<16x128x10xf32> to vector<1x128x10xf32>
    %273 = vector.shape_cast %272 : vector<1x128x10xf32> to vector<128x10xf32>
    %cst_105 = arith.constant dense<0.000000e+00> : vector<2x10xf32>
    %274 = tpu.matmul %271, %273, %cst_105 {dimension_numbers = #tpu.dot_dimension_numbers<[1], [0], [0], [1], [0, 0, 1, 1], [], []>} : vector<2x128xf32>, vector<128x10xf32>, vector<2x10xf32> -> vector<2x10xf32>
    %275 = arith.addf %269, %274 : vector<2x10xf32>
    %276 = vector.extract_strided_slice %243 {offsets = [5, 0, 0], sizes = [1, 2, 128], strides = [1, 1, 1]} : vector<16x2x128xf32> to vector<1x2x128xf32>
    %277 = vector.shape_cast %276 : vector<1x2x128xf32> to vector<2x128xf32>
    %278 = vector.extract_strided_slice %244 {offsets = [5, 0, 0], sizes = [1, 128, 10], strides = [1, 1, 1]} : vector<16x128x10xf32> to vector<1x128x10xf32>
    %279 = vector.shape_cast %278 : vector<1x128x10xf32> to vector<128x10xf32>
    %cst_106 = arith.constant dense<0.000000e+00> : vector<2x10xf32>
    %280 = tpu.matmul %277, %279, %cst_106 {dimension_numbers = #tpu.dot_dimension_numbers<[1], [0], [0], [1], [0, 0, 1, 1], [], []>} : vector<2x128xf32>, vector<128x10xf32>, vector<2x10xf32> -> vector<2x10xf32>
    %281 = arith.addf %275, %280 : vector<2x10xf32>
    %282 = vector.extract_strided_slice %243 {offsets = [6, 0, 0], sizes = [1, 2, 128], strides = [1, 1, 1]} : vector<16x2x128xf32> to vector<1x2x128xf32>
    %283 = vector.shape_cast %282 : vector<1x2x128xf32> to vector<2x128xf32>
    %284 = vector.extract_strided_slice %244 {offsets = [6, 0, 0], sizes = [1, 128, 10], strides = [1, 1, 1]} : vector<16x128x10xf32> to vector<1x128x10xf32>
    %285 = vector.shape_cast %284 : vector<1x128x10xf32> to vector<128x10xf32>
    %cst_107 = arith.constant dense<0.000000e+00> : vector<2x10xf32>
    %286 = tpu.matmul %283, %285, %cst_107 {dimension_numbers = #tpu.dot_dimension_numbers<[1], [0], [0], [1], [0, 0, 1, 1], [], []>} : vector<2x128xf32>, vector<128x10xf32>, vector<2x10xf32> -> vector<2x10xf32>
    %287 = arith.addf %281, %286 : vector<2x10xf32>
    %288 = vector.extract_strided_slice %243 {offsets = [7, 0, 0], sizes = [1, 2, 128], strides = [1, 1, 1]} : vector<16x2x128xf32> to vector<1x2x128xf32>
    %289 = vector.shape_cast %288 : vector<1x2x128xf32> to vector<2x128xf32>
    %290 = vector.extract_strided_slice %244 {offsets = [7, 0, 0], sizes = [1, 128, 10], strides = [1, 1, 1]} : vector<16x128x10xf32> to vector<1x128x10xf32>
    %291 = vector.shape_cast %290 : vector<1x128x10xf32> to vector<128x10xf32>
    %cst_108 = arith.constant dense<0.000000e+00> : vector<2x10xf32>
    %292 = tpu.matmul %289, %291, %cst_108 {dimension_numbers = #tpu.dot_dimension_numbers<[1], [0], [0], [1], [0, 0, 1, 1], [], []>} : vector<2x128xf32>, vector<128x10xf32>, vector<2x10xf32> -> vector<2x10xf32>
    %293 = arith.addf %287, %292 : vector<2x10xf32>
    %294 = vector.extract_strided_slice %243 {offsets = [8, 0, 0], sizes = [1, 2, 128], strides = [1, 1, 1]} : vector<16x2x128xf32> to vector<1x2x128xf32>
    %295 = vector.shape_cast %294 : vector<1x2x128xf32> to vector<2x128xf32>
    %296 = vector.extract_strided_slice %244 {offsets = [8, 0, 0], sizes = [1, 128, 10], strides = [1, 1, 1]} : vector<16x128x10xf32> to vector<1x128x10xf32>
    %297 = vector.shape_cast %296 : vector<1x128x10xf32> to vector<128x10xf32>
    %cst_109 = arith.constant dense<0.000000e+00> : vector<2x10xf32>
    %298 = tpu.matmul %295, %297, %cst_109 {dimension_numbers = #tpu.dot_dimension_numbers<[1], [0], [0], [1], [0, 0, 1, 1], [], []>} : vector<2x128xf32>, vector<128x10xf32>, vector<2x10xf32> -> vector<2x10xf32>
    %299 = arith.addf %293, %298 : vector<2x10xf32>
    %300 = vector.extract_strided_slice %243 {offsets = [9, 0, 0], sizes = [1, 2, 128], strides = [1, 1, 1]} : vector<16x2x128xf32> to vector<1x2x128xf32>
    %301 = vector.shape_cast %300 : vector<1x2x128xf32> to vector<2x128xf32>
    %302 = vector.extract_strided_slice %244 {offsets = [9, 0, 0], sizes = [1, 128, 10], strides = [1, 1, 1]} : vector<16x128x10xf32> to vector<1x128x10xf32>
    %303 = vector.shape_cast %302 : vector<1x128x10xf32> to vector<128x10xf32>
    %cst_110 = arith.constant dense<0.000000e+00> : vector<2x10xf32>
    %304 = tpu.matmul %301, %303, %cst_110 {dimension_numbers = #tpu.dot_dimension_numbers<[1], [0], [0], [1], [0, 0, 1, 1], [], []>} : vector<2x128xf32>, vector<128x10xf32>, vector<2x10xf32> -> vector<2x10xf32>
    %305 = arith.addf %299, %304 : vector<2x10xf32>
    %306 = vector.extract_strided_slice %243 {offsets = [10, 0, 0], sizes = [1, 2, 128], strides = [1, 1, 1]} : vector<16x2x128xf32> to vector<1x2x128xf32>
    %307 = vector.shape_cast %306 : vector<1x2x128xf32> to vector<2x128xf32>
    %308 = vector.extract_strided_slice %244 {offsets = [10, 0, 0], sizes = [1, 128, 10], strides = [1, 1, 1]} : vector<16x128x10xf32> to vector<1x128x10xf32>
    %309 = vector.shape_cast %308 : vector<1x128x10xf32> to vector<128x10xf32>
    %cst_111 = arith.constant dense<0.000000e+00> : vector<2x10xf32>
    %310 = tpu.matmul %307, %309, %cst_111 {dimension_numbers = #tpu.dot_dimension_numbers<[1], [0], [0], [1], [0, 0, 1, 1], [], []>} : vector<2x128xf32>, vector<128x10xf32>, vector<2x10xf32> -> vector<2x10xf32>
    %311 = arith.addf %305, %310 : vector<2x10xf32>
    %312 = vector.extract_strided_slice %243 {offsets = [11, 0, 0], sizes = [1, 2, 128], strides = [1, 1, 1]} : vector<16x2x128xf32> to vector<1x2x128xf32>
    %313 = vector.shape_cast %312 : vector<1x2x128xf32> to vector<2x128xf32>
    %314 = vector.extract_strided_slice %244 {offsets = [11, 0, 0], sizes = [1, 128, 10], strides = [1, 1, 1]} : vector<16x128x10xf32> to vector<1x128x10xf32>
    %315 = vector.shape_cast %314 : vector<1x128x10xf32> to vector<128x10xf32>
    %cst_112 = arith.constant dense<0.000000e+00> : vector<2x10xf32>
    %316 = tpu.matmul %313, %315, %cst_112 {dimension_numbers = #tpu.dot_dimension_numbers<[1], [0], [0], [1], [0, 0, 1, 1], [], []>} : vector<2x128xf32>, vector<128x10xf32>, vector<2x10xf32> -> vector<2x10xf32>
    %317 = arith.addf %311, %316 : vector<2x10xf32>
    %318 = vector.extract_strided_slice %243 {offsets = [12, 0, 0], sizes = [1, 2, 128], strides = [1, 1, 1]} : vector<16x2x128xf32> to vector<1x2x128xf32>
    %319 = vector.shape_cast %318 : vector<1x2x128xf32> to vector<2x128xf32>
    %320 = vector.extract_strided_slice %244 {offsets = [12, 0, 0], sizes = [1, 128, 10], strides = [1, 1, 1]} : vector<16x128x10xf32> to vector<1x128x10xf32>
    %321 = vector.shape_cast %320 : vector<1x128x10xf32> to vector<128x10xf32>
    %cst_113 = arith.constant dense<0.000000e+00> : vector<2x10xf32>
    %322 = tpu.matmul %319, %321, %cst_113 {dimension_numbers = #tpu.dot_dimension_numbers<[1], [0], [0], [1], [0, 0, 1, 1], [], []>} : vector<2x128xf32>, vector<128x10xf32>, vector<2x10xf32> -> vector<2x10xf32>
    %323 = arith.addf %317, %322 : vector<2x10xf32>
    %324 = vector.extract_strided_slice %243 {offsets = [13, 0, 0], sizes = [1, 2, 128], strides = [1, 1, 1]} : vector<16x2x128xf32> to vector<1x2x128xf32>
    %325 = vector.shape_cast %324 : vector<1x2x128xf32> to vector<2x128xf32>
    %326 = vector.extract_strided_slice %244 {offsets = [13, 0, 0], sizes = [1, 128, 10], strides = [1, 1, 1]} : vector<16x128x10xf32> to vector<1x128x10xf32>
    %327 = vector.shape_cast %326 : vector<1x128x10xf32> to vector<128x10xf32>
    %cst_114 = arith.constant dense<0.000000e+00> : vector<2x10xf32>
    %328 = tpu.matmul %325, %327, %cst_114 {dimension_numbers = #tpu.dot_dimension_numbers<[1], [0], [0], [1], [0, 0, 1, 1], [], []>} : vector<2x128xf32>, vector<128x10xf32>, vector<2x10xf32> -> vector<2x10xf32>
    %329 = arith.addf %323, %328 : vector<2x10xf32>
    %330 = vector.extract_strided_slice %243 {offsets = [14, 0, 0], sizes = [1, 2, 128], strides = [1, 1, 1]} : vector<16x2x128xf32> to vector<1x2x128xf32>
    %331 = vector.shape_cast %330 : vector<1x2x128xf32> to vector<2x128xf32>
    %332 = vector.extract_strided_slice %244 {offsets = [14, 0, 0], sizes = [1, 128, 10], strides = [1, 1, 1]} : vector<16x128x10xf32> to vector<1x128x10xf32>
    %333 = vector.shape_cast %332 : vector<1x128x10xf32> to vector<128x10xf32>
    %cst_115 = arith.constant dense<0.000000e+00> : vector<2x10xf32>
    %334 = tpu.matmul %331, %333, %cst_115 {dimension_numbers = #tpu.dot_dimension_numbers<[1], [0], [0], [1], [0, 0, 1, 1], [], []>} : vector<2x128xf32>, vector<128x10xf32>, vector<2x10xf32> -> vector<2x10xf32>
    %335 = arith.addf %329, %334 : vector<2x10xf32>
    %336 = vector.extract_strided_slice %243 {offsets = [15, 0, 0], sizes = [1, 2, 128], strides = [1, 1, 1]} : vector<16x2x128xf32> to vector<1x2x128xf32>
    %337 = vector.shape_cast %336 : vector<1x2x128xf32> to vector<2x128xf32>
    %338 = vector.extract_strided_slice %244 {offsets = [15, 0, 0], sizes = [1, 128, 10], strides = [1, 1, 1]} : vector<16x128x10xf32> to vector<1x128x10xf32>
    %339 = vector.shape_cast %338 : vector<1x128x10xf32> to vector<128x10xf32>
    %cst_116 = arith.constant dense<0.000000e+00> : vector<2x10xf32>
    %340 = tpu.matmul %337, %339, %cst_116 {dimension_numbers = #tpu.dot_dimension_numbers<[1], [0], [0], [1], [0, 0, 1, 1], [], []>} : vector<2x128xf32>, vector<128x10xf32>, vector<2x10xf32> -> vector<2x10xf32>
    %341 = arith.addf %335, %340 : vector<2x10xf32>
    %c0_117 = arith.constant 0 : index
    %c0_118 = arith.constant 0 : index
    %342 = vector.load %arg15[%c0_117, %c0_118] : memref<1x10xf32, #tpu.memory_space<vmem>>, vector<1x10xf32>
    %343 = vector.broadcast %342 : vector<1x10xf32> to vector<2x10xf32>
    %344 = arith.addf %341, %343 : vector<2x10xf32>
    %c0_119 = arith.constant 0 : index
    %c0_120 = arith.constant 0 : index
    %345 = vector.load %arg16[%c0_119, %c0_120] : memref<2x10xf32, #tpu.memory_space<vmem>>, vector<2x10xf32>
    tpu.vector_store %arg16[%c0_119, %c0_120], %344 {strides = array<i32>} : memref<2x10xf32, #tpu.memory_space<vmem>>, vector<2x10xf32>,
    return
  }
  func.func @transform_0(%arg0: i32) -> (i32, i32, i32) {
    %c0_i32 = arith.constant 0 : i32
    %c0_i32_0 = arith.constant 0 : i32
    %c0_i32_1 = arith.constant 0 : i32
    %c0_i32_2 = arith.constant 0 : i32
    return %c0_i32, %c0_i32_0, %c0_i32_1 : i32, i32, i32
  }
  func.func @transform_1(%arg0: i32) -> (i32, i32, i32) {
    %c0_i32 = arith.constant 0 : i32
    %c0_i32_0 = arith.constant 0 : i32
    %c0_i32_1 = arith.constant 0 : i32
    %c0_i32_2 = arith.constant 0 : i32
    return %c0_i32, %c0_i32_0, %c0_i32_1 : i32, i32, i32
  }
  func.func @transform_2(%arg0: i32) -> (i32, i32) {
    %c0_i32 = arith.constant 0 : i32
    %c0_i32_0 = arith.constant 0 : i32
    %c0_i32_1 = arith.constant 0 : i32
    return %c0_i32, %c0_i32_0 : i32, i32
  }
  func.func @transform_3(%arg0: i32) -> (i32, i32) {
    %c0_i32 = arith.constant 0 : i32
    %c0_i32_0 = arith.constant 0 : i32
    %c0_i32_1 = arith.constant 0 : i32
    return %c0_i32, %c0_i32_0 : i32, i32
  }
  func.func @transform_4(%arg0: i32) -> (i32, i32, i32) {
    %c0_i32 = arith.constant 0 : i32
    %c0_i32_0 = arith.constant 0 : i32
    %c0_i32_1 = arith.constant 0 : i32
    %c0_i32_2 = arith.constant 0 : i32
    return %c0_i32, %c0_i32_0, %c0_i32_1 : i32, i32, i32
  }
  func.func @transform_5(%arg0: i32) -> (i32, i32) {
    %c0_i32 = arith.constant 0 : i32
    %c0_i32_0 = arith.constant 0 : i32
    %c0_i32_1 = arith.constant 0 : i32
    return %c0_i32, %c0_i32_0 : i32, i32
  }
  func.func @transform_6(%arg0: i32) -> (i32, i32) {
    %c0_i32 = arith.constant 0 : i32
    %c0_i32_0 = arith.constant 0 : i32
    %c0_i32_1 = arith.constant 0 : i32
    return %c0_i32, %c0_i32_0 : i32, i32
  }
  func.func @transform_7(%arg0: i32) -> (i32, i32, i32) {
    %c0_i32 = arith.constant 0 : i32
    %c0_i32_0 = arith.constant 0 : i32
    %c0_i32_1 = arith.constant 0 : i32
    %c0_i32_2 = arith.constant 0 : i32
    return %c0_i32, %c0_i32_0, %c0_i32_1 : i32, i32, i32
  }
  func.func @transform_8(%arg0: i32) -> (i32, i32) {
    %c0_i32 = arith.constant 0 : i32
    %c0_i32_0 = arith.constant 0 : i32
    %c0_i32_1 = arith.constant 0 : i32
    return %c0_i32, %c0_i32_0 : i32, i32
  }
  func.func @transform_9(%arg0: i32) -> (i32, i32) {
    %c0_i32 = arith.constant 0 : i32
    %c0_i32_0 = arith.constant 0 : i32
    %c0_i32_1 = arith.constant 0 : i32
    return %c0_i32, %c0_i32_0 : i32, i32
  }
  func.func @transform_10(%arg0: i32) -> (i32, i32) {
    %c0_i32 = arith.constant 0 : i32
    %c0_i32_0 = arith.constant 0 : i32
    %c0_i32_1 = arith.constant 0 : i32
    return %c0_i32, %c0_i32_0 : i32, i32
  }
  func.func @transform_11(%arg0: i32) -> (i32, i32) {
    %c0_i32 = arith.constant 0 : i32
    %c0_i32_0 = arith.constant 0 : i32
    %c0_i32_1 = arith.constant 0 : i32
    return %c0_i32, %c0_i32_0 : i32, i32
  }
  func.func @transform_12(%arg0: i32) -> (i32, i32) {
    %c0_i32 = arith.constant 0 : i32
    %c0_i32_0 = arith.constant 0 : i32
    %c0_i32_1 = arith.constant 0 : i32
    return %c0_i32, %c0_i32_0 : i32, i32
  }
  func.func @transform_13(%arg0: i32) -> (i32, i32, i32) {
    %c0_i32 = arith.constant 0 : i32
    %c0_i32_0 = arith.constant 0 : i32
    %c0_i32_1 = arith.constant 0 : i32
    %c0_i32_2 = arith.constant 0 : i32
    return %c0_i32, %c0_i32_0, %c0_i32_1 : i32, i32, i32
  }
  func.func @transform_14(%arg0: i32) -> (i32, i32) {
    %c0_i32 = arith.constant 0 : i32
    %c0_i32_0 = arith.constant 0 : i32
    %c0_i32_1 = arith.constant 0 : i32
    return %c0_i32, %c0_i32_0 : i32, i32
  }
  func.func @transform_15(%arg0: i32) -> (i32, i32) {
    %c0_i32 = arith.constant 0 : i32
    %c0_i32_0 = arith.constant 0 : i32
    %c0_i32_1 = arith.constant 0 : i32
    return %c0_i32, %c0_i32_0 : i32, i32
  }
}

</mosaic_0001>

<llo_original>
// kernel: net_forward_pallas.1
$region0: #{net_forward_pallas.1}
  #allocation0 [shape = 'u32[]', space=smem, size = 0x4, offset = 0x4, fixed_abs, tag = 'smem constant byte address 0x4 - core index']
  #allocation1 [shape = 'u32[144,128]{1,0:T(1,128)}', space=vmem, size = 0x12000, scoped, tag = 'internal scratch']
  #allocation2 [shape = 'f32[6,12,3]{2,1,0:T(8,128)}', space=vmem, size = 0xc000, scoped, tag = 'scratch operand']
  #allocation3 [shape = 'f32[6,12,64]{2,1,0:T(8,128)}', space=vmem, size = 0xc000, scoped, tag = 'scratch operand']
  #allocation4 [shape = 'f32[6,12,128]{2,1,0:T(8,128)}', space=vmem, size = 0xc000, scoped, tag = 'scratch operand']
  %s0 = inlined_call_operand.vmem [shape: f32[4,8,3], index: 0, kind: input, shape index: {}]
  %s1 = inlined_call_operand.vmem [shape: f32[9,3,64], index: 1, kind: input, shape index: {}]
  %s2 = inlined_call_operand.vmem [shape: f32[1,64], index: 2, kind: input, shape index: {}]
  %s3 = inlined_call_operand.vmem [shape: f32[1,64], index: 3, kind: input, shape index: {}]
  %s4 = inlined_call_operand.vmem [shape: bf16[9,64,64], index: 4, kind: input, shape index: {}]
  %s5 = inlined_call_operand.vmem [shape: f32[1,64], index: 5, kind: input, shape index: {}]
  %s6 = inlined_call_operand.vmem [shape: f32[1,64], index: 6, kind: input, shape index: {}]
  %s7 = inlined_call_operand.vmem [shape: bf16[9,64,128], index: 7, kind: input, shape index: {}]
  %s8 = inlined_call_operand.vmem [shape: f32[1,128], index: 8, kind: input, shape index: {}]
  %s9 = inlined_call_operand.vmem [shape: f32[1,128], index: 9, kind: input, shape index: {}]
  %s10 = inlined_call_operand.vmem [shape: bf16[1152,128], index: 10, kind: input, shape index: {}]
  %s11 = inlined_call_operand.vmem [shape: f32[1,128], index: 11, kind: input, shape index: {}]
  %s12 = inlined_call_operand.vmem [shape: f32[1,128], index: 12, kind: input, shape index: {}]
  %s13 = inlined_call_operand.vmem [shape: f32[16,128,10], index: 13, kind: input, shape index: {}]
  %s14 = inlined_call_operand.vmem [shape: f32[1,10], index: 14, kind: input, shape index: {}]
  %s15 = inlined_call_operand.hbm [shape: f32[2,10], index: 15, kind: output, shape index: {}]
  %s16 = sld [smem:[#allocation0]]
  $region70: #{net_forward_pallas.1} parent=0
    _
  %s18 = ssub.s32 1, %s16
  %s19 = scalar_select 0, %s18, %s16
  $region1: #{net_forward_pallas.1} parent=0
    #allocation5 [shape = 'u8[1024]{0}', space=vmem, size = 0x400, scoped, tag = 'output window, operand 0, single buffered']
    #allocation6 [shape = 's32[1]{0}', space=sflag, size = 0x4, scoped, tag = 'scoped memory for net_forward_pallas.1']
    %20 = vsyncpa [#allocation6], 0
    // Predicated region
    $region2: #{net_forward_pallas.1} parent=1 // pred_check
      _
    $region3: #{net_forward_pallas.1} parent=1 // pred_check_branch
      %22 = sbr.rel (0) target = $region5
    $region4: #{net_forward_pallas.1} parent=1 // pred_region
      _
    $region5: #{net_forward_pallas.1} parent=1 // pred_fallthru
      _
    // Predicated region
    $region6: #{net_forward_pallas.1} parent=1 // pred_check
      _
    $region7: #{net_forward_pallas.1} parent=1 // pred_check_branch
      %24 = sbr.rel (0) target = $region9
    $region8: #{net_forward_pallas.1} parent=1 // pred_region
      _
    $region9: #{net_forward_pallas.1} parent=1 // pred_fallthru
      _
    // Predicated region
    $region10: #{net_forward_pallas.1} parent=1 // pred_check
      _
    $region11: #{net_forward_pallas.1} parent=1 // pred_check_branch
      %26 = sbr.rel (0) target = $region13
    $region12: #{net_forward_pallas.1} parent=1 // pred_region
      _
    $region13: #{net_forward_pallas.1} parent=1 // pred_fallthru
      _
    // Predicated region
    $region14: #{net_forward_pallas.1} parent=1 // pred_check
      _
    $region15: #{net_forward_pallas.1} parent=1 // pred_check_branch
      %28 = sbr.rel (0) target = $region17
    $region16: #{net_forward_pallas.1} parent=1 // pred_region
      _
    $region17: #{net_forward_pallas.1} parent=1 // pred_fallthru
      _
    // Predicated region
    $region18: #{net_forward_pallas.1} parent=1 // pred_check
      _
    $region19: #{net_forward_pallas.1} parent=1 // pred_check_branch
      %30 = sbr.rel (0) target = $region21
    $region20: #{net_forward_pallas.1} parent=1 // pred_region
      _
    $region21: #{net_forward_pallas.1} parent=1 // pred_fallthru
      _
    // Predicated region
    $region22: #{net_forward_pallas.1} parent=1 // pred_check
      _
    $region23: #{net_forward_pallas.1} parent=1 // pred_check_branch
      %32 = sbr.rel (0) target = $region25
    $region24: #{net_forward_pallas.1} parent=1 // pred_region
      _
    $region25: #{net_forward_pallas.1} parent=1 // pred_fallthru
      _
    // Predicated region
    $region26: #{net_forward_pallas.1} parent=1 // pred_check
      _
    $region27: #{net_forward_pallas.1} parent=1 // pred_check_branch
      %34 = sbr.rel (0) target = $region29
    $region28: #{net_forward_pallas.1} parent=1 // pred_region
      _
    $region29: #{net_forward_pallas.1} parent=1 // pred_fallthru
      _
    // Predicated region
    $region30: #{net_forward_pallas.1} parent=1 // pred_check
      _
    $region31: #{net_forward_pallas.1} parent=1 // pred_check_branch
      %36 = sbr.rel (0) target = $region33
    $region32: #{net_forward_pallas.1} parent=1 // pred_region
      _
    $region33: #{net_forward_pallas.1} parent=1 // pred_fallthru
      _
    // Predicated region
    $region34: #{net_forward_pallas.1} parent=1 // pred_check
      _
    $region35: #{net_forward_pallas.1} parent=1 // pred_check_branch
      %38 = sbr.rel (0) target = $region37
    $region36: #{net_forward_pallas.1} parent=1 // pred_region
      _
    $region37: #{net_forward_pallas.1} parent=1 // pred_fallthru
      _
    // Predicated region
    $region38: #{net_forward_pallas.1} parent=1 // pred_check
      _
    $region39: #{net_forward_pallas.1} parent=1 // pred_check_branch
      %40 = sbr.rel (0) target = $region41
    $region40: #{net_forward_pallas.1} parent=1 // pred_region
      _
    $region41: #{net_forward_pallas.1} parent=1 // pred_fallthru
      _
    // Predicated region
    $region42: #{net_forward_pallas.1} parent=1 // pred_check
      _
    $region43: #{net_forward_pallas.1} parent=1 // pred_check_branch
      %42 = sbr.rel (0) target = $region45
    $region44: #{net_forward_pallas.1} parent=1 // pred_region
      _
    $region45: #{net_forward_pallas.1} parent=1 // pred_fallthru
      _
    // Predicated region
    $region46: #{net_forward_pallas.1} parent=1 // pred_check
      _
    $region47: #{net_forward_pallas.1} parent=1 // pred_check_branch
      %44 = sbr.rel (0) target = $region49
    $region48: #{net_forward_pallas.1} parent=1 // pred_region
      _
    $region49: #{net_forward_pallas.1} parent=1 // pred_fallthru
      _
    // Predicated region
    $region50: #{net_forward_pallas.1} parent=1 // pred_check
      _
    $region51: #{net_forward_pallas.1} parent=1 // pred_check_branch
      %46 = sbr.rel (0) target = $region53
    $region52: #{net_forward_pallas.1} parent=1 // pred_region
      _
    $region53: #{net_forward_pallas.1} parent=1 // pred_fallthru
      _
    // Predicated region
    $region54: #{net_forward_pallas.1} parent=1 // pred_check
      _
    $region55: #{net_forward_pallas.1} parent=1 // pred_check_branch
      %48 = sbr.rel (0) target = $region57
    $region56: #{net_forward_pallas.1} parent=1 // pred_region
      _
    $region57: #{net_forward_pallas.1} parent=1 // pred_fallthru
      _
    // Predicated region
    $region58: #{net_forward_pallas.1} parent=1 // pred_check
      _
    $region59: #{net_forward_pallas.1} parent=1 // pred_check_branch
      %50 = sbr.rel (0) target = $region61
    $region60: #{net_forward_pallas.1} parent=1 // pred_region
      _
    $region61: #{net_forward_pallas.1} parent=1 // pred_fallthru
      _
    %vm52 = vcmask 23552
    %53 = vst.msk [vmem:[#allocation2] sm:$0xff] %vm52, 0.0
    %vm54 = vcmask 19456
    %55 = vst.msk [vmem:[#allocation2 + $0x8] sm:$0xf] %vm54, 0.0
    %56 = vst.msk [vmem:[#allocation2 + $0x10] sm:$0xff] %vm52, 0.0
    %57 = vst.msk [vmem:[#allocation2 + $0x18] sm:$0xf] %vm54, 0.0
    %58 = vst.msk [vmem:[#allocation2 + $0x20] sm:$0xff] %vm52, 0.0
    %59 = vst.msk [vmem:[#allocation2 + $0x28] sm:$0xf] %vm54, 0.0
    %60 = vst.msk [vmem:[#allocation2 + $0x30] sm:$0xff] %vm52, 0.0
    %61 = vst.msk [vmem:[#allocation2 + $0x38] sm:$0xf] %vm54, 0.0
    %62 = vst.msk [vmem:[#allocation2 + $0x40] sm:$0xff] %vm52, 0.0
    %63 = vst.msk [vmem:[#allocation2 + $0x48] sm:$0xf] %vm54, 0.0
    %64 = vst.msk [vmem:[#allocation2 + $0x50] sm:$0xff] %vm52, 0.0
    %65 = vst.msk [vmem:[#allocation2 + $0x58] sm:$0xf] %vm54, 0.0
    %vm66 = vcmask 523264
    %67 = vst.msk [vmem:[#allocation3] sm:$0xff] %vm66, 0.0
    %vm68 = vcmask 519168
    %69 = vst.msk [vmem:[#allocation3 + $0x8] sm:$0xf] %vm68, 0.0
    %70 = vst.msk [vmem:[#allocation3 + $0x10] sm:$0xff] %vm66, 0.0
    %71 = vst.msk [vmem:[#allocation3 + $0x18] sm:$0xf] %vm68, 0.0
    %72 = vst.msk [vmem:[#allocation3 + $0x20] sm:$0xff] %vm66, 0.0
    %73 = vst.msk [vmem:[#allocation3 + $0x28] sm:$0xf] %vm68, 0.0
    %74 = vst.msk [vmem:[#allocation3 + $0x30] sm:$0xff] %vm66, 0.0
    %75 = vst.msk [vmem:[#allocation3 + $0x38] sm:$0xf] %vm68, 0.0
    %76 = vst.msk [vmem:[#allocation3 + $0x40] sm:$0xff] %vm66, 0.0
    %77 = vst.msk [vmem:[#allocation3 + $0x48] sm:$0xf] %vm68, 0.0
    %78 = vst.msk [vmem:[#allocation3 + $0x50] sm:$0xff] %vm66, 0.0
    %79 = vst.msk [vmem:[#allocation3 + $0x58] sm:$0xf] %vm68, 0.0
    %80 = vst [vmem:[#allocation4] sm:$0xff] 0.0
    %81 = vst [vmem:[#allocation4 + $0x8] sm:$0xf] 0.0
    %82 = vst [vmem:[#allocation4 + $0x10] sm:$0xff] 0.0
    %83 = vst [vmem:[#allocation4 + $0x18] sm:$0xf] 0.0
    %84 = vst [vmem:[#allocation4 + $0x20] sm:$0xff] 0.0
    %85 = vst [vmem:[#allocation4 + $0x28] sm:$0xf] 0.0
    %86 = vst [vmem:[#allocation4 + $0x30] sm:$0xff] 0.0
    %87 = vst [vmem:[#allocation4 + $0x38] sm:$0xf] 0.0
    %88 = vst [vmem:[#allocation4 + $0x40] sm:$0xff] 0.0
    %89 = vst [vmem:[#allocation4 + $0x48] sm:$0xf] 0.0
    %90 = vst [vmem:[#allocation4 + $0x50] sm:$0xff] 0.0
    %91 = vst [vmem:[#allocation4 + $0x58] sm:$0xf] 0.0
    %v92 = vld [vmem:[%s0] sm:$0xff]
    %v93 = vld [vmem:[%s0 + $0x8] sm:$0xff]
    %v94 = vld [vmem:[%s0 + $0x10] sm:$0xff]
    %v95 = vld [vmem:[%s0 + $0x18] sm:$0xff]
    %s96 = scalar_lea.vmem [#allocation2], 16
    %97 = vst.msk [vmem:[%s96 + $0x2] sm:$0xff] %vm52, %v92
    %98 = vst.msk [vmem:[%s96 + $0x12] sm:$0xff] %vm52, %v93
    %99 = vst.msk [vmem:[%s96 + $0x22] sm:$0xff] %vm52, %v94
    %100 = vst.msk [vmem:[%s96 + $0x32] sm:$0xff] %vm52, %v95
    %v101 = vld [vmem:[#allocation2] sm:$0xff]
    %v102 = vld [vmem:[#allocation2 + $0x8] sm:$0xf]
    %v103 = vld [vmem:[#allocation2 + $0x10] sm:$0xff]
    %v104 = vld [vmem:[#allocation2 + $0x18] sm:$0xf]
    %v105 = vld [vmem:[#allocation2 + $0x20] sm:$0xff]
    %v106 = vld [vmem:[#allocation2 + $0x28] sm:$0xf]
    %v107 = vld [vmem:[#allocation2 + $0x30] sm:$0xff]
    %v108 = vld [vmem:[#allocation2 + $0x38] sm:$0xf]
    %v109 = vld [vmem:[#allocation2 + $0x40] sm:$0xff]
    %v110 = vld [vmem:[#allocation2 + $0x48] sm:$0xf]
    %v111 = vld [vmem:[#allocation2 + $0x50] sm:$0xff]
    %v112 = vld [vmem:[#allocation2 + $0x58] sm:$0xf]
    %vm121 = vcmask 1045504
    %v122 = vrot.slane %v101, 2
    %v123 = vrot.slane %v102, 2
    %v124 = vsel %vm121, %v122, %v123
    %v125 = vrot.slane %v103, 2
    %v126 = vrot.slane %v104, 2
    %v127 = vsel %vm121, %v125, %v126
    %v128 = vrot.slane %v105, 2
    %v129 = vrot.slane %v106, 2
    %v130 = vsel %vm121, %v128, %v129
    %v131 = vrot.slane %v107, 2
    %v132 = vrot.slane %v108, 2
    %v133 = vsel %vm121, %v131, %v132
    %vm134 = vcmask 1043456
    %v135 = vrot.slane %v101, 4
    %v136 = vrot.slane %v102, 4
    %v137 = vsel %vm134, %v135, %v136
    %v138 = vrot.slane %v103, 4
    %v139 = vrot.slane %v104, 4
    %v140 = vsel %vm134, %v138, %v139
    %v141 = vrot.slane %v105, 4
    %v142 = vrot.slane %v106, 4
    %v143 = vsel %vm134, %v141, %v142
    %v144 = vrot.slane %v107, 4
    %v145 = vrot.slane %v108, 4
    %v146 = vsel %vm134, %v144, %v145
    %v149 = vrot.slane %v109, 2
    %v150 = vrot.slane %v110, 2
    %v151 = vsel %vm121, %v149, %v150
    %v152 = vrot.slane %v109, 4
    %v153 = vrot.slane %v110, 4
    %v154 = vsel %vm134, %v152, %v153
    %v157 = vrot.slane %v111, 2
    %v158 = vrot.slane %v112, 2
    %v159 = vsel %vm121, %v157, %v158
    %v160 = vrot.slane %v111, 4
    %v161 = vrot.slane %v112, 4
    %v162 = vsel %vm134, %v160, %v161
    %v163 = vld [vmem:[%s1] sm:$0x7]
    %v164 = vld [vmem:[%s1 + $0x4] sm:$0x7]
    %v165 = vld [vmem:[%s1 + $0x8] sm:$0x7]
    %v166 = vld [vmem:[%s1 + $0xc] sm:$0x7]
    %v167 = vld [vmem:[%s1 + $0x10] sm:$0x7]
    %v168 = vld [vmem:[%s1 + $0x14] sm:$0x7]
    %v169 = vld [vmem:[%s1 + $0x18] sm:$0x7]
    %v170 = vld [vmem:[%s1 + $0x1c] sm:$0x7]
    %v171 = vld [vmem:[%s1 + $0x20] sm:$0x7]
    %v172 = vsel %vm52, %v124, 0
    %v174 = vsel %vm52, %v127, 0
    %v176 = vsel %vm52, %v130, 0
    %v178 = vsel %vm52, %v133, 0
    %vm180 = vcmask 1042432
    %v182 = vsel %vm180, %v164, 0
    %184 = vmatprep.subr.mxu0 0.0
    %185 = vmatpush1.msra.mxu0 %v182
    %186 = vmatprep.subr.mxu0 0.0
    %187 = vmatpush1.msra.mxu0 0.0
    %188 = vmatprep.subr.mxu0 0.0
    %189 = vmatpush1.msra.mxu0 0.0
    %190 = vmatprep.subr.mxu0 0.0
    %191 = vmatpush1.msra.mxu0 0.0
    %192 = vmatprep.subr.mxu0 0.0
    %193 = vmatpush1.msra.mxu0 0.0
    %194 = vmatprep.subr.mxu0 0.0
    %195 = vmatpush1.msra.mxu0 0.0
    %196 = vmatprep.subr.mxu0 0.0
    %197 = vmatpush1.msra.mxu0 0.0
    %198 = vmatprep.subr.mxu0 0.0
    %199 = vmatpush1.msra.mxu0 0.0
    %200 = vmatprep.subr.mxu0 0.0
    %201 = vmatpush1.msra.mxu0 0.0
    %202 = vmatprep.subr.mxu0 0.0
    %203 = vmatpush1.msra.mxu0 0.0
    %204 = vmatprep.subr.mxu0 0.0
    %205 = vmatpush1.msra.mxu0 0.0
    %206 = vmatprep.subr.mxu0 0.0
    %207 = vmatpush1.msra.mxu0 0.0
    %208 = vmatprep.subr.mxu0 0.0
    %209 = vmatpush1.msra.mxu0 0.0
    %210 = vmatprep.subr.mxu0 0.0
    %211 = vmatpush1.msra.mxu0 0.0
    %212 = vmatprep.subr.mxu0 0.0
    %213 = vmatpush1.msra.mxu0 0.0
    %214 = vmatprep.subr.mxu0 0.0
    %215 = vmatpush1.msra.mxu0 0.0
    %216 = vmatprep.subr.mxu0 0.0
    %217 = vmatpush1.msra.mxu0 0.0
    %218 = vmatprep.subr.mxu0 0.0
    %219 = vmatpush1.msra.mxu0 0.0
    %220 = vmatprep.subr.mxu0 0.0
    %221 = vmatpush1.msra.mxu0 0.0
    %222 = vmatprep.subr.mxu0 0.0
    %223 = vmatpush1.msra.mxu0 0.0
    %224 = vmatprep.subr.mxu0 0.0
    %225 = vmatpush1.msra.mxu0 0.0
    %226 = vmatprep.subr.mxu0 0.0
    %227 = vmatpush1.msra.mxu0 0.0
    %228 = vmatprep.subr.mxu0 0.0
    %229 = vmatpush1.msra.mxu0 0.0
    %230 = vmatprep.subr.mxu0 0.0
    %231 = vmatpush1.msra.mxu0 0.0
    %232 = vmatprep.subr.mxu0 0.0
    %233 = vmatpush1.msra.mxu0 0.0
    %234 = vmatprep.subr.mxu0 0.0
    %235 = vmatpush1.msra.mxu0 0.0
    %236 = vmatprep.subr.mxu0 0.0
    %237 = vmatpush1.msra.mxu0 0.0
    %238 = vmatprep.subr.mxu0 0.0
    %239 = vmatpush1.msra.mxu0 0.0
    %240 = vmatprep.subr.mxu0 0.0
    %241 = vmatpush1.msra.mxu0 0.0
    %242 = vmatprep.subr.mxu0 0.0
    %243 = vmatpush1.msra.mxu0 0.0
    %244 = vmatprep.subr.mxu0 0.0
    %245 = vmatpush1.msra.mxu0 0.0
    %246 = vmatprep.subr.mxu0 0.0
    %247 = vmatpush1.msra.mxu0 0.0
    %248 = vmatprep.mubr.f32.mxu0 0.0
    %249 = vmatmul.mubr.f32.gmra.mrb[0].mxu0 %v172
    %v250 = vpop.f32.mrb[0].mxu0
    %v251 = vadd.f32 0.0, %v250
    %v252 = vpop.f32.mrb[0].mxu0
    %253 = vmatprep.mubr.f32.mxu0 0.0
    %254 = vmatmul.mubr.f32.gmra.mrb[0].mxu0 %v174
    %v255 = vpop.f32.mrb[0].mxu0
    %v256 = vadd.f32 0.0, %v255
    %v257 = vpop.f32.mrb[0].mxu0
    %258 = vmatprep.mubr.f32.mxu0 0.0
    %259 = vmatmul.mubr.f32.gmra.mrb[0].mxu0 %v176
    %v260 = vpop.f32.mrb[0].mxu0
    %v261 = vadd.f32 0.0, %v260
    %v262 = vpop.f32.mrb[0].mxu0
    %263 = vmatprep.mubr.f32.mxu0 0.0
    %264 = vmatmul.mubr.f32.gmra.mrb[0].mxu0 %v178
    %v265 = vpop.f32.mrb[0].mxu0
    %v266 = vadd.f32 0.0, %v265
    %v267 = vpop.f32.mrb[0].mxu0
    %268 = vdwg.mxu0
    %v269 = vsel %vm52, %v101, 0
    %v271 = vsel %vm52, %v103, 0
    %v273 = vsel %vm52, %v105, 0
    %v275 = vsel %vm52, %v107, 0
    %v278 = vsel %vm180, %v163, 0
    %280 = vmatprep.subr.mxu0 0.0
    %281 = vmatpush1.msra.mxu0 %v278
    %282 = vmatprep.subr.mxu0 0.0
    %283 = vmatpush1.msra.mxu0 0.0
    %284 = vmatprep.subr.mxu0 0.0
    %285 = vmatpush1.msra.mxu0 0.0
    %286 = vmatprep.subr.mxu0 0.0
    %287 = vmatpush1.msra.mxu0 0.0
    %288 = vmatprep.subr.mxu0 0.0
    %289 = vmatpush1.msra.mxu0 0.0
    %290 = vmatprep.subr.mxu0 0.0
    %291 = vmatpush1.msra.mxu0 0.0
    %292 = vmatprep.subr.mxu0 0.0
    %293 = vmatpush1.msra.mxu0 0.0
    %294 = vmatprep.subr.mxu0 0.0
    %295 = vmatpush1.msra.mxu0 0.0
    %296 = vmatprep.subr.mxu0 0.0
    %297 = vmatpush1.msra.mxu0 0.0
    %298 = vmatprep.subr.mxu0 0.0
    %299 = vmatpush1.msra.mxu0 0.0
    %300 = vmatprep.subr.mxu0 0.0
    %301 = vmatpush1.msra.mxu0 0.0
    %302 = vmatprep.subr.mxu0 0.0
    %303 = vmatpush1.msra.mxu0 0.0
    %304 = vmatprep.subr.mxu0 0.0
    %305 = vmatpush1.msra.mxu0 0.0
    %306 = vmatprep.subr.mxu0 0.0
    %307 = vmatpush1.msra.mxu0 0.0
    %308 = vmatprep.subr.mxu0 0.0
    %309 = vmatpush1.msra.mxu0 0.0
    %310 = vmatprep.subr.mxu0 0.0
    %311 = vmatpush1.msra.mxu0 0.0
    %312 = vmatprep.subr.mxu0 0.0
    %313 = vmatpush1.msra.mxu0 0.0
    %314 = vmatprep.subr.mxu0 0.0
    %315 = vmatpush1.msra.mxu0 0.0
    %316 = vmatprep.subr.mxu0 0.0
    %317 = vmatpush1.msra.mxu0 0.0
    %318 = vmatprep.subr.mxu0 0.0
    %319 = vmatpush1.msra.mxu0 0.0
    %320 = vmatprep.subr.mxu0 0.0
    %321 = vmatpush1.msra.mxu0 0.0
    %322 = vmatprep.subr.mxu0 0.0
    %323 = vmatpush1.msra.mxu0 0.0
    %324 = vmatprep.subr.mxu0 0.0
    %325 = vmatpush1.msra.mxu0 0.0
    %326 = vmatprep.subr.mxu0 0.0
    %327 = vmatpush1.msra.mxu0 0.0
    %328 = vmatprep.subr.mxu0 0.0
    %329 = vmatpush1.msra.mxu0 0.0
    %330 = vmatprep.subr.mxu0 0.0
    %331 = vmatpush1.msra.mxu0 0.0
    %332 = vmatprep.subr.mxu0 0.0
    %333 = vmatpush1.msra.mxu0 0.0
    %334 = vmatprep.subr.mxu0 0.0
    %335 = vmatpush1.msra.mxu0 0.0
    %336 = vmatprep.subr.mxu0 0.0
    %337 = vmatpush1.msra.mxu0 0.0
    %338 = vmatprep.subr.mxu0 0.0
    %339 = vmatpush1.msra.mxu0 0.0
    %340 = vmatprep.subr.mxu0 0.0
    %341 = vmatpush1.msra.mxu0 0.0
    %342 = vmatprep.subr.mxu0 0.0
    %343 = vmatpush1.msra.mxu0 0.0
    %344 = vmatprep.mubr.f32.mxu0 0.0
    %345 = vmatmul.mubr.f32.gmra.mrb[0].mxu0 %v269
    %v346 = vpop.f32.mrb[0].mxu0
    %v347 = vadd.f32 %v251, %v346
    %v348 = vpop.f32.mrb[0].mxu0
    %349 = vmatprep.mubr.f32.mxu0 0.0
    %350 = vmatmul.mubr.f32.gmra.mrb[0].mxu0 %v271
    %v351 = vpop.f32.mrb[0].mxu0
    %v352 = vadd.f32 %v256, %v351
    %v353 = vpop.f32.mrb[0].mxu0
    %354 = vmatprep.mubr.f32.mxu0 0.0
    %355 = vmatmul.mubr.f32.gmra.mrb[0].mxu0 %v273
    %v356 = vpop.f32.mrb[0].mxu0
    %v357 = vadd.f32 %v261, %v356
    %v358 = vpop.f32.mrb[0].mxu0
    %359 = vmatprep.mubr.f32.mxu0 0.0
    %360 = vmatmul.mubr.f32.gmra.mrb[0].mxu0 %v275
    %v361 = vpop.f32.mrb[0].mxu0
    %v362 = vadd.f32 %v266, %v361
    %v363 = vpop.f32.mrb[0].mxu0
    %364 = vdwg.mxu0
    %v365 = vsel %vm52, %v137, 0
    %v367 = vsel %vm52, %v140, 0
    %v369 = vsel %vm52, %v143, 0
    %v371 = vsel %vm52, %v146, 0
    %v374 = vsel %vm180, %v165, 0
    %376 = vmatprep.subr.mxu0 0.0
    %377 = vmatpush1.msra.mxu0 %v374
    %378 = vmatprep.subr.mxu0 0.0
    %379 = vmatpush1.msra.mxu0 0.0
    %380 = vmatprep.subr.mxu0 0.0
    %381 = vmatpush1.msra.mxu0 0.0
    %382 = vmatprep.subr.mxu0 0.0
    %383 = vmatpush1.msra.mxu0 0.0
    %384 = vmatprep.subr.mxu0 0.0
    %385 = vmatpush1.msra.mxu0 0.0
    %386 = vmatprep.subr.mxu0 0.0
    %387 = vmatpush1.msra.mxu0 0.0
    %388 = vmatprep.subr.mxu0 0.0
    %389 = vmatpush1.msra.mxu0 0.0
    %390 = vmatprep.subr.mxu0 0.0
    %391 = vmatpush1.msra.mxu0 0.0
    %392 = vmatprep.subr.mxu0 0.0
    %393 = vmatpush1.msra.mxu0 0.0
    %394 = vmatprep.subr.mxu0 0.0
    %395 = vmatpush1.msra.mxu0 0.0
    %396 = vmatprep.subr.mxu0 0.0
    %397 = vmatpush1.msra.mxu0 0.0
    %398 = vmatprep.subr.mxu0 0.0
    %399 = vmatpush1.msra.mxu0 0.0
    %400 = vmatprep.subr.mxu0 0.0
    %401 = vmatpush1.msra.mxu0 0.0
    %402 = vmatprep.subr.mxu0 0.0
    %403 = vmatpush1.msra.mxu0 0.0
    %404 = vmatprep.subr.mxu0 0.0
    %405 = vmatpush1.msra.mxu0 0.0
    %406 = vmatprep.subr.mxu0 0.0
    %407 = vmatpush1.msra.mxu0 0.0
    %408 = vmatprep.subr.mxu0 0.0
    %409 = vmatpush1.msra.mxu0 0.0
    %410 = vmatprep.subr.mxu0 0.0
    %411 = vmatpush1.msra.mxu0 0.0
    %412 = vmatprep.subr.mxu0 0.0
    %413 = vmatpush1.msra.mxu0 0.0
    %414 = vmatprep.subr.mxu0 0.0
    %415 = vmatpush1.msra.mxu0 0.0
    %416 = vmatprep.subr.mxu0 0.0
    %417 = vmatpush1.msra.mxu0 0.0
    %418 = vmatprep.subr.mxu0 0.0
    %419 = vmatpush1.msra.mxu0 0.0
    %420 = vmatprep.subr.mxu0 0.0
    %421 = vmatpush1.msra.mxu0 0.0
    %422 = vmatprep.subr.mxu0 0.0
    %423 = vmatpush1.msra.mxu0 0.0
    %424 = vmatprep.subr.mxu0 0.0
    %425 = vmatpush1.msra.mxu0 0.0
    %426 = vmatprep.subr.mxu0 0.0
    %427 = vmatpush1.msra.mxu0 0.0
    %428 = vmatprep.subr.mxu0 0.0
    %429 = vmatpush1.msra.mxu0 0.0
    %430 = vmatprep.subr.mxu0 0.0
    %431 = vmatpush1.msra.mxu0 0.0
    %432 = vmatprep.subr.mxu0 0.0
    %433 = vmatpush1.msra.mxu0 0.0
    %434 = vmatprep.subr.mxu0 0.0
    %435 = vmatpush1.msra.mxu0 0.0
    %436 = vmatprep.subr.mxu0 0.0
    %437 = vmatpush1.msra.mxu0 0.0
    %438 = vmatprep.subr.mxu0 0.0
    %439 = vmatpush1.msra.mxu0 0.0
    %440 = vmatprep.mubr.f32.mxu0 0.0
    %441 = vmatmul.mubr.f32.gmra.mrb[0].mxu0 %v365
    %v442 = vpop.f32.mrb[0].mxu0
    %v443 = vadd.f32 0.0, %v442
    %v444 = vpop.f32.mrb[0].mxu0
    %445 = vmatprep.mubr.f32.mxu0 0.0
    %446 = vmatmul.mubr.f32.gmra.mrb[0].mxu0 %v367
    %v447 = vpop.f32.mrb[0].mxu0
    %v448 = vadd.f32 0.0, %v447
    %v449 = vpop.f32.mrb[0].mxu0
    %450 = vmatprep.mubr.f32.mxu0 0.0
    %451 = vmatmul.mubr.f32.gmra.mrb[0].mxu0 %v369
    %v452 = vpop.f32.mrb[0].mxu0
    %v453 = vadd.f32 0.0, %v452
    %v454 = vpop.f32.mrb[0].mxu0
    %455 = vmatprep.mubr.f32.mxu0 0.0
    %456 = vmatmul.mubr.f32.gmra.mrb[0].mxu0 %v371
    %v457 = vpop.f32.mrb[0].mxu0
    %v458 = vadd.f32 0.0, %v457
    %v459 = vpop.f32.mrb[0].mxu0
    %460 = vdwg.mxu0
    %v461 = vadd.f32 %v347, %v443
    %v462 = vadd.f32 %v352, %v448
    %v463 = vadd.f32 %v357, %v453
    %v464 = vadd.f32 %v362, %v458
    %v465 = vsel %vm52, %v109, 0
    %v468 = vsel %vm180, %v166, 0
    %470 = vmatprep.subr.mxu0 0.0
    %471 = vmatpush1.msra.mxu0 %v468
    %472 = vmatprep.subr.mxu0 0.0
    %473 = vmatpush1.msra.mxu0 0.0
    %474 = vmatprep.subr.mxu0 0.0
    %475 = vmatpush1.msra.mxu0 0.0
    %476 = vmatprep.subr.mxu0 0.0
    %477 = vmatpush1.msra.mxu0 0.0
    %478 = vmatprep.subr.mxu0 0.0
    %479 = vmatpush1.msra.mxu0 0.0
    %480 = vmatprep.subr.mxu0 0.0
    %481 = vmatpush1.msra.mxu0 0.0
    %482 = vmatprep.subr.mxu0 0.0
    %483 = vmatpush1.msra.mxu0 0.0
    %484 = vmatprep.subr.mxu0 0.0
    %485 = vmatpush1.msra.mxu0 0.0
    %486 = vmatprep.subr.mxu0 0.0
    %487 = vmatpush1.msra.mxu0 0.0
    %488 = vmatprep.subr.mxu0 0.0
    %489 = vmatpush1.msra.mxu0 0.0
    %490 = vmatprep.subr.mxu0 0.0
    %491 = vmatpush1.msra.mxu0 0.0
    %492 = vmatprep.subr.mxu0 0.0
    %493 = vmatpush1.msra.mxu0 0.0
    %494 = vmatprep.subr.mxu0 0.0
    %495 = vmatpush1.msra.mxu0 0.0
    %496 = vmatprep.subr.mxu0 0.0
    %497 = vmatpush1.msra.mxu0 0.0
    %498 = vmatprep.subr.mxu0 0.0
    %499 = vmatpush1.msra.mxu0 0.0
    %500 = vmatprep.subr.mxu0 0.0
    %501 = vmatpush1.msra.mxu0 0.0
    %502 = vmatprep.subr.mxu0 0.0
    %503 = vmatpush1.msra.mxu0 0.0
    %504 = vmatprep.subr.mxu0 0.0
    %505 = vmatpush1.msra.mxu0 0.0
    %506 = vmatprep.subr.mxu0 0.0
    %507 = vmatpush1.msra.mxu0 0.0
    %508 = vmatprep.subr.mxu0 0.0
    %509 = vmatpush1.msra.mxu0 0.0
    %510 = vmatprep.subr.mxu0 0.0
    %511 = vmatpush1.msra.mxu0 0.0
    %512 = vmatprep.subr.mxu0 0.0
    %513 = vmatpush1.msra.mxu0 0.0
    %514 = vmatprep.subr.mxu0 0.0
    %515 = vmatpush1.msra.mxu0 0.0
    %516 = vmatprep.subr.mxu0 0.0
    %517 = vmatpush1.msra.mxu0 0.0
    %518 = vmatprep.subr.mxu0 0.0
    %519 = vmatpush1.msra.mxu0 0.0
    %520 = vmatprep.subr.mxu0 0.0
    %521 = vmatpush1.msra.mxu0 0.0
    %522 = vmatprep.subr.mxu0 0.0
    %523 = vmatpush1.msra.mxu0 0.0
    %524 = vmatprep.subr.mxu0 0.0
    %525 = vmatpush1.msra.mxu0 0.0
    %526 = vmatprep.subr.mxu0 0.0
    %527 = vmatpush1.msra.mxu0 0.0
    %528 = vmatprep.subr.mxu0 0.0
    %529 = vmatpush1.msra.mxu0 0.0
    %530 = vmatprep.subr.mxu0 0.0
    %531 = vmatpush1.msra.mxu0 0.0
    %532 = vmatprep.subr.mxu0 0.0
    %533 = vmatpush1.msra.mxu0 0.0
    %534 = vmatprep.mubr.f32.mxu0 0.0
    %535 = vmatmul.mubr.f32.gmra.mrb[0].mxu0 %v271
    %v536 = vpop.f32.mrb[0].mxu0
    %v537 = vadd.f32 0.0, %v536
    %v538 = vpop.f32.mrb[0].mxu0
    %539 = vmatprep.mubr.f32.mxu0 0.0
    %540 = vmatmul.mubr.f32.gmra.mrb[0].mxu0 %v273
    %v541 = vpop.f32.mrb[0].mxu0
    %v542 = vadd.f32 0.0, %v541
    %v543 = vpop.f32.mrb[0].mxu0
    %544 = vmatprep.mubr.f32.mxu0 0.0
    %545 = vmatmul.mubr.f32.gmra.mrb[0].mxu0 %v275
    %v546 = vpop.f32.mrb[0].mxu0
    %v547 = vadd.f32 0.0, %v546
    %v548 = vpop.f32.mrb[0].mxu0
    %549 = vmatprep.mubr.f32.mxu0 0.0
    %550 = vmatmul.mubr.f32.gmra.mrb[0].mxu0 %v465
    %v551 = vpop.f32.mrb[0].mxu0
    %v552 = vadd.f32 0.0, %v551
    %v553 = vpop.f32.mrb[0].mxu0
    %554 = vdwg.mxu0
    %v555 = vadd.f32 %v461, %v537
    %v556 = vadd.f32 %v462, %v542
    %v557 = vadd.f32 %v463, %v547
    %v558 = vadd.f32 %v464, %v552
    %v559 = vsel %vm52, %v151, 0
    %v562 = vsel %vm180, %v167, 0
    %564 = vmatprep.subr.mxu0 0.0
    %565 = vmatpush1.msra.mxu0 %v562
    %566 = vmatprep.subr.mxu0 0.0
    %567 = vmatpush1.msra.mxu0 0.0
    %568 = vmatprep.subr.mxu0 0.0
    %569 = vmatpush1.msra.mxu0 0.0
    %570 = vmatprep.subr.mxu0 0.0
    %571 = vmatpush1.msra.mxu0 0.0
    %572 = vmatprep.subr.mxu0 0.0
    %573 = vmatpush1.msra.mxu0 0.0
    %574 = vmatprep.subr.mxu0 0.0
    %575 = vmatpush1.msra.mxu0 0.0
    %576 = vmatprep.subr.mxu0 0.0
    %577 = vmatpush1.msra.mxu0 0.0
    %578 = vmatprep.subr.mxu0 0.0
    %579 = vmatpush1.msra.mxu0 0.0
    %580 = vmatprep.subr.mxu0 0.0
    %581 = vmatpush1.msra.mxu0 0.0
    %582 = vmatprep.subr.mxu0 0.0
    %583 = vmatpush1.msra.mxu0 0.0
    %584 = vmatprep.subr.mxu0 0.0
    %585 = vmatpush1.msra.mxu0 0.0
    %586 = vmatprep.subr.mxu0 0.0
    %587 = vmatpush1.msra.mxu0 0.0
    %588 = vmatprep.subr.mxu0 0.0
    %589 = vmatpush1.msra.mxu0 0.0
    %590 = vmatprep.subr.mxu0 0.0
    %591 = vmatpush1.msra.mxu0 0.0
    %592 = vmatprep.subr.mxu0 0.0
    %593 = vmatpush1.msra.mxu0 0.0
    %594 = vmatprep.subr.mxu0 0.0
    %595 = vmatpush1.msra.mxu0 0.0
    %596 = vmatprep.subr.mxu0 0.0
    %597 = vmatpush1.msra.mxu0 0.0
    %598 = vmatprep.subr.mxu0 0.0
    %599 = vmatpush1.msra.mxu0 0.0
    %600 = vmatprep.subr.mxu0 0.0
    %601 = vmatpush1.msra.mxu0 0.0
    %602 = vmatprep.subr.mxu0 0.0
    %603 = vmatpush1.msra.mxu0 0.0
    %604 = vmatprep.subr.mxu0 0.0
    %605 = vmatpush1.msra.mxu0 0.0
    %606 = vmatprep.subr.mxu0 0.0
    %607 = vmatpush1.msra.mxu0 0.0
    %608 = vmatprep.subr.mxu0 0.0
    %609 = vmatpush1.msra.mxu0 0.0
    %610 = vmatprep.subr.mxu0 0.0
    %611 = vmatpush1.msra.mxu0 0.0
    %612 = vmatprep.subr.mxu0 0.0
    %613 = vmatpush1.msra.mxu0 0.0
    %614 = vmatprep.subr.mxu0 0.0
    %615 = vmatpush1.msra.mxu0 0.0
    %616 = vmatprep.subr.mxu0 0.0
    %617 = vmatpush1.msra.mxu0 0.0
    %618 = vmatprep.subr.mxu0 0.0
    %619 = vmatpush1.msra.mxu0 0.0
    %620 = vmatprep.subr.mxu0 0.0
    %621 = vmatpush1.msra.mxu0 0.0
    %622 = vmatprep.subr.mxu0 0.0
    %623 = vmatpush1.msra.mxu0 0.0
    %624 = vmatprep.subr.mxu0 0.0
    %625 = vmatpush1.msra.mxu0 0.0
    %626 = vmatprep.subr.mxu0 0.0
    %627 = vmatpush1.msra.mxu0 0.0
    %628 = vmatprep.mubr.f32.mxu0 0.0
    %629 = vmatmul.mubr.f32.gmra.mrb[0].mxu0 %v174
    %v630 = vpop.f32.mrb[0].mxu0
    %v631 = vadd.f32 0.0, %v630
    %v632 = vpop.f32.mrb[0].mxu0
    %633 = vmatprep.mubr.f32.mxu0 0.0
    %634 = vmatmul.mubr.f32.gmra.mrb[0].mxu0 %v176
    %v635 = vpop.f32.mrb[0].mxu0
    %v636 = vadd.f32 0.0, %v635
    %v637 = vpop.f32.mrb[0].mxu0
    %638 = vmatprep.mubr.f32.mxu0 0.0
    %639 = vmatmul.mubr.f32.gmra.mrb[0].mxu0 %v178
    %v640 = vpop.f32.mrb[0].mxu0
    %v641 = vadd.f32 0.0, %v640
    %v642 = vpop.f32.mrb[0].mxu0
    %643 = vmatprep.mubr.f32.mxu0 0.0
    %644 = vmatmul.mubr.f32.gmra.mrb[0].mxu0 %v559
    %v645 = vpop.f32.mrb[0].mxu0
    %v646 = vadd.f32 0.0, %v645
    %v647 = vpop.f32.mrb[0].mxu0
    %648 = vdwg.mxu0
    %v649 = vadd.f32 %v555, %v631
    %v650 = vadd.f32 %v556, %v636
    %v651 = vadd.f32 %v557, %v641
    %v652 = vadd.f32 %v558, %v646
    %v653 = vsel %vm52, %v154, 0
    %v656 = vsel %vm180, %v168, 0
    %658 = vmatprep.subr.mxu0 0.0
    %659 = vmatpush1.msra.mxu0 %v656
    %660 = vmatprep.subr.mxu0 0.0
    %661 = vmatpush1.msra.mxu0 0.0
    %662 = vmatprep.subr.mxu0 0.0
    %663 = vmatpush1.msra.mxu0 0.0
    %664 = vmatprep.subr.mxu0 0.0
    %665 = vmatpush1.msra.mxu0 0.0
    %666 = vmatprep.subr.mxu0 0.0
    %667 = vmatpush1.msra.mxu0 0.0
    %668 = vmatprep.subr.mxu0 0.0
    %669 = vmatpush1.msra.mxu0 0.0
    %670 = vmatprep.subr.mxu0 0.0
    %671 = vmatpush1.msra.mxu0 0.0
    %672 = vmatprep.subr.mxu0 0.0
    %673 = vmatpush1.msra.mxu0 0.0
    %674 = vmatprep.subr.mxu0 0.0
    %675 = vmatpush1.msra.mxu0 0.0
    %676 = vmatprep.subr.mxu0 0.0
    %677 = vmatpush1.msra.mxu0 0.0
    %678 = vmatprep.subr.mxu0 0.0
    %679 = vmatpush1.msra.mxu0 0.0
    %680 = vmatprep.subr.mxu0 0.0
    %681 = vmatpush1.msra.mxu0 0.0
    %682 = vmatprep.subr.mxu0 0.0
    %683 = vmatpush1.msra.mxu0 0.0
    %684 = vmatprep.subr.mxu0 0.0
    %685 = vmatpush1.msra.mxu0 0.0
    %686 = vmatprep.subr.mxu0 0.0
    %687 = vmatpush1.msra.mxu0 0.0
    %688 = vmatprep.subr.mxu0 0.0
    %689 = vmatpush1.msra.mxu0 0.0
    %690 = vmatprep.subr.mxu0 0.0
    %691 = vmatpush1.msra.mxu0 0.0
    %692 = vmatprep.subr.mxu0 0.0
    %693 = vmatpush1.msra.mxu0 0.0
    %694 = vmatprep.subr.mxu0 0.0
    %695 = vmatpush1.msra.mxu0 0.0
    %696 = vmatprep.subr.mxu0 0.0
    %697 = vmatpush1.msra.mxu0 0.0
    %698 = vmatprep.subr.mxu0 0.0
    %699 = vmatpush1.msra.mxu0 0.0
    %700 = vmatprep.subr.mxu0 0.0
    %701 = vmatpush1.msra.mxu0 0.0
    %702 = vmatprep.subr.mxu0 0.0
    %703 = vmatpush1.msra.mxu0 0.0
    %704 = vmatprep.subr.mxu0 0.0
    %705 = vmatpush1.msra.mxu0 0.0
    %706 = vmatprep.subr.mxu0 0.0
    %707 = vmatpush1.msra.mxu0 0.0
    %708 = vmatprep.subr.mxu0 0.0
    %709 = vmatpush1.msra.mxu0 0.0
    %710 = vmatprep.subr.mxu0 0.0
    %711 = vmatpush1.msra.mxu0 0.0
    %712 = vmatprep.subr.mxu0 0.0
    %713 = vmatpush1.msra.mxu0 0.0
    %714 = vmatprep.subr.mxu0 0.0
    %715 = vmatpush1.msra.mxu0 0.0
    %716 = vmatprep.subr.mxu0 0.0
    %717 = vmatpush1.msra.mxu0 0.0
    %718 = vmatprep.subr.mxu0 0.0
    %719 = vmatpush1.msra.mxu0 0.0
    %720 = vmatprep.subr.mxu0 0.0
    %721 = vmatpush1.msra.mxu0 0.0
    %722 = vmatprep.mubr.f32.mxu0 0.0
    %723 = vmatmul.mubr.f32.gmra.mrb[0].mxu0 %v367
    %v724 = vpop.f32.mrb[0].mxu0
    %v725 = vadd.f32 0.0, %v724
    %v726 = vpop.f32.mrb[0].mxu0
    %727 = vmatprep.mubr.f32.mxu0 0.0
    %728 = vmatmul.mubr.f32.gmra.mrb[0].mxu0 %v369
    %v729 = vpop.f32.mrb[0].mxu0
    %v730 = vadd.f32 0.0, %v729
    %v731 = vpop.f32.mrb[0].mxu0
    %732 = vmatprep.mubr.f32.mxu0 0.0
    %733 = vmatmul.mubr.f32.gmra.mrb[0].mxu0 %v371
    %v734 = vpop.f32.mrb[0].mxu0
    %v735 = vadd.f32 0.0, %v734
    %v736 = vpop.f32.mrb[0].mxu0
    %737 = vmatprep.mubr.f32.mxu0 0.0
    %738 = vmatmul.mubr.f32.gmra.mrb[0].mxu0 %v653
    %v739 = vpop.f32.mrb[0].mxu0
    %v740 = vadd.f32 0.0, %v739
    %v741 = vpop.f32.mrb[0].mxu0
    %742 = vdwg.mxu0
    %v743 = vadd.f32 %v649, %v725
    %v744 = vadd.f32 %v650, %v730
    %v745 = vadd.f32 %v651, %v735
    %v746 = vadd.f32 %v652, %v740
    %v747 = vsel %vm52, %v111, 0
    %v750 = vsel %vm180, %v169, 0
    %752 = vmatprep.subr.mxu0 0.0
    %753 = vmatpush1.msra.mxu0 %v750
    %754 = vmatprep.subr.mxu0 0.0
    %755 = vmatpush1.msra.mxu0 0.0
    %756 = vmatprep.subr.mxu0 0.0
    %757 = vmatpush1.msra.mxu0 0.0
    %758 = vmatprep.subr.mxu0 0.0
    %759 = vmatpush1.msra.mxu0 0.0
    %760 = vmatprep.subr.mxu0 0.0
    %761 = vmatpush1.msra.mxu0 0.0
    %762 = vmatprep.subr.mxu0 0.0
    %763 = vmatpush1.msra.mxu0 0.0
    %764 = vmatprep.subr.mxu0 0.0
    %765 = vmatpush1.msra.mxu0 0.0
    %766 = vmatprep.subr.mxu0 0.0
    %767 = vmatpush1.msra.mxu0 0.0
    %768 = vmatprep.subr.mxu0 0.0
    %769 = vmatpush1.msra.mxu0 0.0
    %770 = vmatprep.subr.mxu0 0.0
    %771 = vmatpush1.msra.mxu0 0.0
    %772 = vmatprep.subr.mxu0 0.0
    %773 = vmatpush1.msra.mxu0 0.0
    %774 = vmatprep.subr.mxu0 0.0
    %775 = vmatpush1.msra.mxu0 0.0
    %776 = vmatprep.subr.mxu0 0.0
    %777 = vmatpush1.msra.mxu0 0.0
    %778 = vmatprep.subr.mxu0 0.0
    %779 = vmatpush1.msra.mxu0 0.0
    %780 = vmatprep.subr.mxu0 0.0
    %781 = vmatpush1.msra.mxu0 0.0
    %782 = vmatprep.subr.mxu0 0.0
    %783 = vmatpush1.msra.mxu0 0.0
    %784 = vmatprep.subr.mxu0 0.0
    %785 = vmatpush1.msra.mxu0 0.0
    %786 = vmatprep.subr.mxu0 0.0
    %787 = vmatpush1.msra.mxu0 0.0
    %788 = vmatprep.subr.mxu0 0.0
    %789 = vmatpush1.msra.mxu0 0.0
    %790 = vmatprep.subr.mxu0 0.0
    %791 = vmatpush1.msra.mxu0 0.0
    %792 = vmatprep.subr.mxu0 0.0
    %793 = vmatpush1.msra.mxu0 0.0
    %794 = vmatprep.subr.mxu0 0.0
    %795 = vmatpush1.msra.mxu0 0.0
    %796 = vmatprep.subr.mxu0 0.0
    %797 = vmatpush1.msra.mxu0 0.0
    %798 = vmatprep.subr.mxu0 0.0
    %799 = vmatpush1.msra.mxu0 0.0
    %800 = vmatprep.subr.mxu0 0.0
    %801 = vmatpush1.msra.mxu0 0.0
    %802 = vmatprep.subr.mxu0 0.0
    %803 = vmatpush1.msra.mxu0 0.0
    %804 = vmatprep.subr.mxu0 0.0
    %805 = vmatpush1.msra.mxu0 0.0
    %806 = vmatprep.subr.mxu0 0.0
    %807 = vmatpush1.msra.mxu0 0.0
    %808 = vmatprep.subr.mxu0 0.0
    %809 = vmatpush1.msra.mxu0 0.0
    %810 = vmatprep.subr.mxu0 0.0
    %811 = vmatpush1.msra.mxu0 0.0
    %812 = vmatprep.subr.mxu0 0.0
    %813 = vmatpush1.msra.mxu0 0.0
    %814 = vmatprep.subr.mxu0 0.0
    %815 = vmatpush1.msra.mxu0 0.0
    %816 = vmatprep.mubr.f32.mxu0 0.0
    %817 = vmatmul.mubr.f32.gmra.mrb[0].mxu0 %v273
    %v818 = vpop.f32.mrb[0].mxu0
    %v819 = vadd.f32 0.0, %v818
    %v820 = vpop.f32.mrb[0].mxu0
    %821 = vmatprep.mubr.f32.mxu0 0.0
    %822 = vmatmul.mubr.f32.gmra.mrb[0].mxu0 %v275
    %v823 = vpop.f32.mrb[0].mxu0
    %v824 = vadd.f32 0.0, %v823
    %v825 = vpop.f32.mrb[0].mxu0
    %826 = vmatprep.mubr.f32.mxu0 0.0
    %827 = vmatmul.mubr.f32.gmra.mrb[0].mxu0 %v465
    %v828 = vpop.f32.mrb[0].mxu0
    %v829 = vadd.f32 0.0, %v828
    %v830 = vpop.f32.mrb[0].mxu0
    %831 = vmatprep.mubr.f32.mxu0 0.0
    %832 = vmatmul.mubr.f32.gmra.mrb[0].mxu0 %v747
    %v833 = vpop.f32.mrb[0].mxu0
    %v834 = vadd.f32 0.0, %v833
    %v835 = vpop.f32.mrb[0].mxu0
    %836 = vdwg.mxu0
    %v837 = vadd.f32 %v743, %v819
    %v838 = vadd.f32 %v744, %v824
    %v839 = vadd.f32 %v745, %v829
    %v840 = vadd.f32 %v746, %v834
    %v841 = vsel %vm52, %v159, 0
    %v844 = vsel %vm180, %v170, 0
    %846 = vmatprep.subr.mxu0 0.0
    %847 = vmatpush1.msra.mxu0 %v844
    %848 = vmatprep.subr.mxu0 0.0
    %849 = vmatpush1.msra.mxu0 0.0
    %850 = vmatprep.subr.mxu0 0.0
    %851 = vmatpush1.msra.mxu0 0.0
    %852 = vmatprep.subr.mxu0 0.0
    %853 = vmatpush1.msra.mxu0 0.0
    %854 = vmatprep.subr.mxu0 0.0
    %855 = vmatpush1.msra.mxu0 0.0
    %856 = vmatprep.subr.mxu0 0.0
    %857 = vmatpush1.msra.mxu0 0.0
    %858 = vmatprep.subr.mxu0 0.0
    %859 = vmatpush1.msra.mxu0 0.0
    %860 = vmatprep.subr.mxu0 0.0
    %861 = vmatpush1.msra.mxu0 0.0
    %862 = vmatprep.subr.mxu0 0.0
    %863 = vmatpush1.msra.mxu0 0.0
    %864 = vmatprep.subr.mxu0 0.0
    %865 = vmatpush1.msra.mxu0 0.0
    %866 = vmatprep.subr.mxu0 0.0
    %867 = vmatpush1.msra.mxu0 0.0
    %868 = vmatprep.subr.mxu0 0.0
    %869 = vmatpush1.msra.mxu0 0.0
    %870 = vmatprep.subr.mxu0 0.0
    %871 = vmatpush1.msra.mxu0 0.0
    %872 = vmatprep.subr.mxu0 0.0
    %873 = vmatpush1.msra.mxu0 0.0
    %874 = vmatprep.subr.mxu0 0.0
    %875 = vmatpush1.msra.mxu0 0.0
    %876 = vmatprep.subr.mxu0 0.0
    %877 = vmatpush1.msra.mxu0 0.0
    %878 = vmatprep.subr.mxu0 0.0
    %879 = vmatpush1.msra.mxu0 0.0
    %880 = vmatprep.subr.mxu0 0.0
    %881 = vmatpush1.msra.mxu0 0.0
    %882 = vmatprep.subr.mxu0 0.0
    %883 = vmatpush1.msra.mxu0 0.0
    %884 = vmatprep.subr.mxu0 0.0
    %885 = vmatpush1.msra.mxu0 0.0
    %886 = vmatprep.subr.mxu0 0.0
    %887 = vmatpush1.msra.mxu0 0.0
    %888 = vmatprep.subr.mxu0 0.0
    %889 = vmatpush1.msra.mxu0 0.0
    %890 = vmatprep.subr.mxu0 0.0
    %891 = vmatpush1.msra.mxu0 0.0
    %892 = vmatprep.subr.mxu0 0.0
    %893 = vmatpush1.msra.mxu0 0.0
    %894 = vmatprep.subr.mxu0 0.0
    %895 = vmatpush1.msra.mxu0 0.0
    %896 = vmatprep.subr.mxu0 0.0
    %897 = vmatpush1.msra.mxu0 0.0
    %898 = vmatprep.subr.mxu0 0.0
    %899 = vmatpush1.msra.mxu0 0.0
    %900 = vmatprep.subr.mxu0 0.0
    %901 = vmatpush1.msra.mxu0 0.0
    %902 = vmatprep.subr.mxu0 0.0
    %903 = vmatpush1.msra.mxu0 0.0
    %904 = vmatprep.subr.mxu0 0.0
    %905 = vmatpush1.msra.mxu0 0.0
    %906 = vmatprep.subr.mxu0 0.0
    %907 = vmatpush1.msra.mxu0 0.0
    %908 = vmatprep.subr.mxu0 0.0
    %909 = vmatpush1.msra.mxu0 0.0
    %910 = vmatprep.mubr.f32.mxu0 0.0
    %911 = vmatmul.mubr.f32.gmra.mrb[0].mxu0 %v176
    %v912 = vpop.f32.mrb[0].mxu0
    %v913 = vadd.f32 0.0, %v912
    %v914 = vpop.f32.mrb[0].mxu0
    %915 = vmatprep.mubr.f32.mxu0 0.0
    %916 = vmatmul.mubr.f32.gmra.mrb[0].mxu0 %v178
    %v917 = vpop.f32.mrb[0].mxu0
    %v918 = vadd.f32 0.0, %v917
    %v919 = vpop.f32.mrb[0].mxu0
    %920 = vmatprep.mubr.f32.mxu0 0.0
    %921 = vmatmul.mubr.f32.gmra.mrb[0].mxu0 %v559
    %v922 = vpop.f32.mrb[0].mxu0
    %v923 = vadd.f32 0.0, %v922
    %v924 = vpop.f32.mrb[0].mxu0
    %925 = vmatprep.mubr.f32.mxu0 0.0
    %926 = vmatmul.mubr.f32.gmra.mrb[0].mxu0 %v841
    %v927 = vpop.f32.mrb[0].mxu0
    %v928 = vadd.f32 0.0, %v927
    %v929 = vpop.f32.mrb[0].mxu0
    %930 = vdwg.mxu0
    %v931 = vadd.f32 %v837, %v913
    %v932 = vadd.f32 %v838, %v918
    %v933 = vadd.f32 %v839, %v923
    %v934 = vadd.f32 %v840, %v928
    %v935 = vsel %vm52, %v162, 0
    %v938 = vsel %vm180, %v171, 0
    %940 = vmatprep.subr.mxu0 0.0
    %941 = vmatpush1.msra.mxu0 %v938
    %942 = vmatprep.subr.mxu0 0.0
    %943 = vmatpush1.msra.mxu0 0.0
    %944 = vmatprep.subr.mxu0 0.0
    %945 = vmatpush1.msra.mxu0 0.0
    %946 = vmatprep.subr.mxu0 0.0
    %947 = vmatpush1.msra.mxu0 0.0
    %948 = vmatprep.subr.mxu0 0.0
    %949 = vmatpush1.msra.mxu0 0.0
    %950 = vmatprep.subr.mxu0 0.0
    %951 = vmatpush1.msra.mxu0 0.0
    %952 = vmatprep.subr.mxu0 0.0
    %953 = vmatpush1.msra.mxu0 0.0
    %954 = vmatprep.subr.mxu0 0.0
    %955 = vmatpush1.msra.mxu0 0.0
    %956 = vmatprep.subr.mxu0 0.0
    %957 = vmatpush1.msra.mxu0 0.0
    %958 = vmatprep.subr.mxu0 0.0
    %959 = vmatpush1.msra.mxu0 0.0
    %960 = vmatprep.subr.mxu0 0.0
    %961 = vmatpush1.msra.mxu0 0.0
    %962 = vmatprep.subr.mxu0 0.0
    %963 = vmatpush1.msra.mxu0 0.0
    %964 = vmatprep.subr.mxu0 0.0
    %965 = vmatpush1.msra.mxu0 0.0
    %966 = vmatprep.subr.mxu0 0.0
    %967 = vmatpush1.msra.mxu0 0.0
    %968 = vmatprep.subr.mxu0 0.0
    %969 = vmatpush1.msra.mxu0 0.0
    %970 = vmatprep.subr.mxu0 0.0
    %971 = vmatpush1.msra.mxu0 0.0
    %972 = vmatprep.subr.mxu0 0.0
    %973 = vmatpush1.msra.mxu0 0.0
    %974 = vmatprep.subr.mxu0 0.0
    %975 = vmatpush1.msra.mxu0 0.0
    %976 = vmatprep.subr.mxu0 0.0
    %977 = vmatpush1.msra.mxu0 0.0
    %978 = vmatprep.subr.mxu0 0.0
    %979 = vmatpush1.msra.mxu0 0.0
    %980 = vmatprep.subr.mxu0 0.0
    %981 = vmatpush1.msra.mxu0 0.0
    %982 = vmatprep.subr.mxu0 0.0
    %983 = vmatpush1.msra.mxu0 0.0
    %984 = vmatprep.subr.mxu0 0.0
    %985 = vmatpush1.msra.mxu0 0.0
    %986 = vmatprep.subr.mxu0 0.0
    %987 = vmatpush1.msra.mxu0 0.0
    %988 = vmatprep.subr.mxu0 0.0
    %989 = vmatpush1.msra.mxu0 0.0
    %990 = vmatprep.subr.mxu0 0.0
    %991 = vmatpush1.msra.mxu0 0.0
    %992 = vmatprep.subr.mxu0 0.0
    %993 = vmatpush1.msra.mxu0 0.0
    %994 = vmatprep.subr.mxu0 0.0
    %995 = vmatpush1.msra.mxu0 0.0
    %996 = vmatprep.subr.mxu0 0.0
    %997 = vmatpush1.msra.mxu0 0.0
    %998 = vmatprep.subr.mxu0 0.0
    %999 = vmatpush1.msra.mxu0 0.0
    %1000 = vmatprep.subr.mxu0 0.0
    %1001 = vmatpush1.msra.mxu0 0.0
    %1002 = vmatprep.subr.mxu0 0.0
    %1003 = vmatpush1.msra.mxu0 0.0
    %1004 = vmatprep.mubr.f32.mxu0 0.0
    %1005 = vmatmul.mubr.f32.gmra.mrb[0].mxu0 %v369
    %v1006 = vpop.f32.mrb[0].mxu0
    %v1007 = vadd.f32 0.0, %v1006
    %v1008 = vpop.f32.mrb[0].mxu0
    %1009 = vmatprep.mubr.f32.mxu0 0.0
    %1010 = vmatmul.mubr.f32.gmra.mrb[0].mxu0 %v371
    %v1011 = vpop.f32.mrb[0].mxu0
    %v1012 = vadd.f32 0.0, %v1011
    %v1013 = vpop.f32.mrb[0].mxu0
    %1014 = vmatprep.mubr.f32.mxu0 0.0
    %1015 = vmatmul.mubr.f32.gmra.mrb[0].mxu0 %v653
    %v1016 = vpop.f32.mrb[0].mxu0
    %v1017 = vadd.f32 0.0, %v1016
    %v1018 = vpop.f32.mrb[0].mxu0
    %1019 = vmatprep.mubr.f32.mxu0 0.0
    %1020 = vmatmul.mubr.f32.gmra.mrb[0].mxu0 %v935
    %v1021 = vpop.f32.mrb[0].mxu0
    %v1022 = vadd.f32 0.0, %v1021
    %v1023 = vpop.f32.mrb[0].mxu0
    %1024 = vdwg.mxu0
    %v1025 = vadd.f32 %v931, %v1007
    %v1026 = vadd.f32 %v932, %v1012
    %v1027 = vadd.f32 %v933, %v1017
    %v1028 = vadd.f32 %v934, %v1022
    %v1029 = vld [vmem:[%s2] sm:$0x1]
    %v1031 = vlaneseq
    %v1032 = vshrl.u32 %v1031, 7
    %v1033 = vsub.s32 0, %v1032
    %v1034 = vrot.slane %v1029, %v1033
    %v1036 = vmul.f32 %v1025, %v1034
    %v1037 = vmul.f32 %v1026, %v1034
    %v1038 = vmul.f32 %v1027, %v1034
    %v1039 = vmul.f32 %v1028, %v1034
    %v1040 = vld [vmem:[%s3] sm:$0x1]
    %v1042 = vlaneseq
    %v1043 = vshrl.u32 %v1042, 7
    %v1044 = vsub.s32 0, %v1043
    %v1045 = vrot.slane %v1040, %v1044
    %v1047 = vadd.f32 %v1036, %v1045
    %v1048 = vadd.f32 %v1037, %v1045
    %v1049 = vadd.f32 %v1038, %v1045
    %v1050 = vadd.f32 %v1039, %v1045
    %v1051 = vmax.f32 %v1047, 0.0
    %v1052 = vmax.f32 %v1048, 0.0
    %v1053 = vmax.f32 %v1049, 0.0
    %v1054 = vmax.f32 %v1050, 0.0
    %s1055 = scalar_lea.vmem [#allocation3], 16
    %1056 = vst.msk [vmem:[%s1055 + $0x2] sm:$0xff] %vm66, %v1051
    %1057 = vst.msk [vmem:[%s1055 + $0x12] sm:$0xff] %vm66, %v1052
    %1058 = vst.msk [vmem:[%s1055 + $0x22] sm:$0xff] %vm66, %v1053
    %1059 = vst.msk [vmem:[%s1055 + $0x32] sm:$0xff] %vm66, %v1054
    %v1060 = vld [vmem:[#allocation3] sm:$0xff]
    %v1061 = vld [vmem:[#allocation3 + $0x8] sm:$0xf]
    %v1062 = vld [vmem:[#allocation3 + $0x10] sm:$0xff]
    %v1063 = vld [vmem:[#allocation3 + $0x18] sm:$0xf]
    %v1064 = vld [vmem:[#allocation3 + $0x20] sm:$0xff]
    %v1065 = vld [vmem:[#allocation3 + $0x28] sm:$0xf]
    %v1066 = vld [vmem:[#allocation3 + $0x30] sm:$0xff]
    %v1067 = vld [vmem:[#allocation3 + $0x38] sm:$0xf]
    %v1068 = vld [vmem:[#allocation3 + $0x40] sm:$0xff]
    %v1069 = vld [vmem:[#allocation3 + $0x48] sm:$0xf]
    %v1070 = vld [vmem:[#allocation3 + $0x50] sm:$0xff]
    %v1071 = vld [vmem:[#allocation3 + $0x58] sm:$0xf]
    %v1072 = vpack.c.bf16 %v1061, %v1060
    %v1073 = vpack.c.bf16 %v1063, %v1062
    %v1074 = vpack.c.bf16 %v1065, %v1064
    %v1075 = vpack.c.bf16 %v1067, %v1066
    %v1076 = vpack.c.bf16 %v1069, %v1068
    %v1077 = vpack.c.bf16 %v1071, %v1070
    %v1082 = vunpack.c.l.b16 %v1072
    %v1083 = vunpack.c.h.b16 %v1072
    %v1084 = vunpack.c.l.b16 %v1073
    %v1085 = vunpack.c.h.b16 %v1073
    %v1086 = vunpack.c.l.b16 %v1074
    %v1087 = vunpack.c.h.b16 %v1074
    %v1088 = vunpack.c.l.b16 %v1075
    %v1089 = vunpack.c.h.b16 %v1075
    %v1090 = vpack.c.b16 %v1082, %v1082
    %v1091 = vpack.c.b16 %v1083, %v1083
    %v1092 = vpack.c.b16 %v1084, %v1084
    %v1093 = vpack.c.b16 %v1085, %v1085
    %v1094 = vpack.c.b16 %v1086, %v1086
    %v1095 = vpack.c.b16 %v1087, %v1087
    %v1096 = vpack.c.b16 %v1088, %v1088
    %v1097 = vpack.c.b16 %v1089, %v1089
    %vm1098 = vcmask 1042432
    %vm1099 = vcmask 1046532
    %vm1100 = vmor %vm1098, %vm1099
    %v1101 = vrot.slane %v1090, 5
    %v1102 = vrot.slane %v1101, 4
    %v1103 = vrot.slane %v1091, 5
    %v1104 = vsel %vm1100, %v1102, %v1103
    %v1105 = vrot.slane %v1092, 5
    %v1106 = vrot.slane %v1105, 4
    %v1107 = vrot.slane %v1093, 5
    %v1108 = vsel %vm1100, %v1106, %v1107
    %v1109 = vrot.slane %v1094, 5
    %v1110 = vrot.slane %v1109, 4
    %v1111 = vrot.slane %v1095, 5
    %v1112 = vsel %vm1100, %v1110, %v1111
    %v1113 = vrot.slane %v1096, 5
    %v1114 = vrot.slane %v1113, 4
    %v1115 = vrot.slane %v1097, 5
    %v1116 = vsel %vm1100, %v1114, %v1115
    %vm1117 = vcmask 1041408
    %vm1118 = vcmask 1045508
    %vm1119 = vmor %vm1117, %vm1118
    %v1120 = vrot.slane %v1090, 6
    %v1121 = vrot.slane %v1120, 4
    %v1122 = vrot.slane %v1091, 6
    %v1123 = vsel %vm1119, %v1121, %v1122
    %v1124 = vrot.slane %v1092, 6
    %v1125 = vrot.slane %v1124, 4
    %v1126 = vrot.slane %v1093, 6
    %v1127 = vsel %vm1119, %v1125, %v1126
    %v1128 = vrot.slane %v1094, 6
    %v1129 = vrot.slane %v1128, 4
    %v1130 = vrot.slane %v1095, 6
    %v1131 = vsel %vm1119, %v1129, %v1130
    %v1132 = vrot.slane %v1096, 6
    %v1133 = vrot.slane %v1132, 4
    %v1134 = vrot.slane %v1097, 6
    %v1135 = vsel %vm1119, %v1133, %v1134
    %v1137 = vunpack.c.l.b16 %v1076
    %v1138 = vunpack.c.h.b16 %v1076
    %v1139 = vpack.c.b16 %v1137, %v1137
    %v1140 = vpack.c.b16 %v1138, %v1138
    %v1141 = vrot.slane %v1139, 5
    %v1142 = vrot.slane %v1141, 4
    %v1143 = vrot.slane %v1140, 5
    %v1144 = vsel %vm1100, %v1142, %v1143
    %v1145 = vrot.slane %v1139, 6
    %v1146 = vrot.slane %v1145, 4
    %v1147 = vrot.slane %v1140, 6
    %v1148 = vsel %vm1119, %v1146, %v1147
    %v1150 = vunpack.c.l.b16 %v1077
    %v1151 = vunpack.c.h.b16 %v1077
    %v1152 = vpack.c.b16 %v1150, %v1150
    %v1153 = vpack.c.b16 %v1151, %v1151
    %v1154 = vrot.slane %v1152, 5
    %v1155 = vrot.slane %v1154, 4
    %v1156 = vrot.slane %v1153, 5
    %v1157 = vsel %vm1100, %v1155, %v1156
    %v1158 = vrot.slane %v1152, 6
    %v1159 = vrot.slane %v1158, 4
    %v1160 = vrot.slane %v1153, 6
    %v1161 = vsel %vm1119, %v1159, %v1160
    %v1162 = vld [vmem:[%s4] sm:$0xf]
    %v1163 = vld [vmem:[%s4 + $0x4] sm:$0xf]
    %v1164 = vld [vmem:[%s4 + $0x8] sm:$0xf]
    %v1165 = vld [vmem:[%s4 + $0xc] sm:$0xf]
    %v1166 = vld [vmem:[%s4 + $0x10] sm:$0xf]
    %v1167 = vld [vmem:[%s4 + $0x14] sm:$0xf]
    %v1168 = vld [vmem:[%s4 + $0x18] sm:$0xf]
    %v1169 = vld [vmem:[%s4 + $0x1c] sm:$0xf]
    %v1170 = vld [vmem:[%s4 + $0x20] sm:$0xf]
    %v1171 = vld [vmem:[%s4 + $0x24] sm:$0xf]
    %v1172 = vld [vmem:[%s4 + $0x28] sm:$0xf]
    %v1173 = vld [vmem:[%s4 + $0x2c] sm:$0xf]
    %v1174 = vld [vmem:[%s4 + $0x30] sm:$0xf]
    %v1175 = vld [vmem:[%s4 + $0x34] sm:$0xf]
    %v1176 = vld [vmem:[%s4 + $0x38] sm:$0xf]
    %v1177 = vld [vmem:[%s4 + $0x3c] sm:$0xf]
    %v1178 = vld [vmem:[%s4 + $0x40] sm:$0xf]
    %v1179 = vld [vmem:[%s4 + $0x44] sm:$0xf]
    %v1180 = vld [vmem:[%s4 + $0x48] sm:$0xf]
    %v1181 = vld [vmem:[%s4 + $0x4c] sm:$0xf]
    %v1182 = vld [vmem:[%s4 + $0x50] sm:$0xf]
    %v1183 = vld [vmem:[%s4 + $0x54] sm:$0xf]
    %v1184 = vld [vmem:[%s4 + $0x58] sm:$0xf]
    %v1185 = vld [vmem:[%s4 + $0x5c] sm:$0xf]
    %v1186 = vld [vmem:[%s4 + $0x60] sm:$0xf]
    %v1187 = vld [vmem:[%s4 + $0x64] sm:$0xf]
    %v1188 = vld [vmem:[%s4 + $0x68] sm:$0xf]
    %v1189 = vld [vmem:[%s4 + $0x6c] sm:$0xf]
    %v1190 = vld [vmem:[%s4 + $0x70] sm:$0xf]
    %v1191 = vld [vmem:[%s4 + $0x74] sm:$0xf]
    %v1192 = vld [vmem:[%s4 + $0x78] sm:$0xf]
    %v1193 = vld [vmem:[%s4 + $0x7c] sm:$0xf]
    %v1194 = vld [vmem:[%s4 + $0x80] sm:$0xf]
    %v1195 = vld [vmem:[%s4 + $0x84] sm:$0xf]
    %v1196 = vld [vmem:[%s4 + $0x88] sm:$0xf]
    %v1197 = vld [vmem:[%s4 + $0x8c] sm:$0xf]
    %v1198 = vld [vmem:[%s4 + $0x90] sm:$0xf]
    %v1199 = vld [vmem:[%s4 + $0x94] sm:$0xf]
    %v1200 = vld [vmem:[%s4 + $0x98] sm:$0xf]
    %v1201 = vld [vmem:[%s4 + $0x9c] sm:$0xf]
    %v1202 = vld [vmem:[%s4 + $0xa0] sm:$0xf]
    %v1203 = vld [vmem:[%s4 + $0xa4] sm:$0xf]
    %v1204 = vld [vmem:[%s4 + $0xa8] sm:$0xf]
    %v1205 = vld [vmem:[%s4 + $0xac] sm:$0xf]
    %v1206 = vld [vmem:[%s4 + $0xb0] sm:$0xf]
    %v1207 = vld [vmem:[%s4 + $0xb4] sm:$0xf]
    %v1208 = vld [vmem:[%s4 + $0xb8] sm:$0xf]
    %v1209 = vld [vmem:[%s4 + $0xbc] sm:$0xf]
    %v1210 = vld [vmem:[%s4 + $0xc0] sm:$0xf]
    %v1211 = vld [vmem:[%s4 + $0xc4] sm:$0xf]
    %v1212 = vld [vmem:[%s4 + $0xc8] sm:$0xf]
    %v1213 = vld [vmem:[%s4 + $0xcc] sm:$0xf]
    %v1214 = vld [vmem:[%s4 + $0xd0] sm:$0xf]
    %v1215 = vld [vmem:[%s4 + $0xd4] sm:$0xf]
    %v1216 = vld [vmem:[%s4 + $0xd8] sm:$0xf]
    %v1217 = vld [vmem:[%s4 + $0xdc] sm:$0xf]
    %v1218 = vld [vmem:[%s4 + $0xe0] sm:$0xf]
    %v1219 = vld [vmem:[%s4 + $0xe4] sm:$0xf]
    %v1220 = vld [vmem:[%s4 + $0xe8] sm:$0xf]
    %v1221 = vld [vmem:[%s4 + $0xec] sm:$0xf]
    %v1222 = vld [vmem:[%s4 + $0xf0] sm:$0xf]
    %v1223 = vld [vmem:[%s4 + $0xf4] sm:$0xf]
    %v1224 = vld [vmem:[%s4 + $0xf8] sm:$0xf]
    %v1225 = vld [vmem:[%s4 + $0xfc] sm:$0xf]
    %v1226 = vld [vmem:[%s4 + $0x100] sm:$0xf]
    %v1227 = vld [vmem:[%s4 + $0x104] sm:$0xf]
    %v1228 = vld [vmem:[%s4 + $0x108] sm:$0xf]
    %v1229 = vld [vmem:[%s4 + $0x10c] sm:$0xf]
    %v1230 = vld [vmem:[%s4 + $0x110] sm:$0xf]
    %v1231 = vld [vmem:[%s4 + $0x114] sm:$0xf]
    %v1232 = vld [vmem:[%s4 + $0x118] sm:$0xf]
    %v1233 = vld [vmem:[%s4 + $0x11c] sm:$0xf]
    %v1234 = vunpack.c.l.b16 %v1104
    %v1235 = vunpack.c.l.b16 %v1108
    %v1236 = vunpack.c.l.b16 %v1112
    %v1237 = vunpack.c.l.b16 %v1116
    %v1238 = vpack.c.b16 %v1235, %v1234
    %v1239 = vpack.c.b16 %v1237, %v1236
    %v1248 = vunpack.c.l.b16 %v1170
    %v1249 = vunpack.c.l.b16 %v1171
    %v1250 = vunpack.c.l.b16 %v1172
    %v1251 = vunpack.c.l.b16 %v1173
    %v1252 = vunpack.c.l.b16 %v1174
    %v1253 = vunpack.c.l.b16 %v1175
    %v1254 = vunpack.c.l.b16 %v1176
    %v1255 = vunpack.c.l.b16 %v1177
    %v1256 = vpack.c.b16 %v1249, %v1248
    %v1257 = vpack.c.b16 %v1251, %v1250
    %v1258 = vpack.c.b16 %v1253, %v1252
    %v1259 = vpack.c.b16 %v1255, %v1254
    %v1265 = vsel %vm66, %v1238, 0
    %v1268 = vsel %vm66, %v1239, 0
    %1270 = vmatprep.subr.bf16.mxu0 0
    %1271 = vmatpush1.bf16.msra.mxu0 %v1256
    %1272 = vmatprep.subr.bf16.mxu0 0
    %1273 = vmatpush1.bf16.msra.mxu0 %v1257
    %1274 = vmatprep.subr.bf16.mxu0 0
    %1275 = vmatpush1.bf16.msra.mxu0 %v1258
    %1276 = vmatprep.subr.bf16.mxu0 0
    %1277 = vmatpush1.bf16.msra.mxu0 %v1259
    %1278 = vmatprep.subr.bf16.mxu0 0
    %1279 = vmatpush1.bf16.msra.mxu0 0
    %1280 = vmatprep.subr.bf16.mxu0 0
    %1281 = vmatpush1.bf16.msra.mxu0 0
    %1282 = vmatprep.subr.bf16.mxu0 0
    %1283 = vmatpush1.bf16.msra.mxu0 0
    %1284 = vmatprep.subr.bf16.mxu0 0
    %1285 = vmatpush1.bf16.msra.mxu0 0
    %1286 = vmatprep.subr.bf16.mxu0 0
    %1287 = vmatpush1.bf16.msra.mxu0 0
    %1288 = vmatprep.subr.bf16.mxu0 0
    %1289 = vmatpush1.bf16.msra.mxu0 0
    %1290 = vmatprep.subr.bf16.mxu0 0
    %1291 = vmatpush1.bf16.msra.mxu0 0
    %1292 = vmatprep.subr.bf16.mxu0 0
    %1293 = vmatpush1.bf16.msra.mxu0 0
    %1294 = vmatprep.subr.bf16.mxu0 0
    %1295 = vmatpush1.bf16.msra.mxu0 0
    %1296 = vmatprep.subr.bf16.mxu0 0
    %1297 = vmatpush1.bf16.msra.mxu0 0
    %1298 = vmatprep.subr.bf16.mxu0 0
    %1299 = vmatpush1.bf16.msra.mxu0 0
    %1300 = vmatprep.subr.bf16.mxu0 0
    %1301 = vmatpush1.bf16.msra.mxu0 0
    %1302 = vmatprep.mubr.bf16.mxu0 0
    %1303 = vmatmul.mubr.bf16.gmra.mrb[0].mxu0 %v1265
    %v1304 = vpop.f32.mrb[0].mxu0
    %v1305 = vadd.f32 0.0, %v1304
    %v1306 = vpop.f32.mrb[0].mxu0
    %v1307 = vpop.f32.mrb[0].mxu0
    %v1308 = vadd.f32 0.0, %v1307
    %v1309 = vpop.f32.mrb[0].mxu0
    %1310 = vmatprep.mubr.bf16.mxu0 0
    %1311 = vmatmul.mubr.bf16.gmra.mrb[0].mxu0 %v1268
    %v1312 = vpop.f32.mrb[0].mxu0
    %v1313 = vadd.f32 0.0, %v1312
    %v1314 = vpop.f32.mrb[0].mxu0
    %v1315 = vpop.f32.mrb[0].mxu0
    %v1316 = vadd.f32 0.0, %v1315
    %v1317 = vpop.f32.mrb[0].mxu0
    %1318 = vdwg.mxu0
    %v1319 = vpack.c.b16 %v1084, %v1082
    %v1320 = vpack.c.b16 %v1088, %v1086
    %v1329 = vunpack.c.l.b16 %v1162
    %v1330 = vunpack.c.l.b16 %v1163
    %v1331 = vunpack.c.l.b16 %v1164
    %v1332 = vunpack.c.l.b16 %v1165
    %v1333 = vunpack.c.l.b16 %v1166
    %v1334 = vunpack.c.l.b16 %v1167
    %v1335 = vunpack.c.l.b16 %v1168
    %v1336 = vunpack.c.l.b16 %v1169
    %v1337 = vpack.c.b16 %v1330, %v1329
    %v1338 = vpack.c.b16 %v1332, %v1331
    %v1339 = vpack.c.b16 %v1334, %v1333
    %v1340 = vpack.c.b16 %v1336, %v1335
    %v1346 = vsel %vm66, %v1319, 0
    %v1349 = vsel %vm66, %v1320, 0
    %1351 = vmatprep.subr.bf16.mxu0 0
    %1352 = vmatpush1.bf16.msra.mxu0 %v1337
    %1353 = vmatprep.subr.bf16.mxu0 0
    %1354 = vmatpush1.bf16.msra.mxu0 %v1338
    %1355 = vmatprep.subr.bf16.mxu0 0
    %1356 = vmatpush1.bf16.msra.mxu0 %v1339
    %1357 = vmatprep.subr.bf16.mxu0 0
    %1358 = vmatpush1.bf16.msra.mxu0 %v1340
    %1359 = vmatprep.subr.bf16.mxu0 0
    %1360 = vmatpush1.bf16.msra.mxu0 0
    %1361 = vmatprep.subr.bf16.mxu0 0
    %1362 = vmatpush1.bf16.msra.mxu0 0
    %1363 = vmatprep.subr.bf16.mxu0 0
    %1364 = vmatpush1.bf16.msra.mxu0 0
    %1365 = vmatprep.subr.bf16.mxu0 0
    %1366 = vmatpush1.bf16.msra.mxu0 0
    %1367 = vmatprep.subr.bf16.mxu0 0
    %1368 = vmatpush1.bf16.msra.mxu0 0
    %1369 = vmatprep.subr.bf16.mxu0 0
    %1370 = vmatpush1.bf16.msra.mxu0 0
    %1371 = vmatprep.subr.bf16.mxu0 0
    %1372 = vmatpush1.bf16.msra.mxu0 0
    %1373 = vmatprep.subr.bf16.mxu0 0
    %1374 = vmatpush1.bf16.msra.mxu0 0
    %1375 = vmatprep.subr.bf16.mxu0 0
    %1376 = vmatpush1.bf16.msra.mxu0 0
    %1377 = vmatprep.subr.bf16.mxu0 0
    %1378 = vmatpush1.bf16.msra.mxu0 0
    %1379 = vmatprep.subr.bf16.mxu0 0
    %1380 = vmatpush1.bf16.msra.mxu0 0
    %1381 = vmatprep.subr.bf16.mxu0 0
    %1382 = vmatpush1.bf16.msra.mxu0 0
    %1383 = vmatprep.mubr.bf16.mxu0 0
    %1384 = vmatmul.mubr.bf16.gmra.mrb[0].mxu0 %v1346
    %v1385 = vpop.f32.mrb[0].mxu0
    %v1386 = vadd.f32 %v1305, %v1385
    %v1387 = vpop.f32.mrb[0].mxu0
    %v1388 = vpop.f32.mrb[0].mxu0
    %v1389 = vadd.f32 %v1308, %v1388
    %v1390 = vpop.f32.mrb[0].mxu0
    %1391 = vmatprep.mubr.bf16.mxu0 0
    %1392 = vmatmul.mubr.bf16.gmra.mrb[0].mxu0 %v1349
    %v1393 = vpop.f32.mrb[0].mxu0
    %v1394 = vadd.f32 %v1313, %v1393
    %v1395 = vpop.f32.mrb[0].mxu0
    %v1396 = vpop.f32.mrb[0].mxu0
    %v1397 = vadd.f32 %v1316, %v1396
    %v1398 = vpop.f32.mrb[0].mxu0
    %1399 = vdwg.mxu0
    %v1400 = vunpack.c.l.b16 %v1123
    %v1401 = vunpack.c.l.b16 %v1127
    %v1402 = vunpack.c.l.b16 %v1131
    %v1403 = vunpack.c.l.b16 %v1135
    %v1404 = vpack.c.b16 %v1401, %v1400
    %v1405 = vpack.c.b16 %v1403, %v1402
    %v1414 = vunpack.c.l.b16 %v1178
    %v1415 = vunpack.c.l.b16 %v1179
    %v1416 = vunpack.c.l.b16 %v1180
    %v1417 = vunpack.c.l.b16 %v1181
    %v1418 = vunpack.c.l.b16 %v1182
    %v1419 = vunpack.c.l.b16 %v1183
    %v1420 = vunpack.c.l.b16 %v1184
    %v1421 = vunpack.c.l.b16 %v1185
    %v1422 = vpack.c.b16 %v1415, %v1414
    %v1423 = vpack.c.b16 %v1417, %v1416
    %v1424 = vpack.c.b16 %v1419, %v1418
    %v1425 = vpack.c.b16 %v1421, %v1420
    %v1431 = vsel %vm66, %v1404, 0
    %v1434 = vsel %vm66, %v1405, 0
    %1436 = vmatprep.subr.bf16.mxu0 0
    %1437 = vmatpush1.bf16.msra.mxu0 %v1422
    %1438 = vmatprep.subr.bf16.mxu0 0
    %1439 = vmatpush1.bf16.msra.mxu0 %v1423
    %1440 = vmatprep.subr.bf16.mxu0 0
    %1441 = vmatpush1.bf16.msra.mxu0 %v1424
    %1442 = vmatprep.subr.bf16.mxu0 0
    %1443 = vmatpush1.bf16.msra.mxu0 %v1425
    %1444 = vmatprep.subr.bf16.mxu0 0
    %1445 = vmatpush1.bf16.msra.mxu0 0
    %1446 = vmatprep.subr.bf16.mxu0 0
    %1447 = vmatpush1.bf16.msra.mxu0 0
    %1448 = vmatprep.subr.bf16.mxu0 0
    %1449 = vmatpush1.bf16.msra.mxu0 0
    %1450 = vmatprep.subr.bf16.mxu0 0
    %1451 = vmatpush1.bf16.msra.mxu0 0
    %1452 = vmatprep.subr.bf16.mxu0 0
    %1453 = vmatpush1.bf16.msra.mxu0 0
    %1454 = vmatprep.subr.bf16.mxu0 0
    %1455 = vmatpush1.bf16.msra.mxu0 0
    %1456 = vmatprep.subr.bf16.mxu0 0
    %1457 = vmatpush1.bf16.msra.mxu0 0
    %1458 = vmatprep.subr.bf16.mxu0 0
    %1459 = vmatpush1.bf16.msra.mxu0 0
    %1460 = vmatprep.subr.bf16.mxu0 0
    %1461 = vmatpush1.bf16.msra.mxu0 0
    %1462 = vmatprep.subr.bf16.mxu0 0
    %1463 = vmatpush1.bf16.msra.mxu0 0
    %1464 = vmatprep.subr.bf16.mxu0 0
    %1465 = vmatpush1.bf16.msra.mxu0 0
    %1466 = vmatprep.subr.bf16.mxu0 0
    %1467 = vmatpush1.bf16.msra.mxu0 0
    %1468 = vmatprep.mubr.bf16.mxu0 0
    %1469 = vmatmul.mubr.bf16.gmra.mrb[0].mxu0 %v1431
    %v1470 = vpop.f32.mrb[0].mxu0
    %v1471 = vadd.f32 0.0, %v1470
    %v1472 = vpop.f32.mrb[0].mxu0
    %v1473 = vpop.f32.mrb[0].mxu0
    %v1474 = vadd.f32 0.0, %v1473
    %v1475 = vpop.f32.mrb[0].mxu0
    %1476 = vmatprep.mubr.bf16.mxu0 0
    %1477 = vmatmul.mubr.bf16.gmra.mrb[0].mxu0 %v1434
    %v1478 = vpop.f32.mrb[0].mxu0
    %v1479 = vadd.f32 0.0, %v1478
    %v1480 = vpop.f32.mrb[0].mxu0
    %v1481 = vpop.f32.mrb[0].mxu0
    %v1482 = vadd.f32 0.0, %v1481
    %v1483 = vpop.f32.mrb[0].mxu0
    %1484 = vdwg.mxu0
    %v1485 = vadd.f32 %v1386, %v1471
    %v1486 = vadd.f32 %v1389, %v1474
    %v1487 = vadd.f32 %v1394, %v1479
    %v1488 = vadd.f32 %v1397, %v1482
    %v1489 = vpack.c.b16 %v1086, %v1084
    %v1490 = vpack.c.b16 %v1137, %v1088
    %v1499 = vunpack.c.l.b16 %v1186
    %v1500 = vunpack.c.l.b16 %v1187
    %v1501 = vunpack.c.l.b16 %v1188
    %v1502 = vunpack.c.l.b16 %v1189
    %v1503 = vunpack.c.l.b16 %v1190
    %v1504 = vunpack.c.l.b16 %v1191
    %v1505 = vunpack.c.l.b16 %v1192
    %v1506 = vunpack.c.l.b16 %v1193
    %v1507 = vpack.c.b16 %v1500, %v1499
    %v1508 = vpack.c.b16 %v1502, %v1501
    %v1509 = vpack.c.b16 %v1504, %v1503
    %v1510 = vpack.c.b16 %v1506, %v1505
    %v1516 = vsel %vm66, %v1489, 0
    %v1519 = vsel %vm66, %v1490, 0
    %1521 = vmatprep.subr.bf16.mxu0 0
    %1522 = vmatpush1.bf16.msra.mxu0 %v1507
    %1523 = vmatprep.subr.bf16.mxu0 0
    %1524 = vmatpush1.bf16.msra.mxu0 %v1508
    %1525 = vmatprep.subr.bf16.mxu0 0
    %1526 = vmatpush1.bf16.msra.mxu0 %v1509
    %1527 = vmatprep.subr.bf16.mxu0 0
    %1528 = vmatpush1.bf16.msra.mxu0 %v1510
    %1529 = vmatprep.subr.bf16.mxu0 0
    %1530 = vmatpush1.bf16.msra.mxu0 0
    %1531 = vmatprep.subr.bf16.mxu0 0
    %1532 = vmatpush1.bf16.msra.mxu0 0
    %1533 = vmatprep.subr.bf16.mxu0 0
    %1534 = vmatpush1.bf16.msra.mxu0 0
    %1535 = vmatprep.subr.bf16.mxu0 0
    %1536 = vmatpush1.bf16.msra.mxu0 0
    %1537 = vmatprep.subr.bf16.mxu0 0
    %1538 = vmatpush1.bf16.msra.mxu0 0
    %1539 = vmatprep.subr.bf16.mxu0 0
    %1540 = vmatpush1.bf16.msra.mxu0 0
    %1541 = vmatprep.subr.bf16.mxu0 0
    %1542 = vmatpush1.bf16.msra.mxu0 0
    %1543 = vmatprep.subr.bf16.mxu0 0
    %1544 = vmatpush1.bf16.msra.mxu0 0
    %1545 = vmatprep.subr.bf16.mxu0 0
    %1546 = vmatpush1.bf16.msra.mxu0 0
    %1547 = vmatprep.subr.bf16.mxu0 0
    %1548 = vmatpush1.bf16.msra.mxu0 0
    %1549 = vmatprep.subr.bf16.mxu0 0
    %1550 = vmatpush1.bf16.msra.mxu0 0
    %1551 = vmatprep.subr.bf16.mxu0 0
    %1552 = vmatpush1.bf16.msra.mxu0 0
    %1553 = vmatprep.mubr.bf16.mxu0 0
    %1554 = vmatmul.mubr.bf16.gmra.mrb[0].mxu0 %v1516
    %v1555 = vpop.f32.mrb[0].mxu0
    %v1556 = vadd.f32 0.0, %v1555
    %v1557 = vpop.f32.mrb[0].mxu0
    %v1558 = vpop.f32.mrb[0].mxu0
    %v1559 = vadd.f32 0.0, %v1558
    %v1560 = vpop.f32.mrb[0].mxu0
    %1561 = vmatprep.mubr.bf16.mxu0 0
    %1562 = vmatmul.mubr.bf16.gmra.mrb[0].mxu0 %v1519
    %v1563 = vpop.f32.mrb[0].mxu0
    %v1564 = vadd.f32 0.0, %v1563
    %v1565 = vpop.f32.mrb[0].mxu0
    %v1566 = vpop.f32.mrb[0].mxu0
    %v1567 = vadd.f32 0.0, %v1566
    %v1568 = vpop.f32.mrb[0].mxu0
    %1569 = vdwg.mxu0
    %v1570 = vadd.f32 %v1485, %v1556
    %v1571 = vadd.f32 %v1486, %v1559
    %v1572 = vadd.f32 %v1487, %v1564
    %v1573 = vadd.f32 %v1488, %v1567
    %v1574 = vunpack.c.l.b16 %v1144
    %v1575 = vpack.c.b16 %v1236, %v1235
    %v1576 = vpack.c.b16 %v1574, %v1237
    %v1585 = vunpack.c.l.b16 %v1194
    %v1586 = vunpack.c.l.b16 %v1195
    %v1587 = vunpack.c.l.b16 %v1196
    %v1588 = vunpack.c.l.b16 %v1197
    %v1589 = vunpack.c.l.b16 %v1198
    %v1590 = vunpack.c.l.b16 %v1199
    %v1591 = vunpack.c.l.b16 %v1200
    %v1592 = vunpack.c.l.b16 %v1201
    %v1593 = vpack.c.b16 %v1586, %v1585
    %v1594 = vpack.c.b16 %v1588, %v1587
    %v1595 = vpack.c.b16 %v1590, %v1589
    %v1596 = vpack.c.b16 %v1592, %v1591
    %v1602 = vsel %vm66, %v1575, 0
    %v1605 = vsel %vm66, %v1576, 0
    %1607 = vmatprep.subr.bf16.mxu0 0
    %1608 = vmatpush1.bf16.msra.mxu0 %v1593
    %1609 = vmatprep.subr.bf16.mxu0 0
    %1610 = vmatpush1.bf16.msra.mxu0 %v1594
    %1611 = vmatprep.subr.bf16.mxu0 0
    %1612 = vmatpush1.bf16.msra.mxu0 %v1595
    %1613 = vmatprep.subr.bf16.mxu0 0
    %1614 = vmatpush1.bf16.msra.mxu0 %v1596
    %1615 = vmatprep.subr.bf16.mxu0 0
    %1616 = vmatpush1.bf16.msra.mxu0 0
    %1617 = vmatprep.subr.bf16.mxu0 0
    %1618 = vmatpush1.bf16.msra.mxu0 0
    %1619 = vmatprep.subr.bf16.mxu0 0
    %1620 = vmatpush1.bf16.msra.mxu0 0
    %1621 = vmatprep.subr.bf16.mxu0 0
    %1622 = vmatpush1.bf16.msra.mxu0 0
    %1623 = vmatprep.subr.bf16.mxu0 0
    %1624 = vmatpush1.bf16.msra.mxu0 0
    %1625 = vmatprep.subr.bf16.mxu0 0
    %1626 = vmatpush1.bf16.msra.mxu0 0
    %1627 = vmatprep.subr.bf16.mxu0 0
    %1628 = vmatpush1.bf16.msra.mxu0 0
    %1629 = vmatprep.subr.bf16.mxu0 0
    %1630 = vmatpush1.bf16.msra.mxu0 0
    %1631 = vmatprep.subr.bf16.mxu0 0
    %1632 = vmatpush1.bf16.msra.mxu0 0
    %1633 = vmatprep.subr.bf16.mxu0 0
    %1634 = vmatpush1.bf16.msra.mxu0 0
    %1635 = vmatprep.subr.bf16.mxu0 0
    %1636 = vmatpush1.bf16.msra.mxu0 0
    %1637 = vmatprep.subr.bf16.mxu0 0
    %1638 = vmatpush1.bf16.msra.mxu0 0
    %1639 = vmatprep.mubr.bf16.mxu0 0
    %1640 = vmatmul.mubr.bf16.gmra.mrb[0].mxu0 %v1602
    %v1641 = vpop.f32.mrb[0].mxu0
    %v1642 = vadd.f32 0.0, %v1641
    %v1643 = vpop.f32.mrb[0].mxu0
    %v1644 = vpop.f32.mrb[0].mxu0
    %v1645 = vadd.f32 0.0, %v1644
    %v1646 = vpop.f32.mrb[0].mxu0
    %1647 = vmatprep.mubr.bf16.mxu0 0
    %1648 = vmatmul.mubr.bf16.gmra.mrb[0].mxu0 %v1605
    %v1649 = vpop.f32.mrb[0].mxu0
    %v1650 = vadd.f32 0.0, %v1649
    %v1651 = vpop.f32.mrb[0].mxu0
    %v1652 = vpop.f32.mrb[0].mxu0
    %v1653 = vadd.f32 0.0, %v1652
    %v1654 = vpop.f32.mrb[0].mxu0
    %1655 = vdwg.mxu0
    %v1656 = vadd.f32 %v1570, %v1642
    %v1657 = vadd.f32 %v1571, %v1645
    %v1658 = vadd.f32 %v1572, %v1650
    %v1659 = vadd.f32 %v1573, %v1653
    %v1660 = vunpack.c.l.b16 %v1148
    %v1661 = vpack.c.b16 %v1402, %v1401
    %v1662 = vpack.c.b16 %v1660, %v1403
    %v1671 = vunpack.c.l.b16 %v1202
    %v1672 = vunpack.c.l.b16 %v1203
    %v1673 = vunpack.c.l.b16 %v1204
    %v1674 = vunpack.c.l.b16 %v1205
    %v1675 = vunpack.c.l.b16 %v1206
    %v1676 = vunpack.c.l.b16 %v1207
    %v1677 = vunpack.c.l.b16 %v1208
    %v1678 = vunpack.c.l.b16 %v1209
    %v1679 = vpack.c.b16 %v1672, %v1671
    %v1680 = vpack.c.b16 %v1674, %v1673
    %v1681 = vpack.c.b16 %v1676, %v1675
    %v1682 = vpack.c.b16 %v1678, %v1677
    %v1688 = vsel %vm66, %v1661, 0
    %v1691 = vsel %vm66, %v1662, 0
    %1693 = vmatprep.subr.bf16.mxu0 0
    %1694 = vmatpush1.bf16.msra.mxu0 %v1679
    %1695 = vmatprep.subr.bf16.mxu0 0
    %1696 = vmatpush1.bf16.msra.mxu0 %v1680
    %1697 = vmatprep.subr.bf16.mxu0 0
    %1698 = vmatpush1.bf16.msra.mxu0 %v1681
    %1699 = vmatprep.subr.bf16.mxu0 0
    %1700 = vmatpush1.bf16.msra.mxu0 %v1682
    %1701 = vmatprep.subr.bf16.mxu0 0
    %1702 = vmatpush1.bf16.msra.mxu0 0
    %1703 = vmatprep.subr.bf16.mxu0 0
    %1704 = vmatpush1.bf16.msra.mxu0 0
    %1705 = vmatprep.subr.bf16.mxu0 0
    %1706 = vmatpush1.bf16.msra.mxu0 0
    %1707 = vmatprep.subr.bf16.mxu0 0
    %1708 = vmatpush1.bf16.msra.mxu0 0
    %1709 = vmatprep.subr.bf16.mxu0 0
    %1710 = vmatpush1.bf16.msra.mxu0 0
    %1711 = vmatprep.subr.bf16.mxu0 0
    %1712 = vmatpush1.bf16.msra.mxu0 0
    %1713 = vmatprep.subr.bf16.mxu0 0
    %1714 = vmatpush1.bf16.msra.mxu0 0
    %1715 = vmatprep.subr.bf16.mxu0 0
    %1716 = vmatpush1.bf16.msra.mxu0 0
    %1717 = vmatprep.subr.bf16.mxu0 0
    %1718 = vmatpush1.bf16.msra.mxu0 0
    %1719 = vmatprep.subr.bf16.mxu0 0
    %1720 = vmatpush1.bf16.msra.mxu0 0
    %1721 = vmatprep.subr.bf16.mxu0 0
    %1722 = vmatpush1.bf16.msra.mxu0 0
    %1723 = vmatprep.subr.bf16.mxu0 0
    %1724 = vmatpush1.bf16.msra.mxu0 0
    %1725 = vmatprep.mubr.bf16.mxu0 0
    %1726 = vmatmul.mubr.bf16.gmra.mrb[0].mxu0 %v1688
    %v1727 = vpop.f32.mrb[0].mxu0
    %v1728 = vadd.f32 0.0, %v1727
    %v1729 = vpop.f32.mrb[0].mxu0
    %v1730 = vpop.f32.mrb[0].mxu0
    %v1731 = vadd.f32 0.0, %v1730
    %v1732 = vpop.f32.mrb[0].mxu0
    %1733 = vmatprep.mubr.bf16.mxu0 0
    %1734 = vmatmul.mubr.bf16.gmra.mrb[0].mxu0 %v1691
    %v1735 = vpop.f32.mrb[0].mxu0
    %v1736 = vadd.f32 0.0, %v1735
    %v1737 = vpop.f32.mrb[0].mxu0
    %v1738 = vpop.f32.mrb[0].mxu0
    %v1739 = vadd.f32 0.0, %v1738
    %v1740 = vpop.f32.mrb[0].mxu0
    %1741 = vdwg.mxu0
    %v1742 = vadd.f32 %v1656, %v1728
    %v1743 = vadd.f32 %v1657, %v1731
    %v1744 = vadd.f32 %v1658, %v1736
    %v1745 = vadd.f32 %v1659, %v1739
    %v1746 = vpack.c.b16 %v1150, %v1137
    %v1755 = vunpack.c.l.b16 %v1210
    %v1756 = vunpack.c.l.b16 %v1211
    %v1757 = vunpack.c.l.b16 %v1212
    %v1758 = vunpack.c.l.b16 %v1213
    %v1759 = vunpack.c.l.b16 %v1214
    %v1760 = vunpack.c.l.b16 %v1215
    %v1761 = vunpack.c.l.b16 %v1216
    %v1762 = vunpack.c.l.b16 %v1217
    %v1763 = vpack.c.b16 %v1756, %v1755
    %v1764 = vpack.c.b16 %v1758, %v1757
    %v1765 = vpack.c.b16 %v1760, %v1759
    %v1766 = vpack.c.b16 %v1762, %v1761
    %v1772 = vsel %vm66, %v1746, 0
    %1774 = vmatprep.subr.bf16.mxu0 0
    %1775 = vmatpush1.bf16.msra.mxu0 %v1763
    %1776 = vmatprep.subr.bf16.mxu0 0
    %1777 = vmatpush1.bf16.msra.mxu0 %v1764
    %1778 = vmatprep.subr.bf16.mxu0 0
    %1779 = vmatpush1.bf16.msra.mxu0 %v1765
    %1780 = vmatprep.subr.bf16.mxu0 0
    %1781 = vmatpush1.bf16.msra.mxu0 %v1766
    %1782 = vmatprep.subr.bf16.mxu0 0
    %1783 = vmatpush1.bf16.msra.mxu0 0
    %1784 = vmatprep.subr.bf16.mxu0 0
    %1785 = vmatpush1.bf16.msra.mxu0 0
    %1786 = vmatprep.subr.bf16.mxu0 0
    %1787 = vmatpush1.bf16.msra.mxu0 0
    %1788 = vmatprep.subr.bf16.mxu0 0
    %1789 = vmatpush1.bf16.msra.mxu0 0
    %1790 = vmatprep.subr.bf16.mxu0 0
    %1791 = vmatpush1.bf16.msra.mxu0 0
    %1792 = vmatprep.subr.bf16.mxu0 0
    %1793 = vmatpush1.bf16.msra.mxu0 0
    %1794 = vmatprep.subr.bf16.mxu0 0
    %1795 = vmatpush1.bf16.msra.mxu0 0
    %1796 = vmatprep.subr.bf16.mxu0 0
    %1797 = vmatpush1.bf16.msra.mxu0 0
    %1798 = vmatprep.subr.bf16.mxu0 0
    %1799 = vmatpush1.bf16.msra.mxu0 0
    %1800 = vmatprep.subr.bf16.mxu0 0
    %1801 = vmatpush1.bf16.msra.mxu0 0
    %1802 = vmatprep.subr.bf16.mxu0 0
    %1803 = vmatpush1.bf16.msra.mxu0 0
    %1804 = vmatprep.subr.bf16.mxu0 0
    %1805 = vmatpush1.bf16.msra.mxu0 0
    %1806 = vmatprep.mubr.bf16.mxu0 0
    %1807 = vmatmul.mubr.bf16.gmra.mrb[0].mxu0 %v1349
    %v1808 = vpop.f32.mrb[0].mxu0
    %v1809 = vadd.f32 0.0, %v1808
    %v1810 = vpop.f32.mrb[0].mxu0
    %v1811 = vpop.f32.mrb[0].mxu0
    %v1812 = vadd.f32 0.0, %v1811
    %v1813 = vpop.f32.mrb[0].mxu0
    %1814 = vmatprep.mubr.bf16.mxu0 0
    %1815 = vmatmul.mubr.bf16.gmra.mrb[0].mxu0 %v1772
    %v1816 = vpop.f32.mrb[0].mxu0
    %v1817 = vadd.f32 0.0, %v1816
    %v1818 = vpop.f32.mrb[0].mxu0
    %v1819 = vpop.f32.mrb[0].mxu0
    %v1820 = vadd.f32 0.0, %v1819
    %v1821 = vpop.f32.mrb[0].mxu0
    %1822 = vdwg.mxu0
    %v1823 = vadd.f32 %v1742, %v1809
    %v1824 = vadd.f32 %v1743, %v1812
    %v1825 = vadd.f32 %v1744, %v1817
    %v1826 = vadd.f32 %v1745, %v1820
    %v1827 = vunpack.c.l.b16 %v1157
    %v1828 = vpack.c.b16 %v1827, %v1574
    %v1837 = vunpack.c.l.b16 %v1218
    %v1838 = vunpack.c.l.b16 %v1219
    %v1839 = vunpack.c.l.b16 %v1220
    %v1840 = vunpack.c.l.b16 %v1221
    %v1841 = vunpack.c.l.b16 %v1222
    %v1842 = vunpack.c.l.b16 %v1223
    %v1843 = vunpack.c.l.b16 %v1224
    %v1844 = vunpack.c.l.b16 %v1225
    %v1845 = vpack.c.b16 %v1838, %v1837
    %v1846 = vpack.c.b16 %v1840, %v1839
    %v1847 = vpack.c.b16 %v1842, %v1841
    %v1848 = vpack.c.b16 %v1844, %v1843
    %v1854 = vsel %vm66, %v1828, 0
    %1856 = vmatprep.subr.bf16.mxu0 0
    %1857 = vmatpush1.bf16.msra.mxu0 %v1845
    %1858 = vmatprep.subr.bf16.mxu0 0
    %1859 = vmatpush1.bf16.msra.mxu0 %v1846
    %1860 = vmatprep.subr.bf16.mxu0 0
    %1861 = vmatpush1.bf16.msra.mxu0 %v1847
    %1862 = vmatprep.subr.bf16.mxu0 0
    %1863 = vmatpush1.bf16.msra.mxu0 %v1848
    %1864 = vmatprep.subr.bf16.mxu0 0
    %1865 = vmatpush1.bf16.msra.mxu0 0
    %1866 = vmatprep.subr.bf16.mxu0 0
    %1867 = vmatpush1.bf16.msra.mxu0 0
    %1868 = vmatprep.subr.bf16.mxu0 0
    %1869 = vmatpush1.bf16.msra.mxu0 0
    %1870 = vmatprep.subr.bf16.mxu0 0
    %1871 = vmatpush1.bf16.msra.mxu0 0
    %1872 = vmatprep.subr.bf16.mxu0 0
    %1873 = vmatpush1.bf16.msra.mxu0 0
    %1874 = vmatprep.subr.bf16.mxu0 0
    %1875 = vmatpush1.bf16.msra.mxu0 0
    %1876 = vmatprep.subr.bf16.mxu0 0
    %1877 = vmatpush1.bf16.msra.mxu0 0
    %1878 = vmatprep.subr.bf16.mxu0 0
    %1879 = vmatpush1.bf16.msra.mxu0 0
    %1880 = vmatprep.subr.bf16.mxu0 0
    %1881 = vmatpush1.bf16.msra.mxu0 0
    %1882 = vmatprep.subr.bf16.mxu0 0
    %1883 = vmatpush1.bf16.msra.mxu0 0
    %1884 = vmatprep.subr.bf16.mxu0 0
    %1885 = vmatpush1.bf16.msra.mxu0 0
    %1886 = vmatprep.subr.bf16.mxu0 0
    %1887 = vmatpush1.bf16.msra.mxu0 0
    %1888 = vmatprep.mubr.bf16.mxu0 0
    %1889 = vmatmul.mubr.bf16.gmra.mrb[0].mxu0 %v1268
    %v1890 = vpop.f32.mrb[0].mxu0
    %v1891 = vadd.f32 0.0, %v1890
    %v1892 = vpop.f32.mrb[0].mxu0
    %v1893 = vpop.f32.mrb[0].mxu0
    %v1894 = vadd.f32 0.0, %v1893
    %v1895 = vpop.f32.mrb[0].mxu0
    %1896 = vmatprep.mubr.bf16.mxu0 0
    %1897 = vmatmul.mubr.bf16.gmra.mrb[0].mxu0 %v1854
    %v1898 = vpop.f32.mrb[0].mxu0
    %v1899 = vadd.f32 0.0, %v1898
    %v1900 = vpop.f32.mrb[0].mxu0
    %v1901 = vpop.f32.mrb[0].mxu0
    %v1902 = vadd.f32 0.0, %v1901
    %v1903 = vpop.f32.mrb[0].mxu0
    %1904 = vdwg.mxu0
    %v1905 = vadd.f32 %v1823, %v1891
    %v1906 = vadd.f32 %v1824, %v1894
    %v1907 = vadd.f32 %v1825, %v1899
    %v1908 = vadd.f32 %v1826, %v1902
    %v1909 = vunpack.c.l.b16 %v1161
    %v1910 = vpack.c.b16 %v1909, %v1660
    %v1919 = vunpack.c.l.b16 %v1226
    %v1920 = vunpack.c.l.b16 %v1227
    %v1921 = vunpack.c.l.b16 %v1228
    %v1922 = vunpack.c.l.b16 %v1229
    %v1923 = vunpack.c.l.b16 %v1230
    %v1924 = vunpack.c.l.b16 %v1231
    %v1925 = vunpack.c.l.b16 %v1232
    %v1926 = vunpack.c.l.b16 %v1233
    %v1927 = vpack.c.b16 %v1920, %v1919
    %v1928 = vpack.c.b16 %v1922, %v1921
    %v1929 = vpack.c.b16 %v1924, %v1923
    %v1930 = vpack.c.b16 %v1926, %v1925
    %v1936 = vsel %vm66, %v1910, 0
    %1938 = vmatprep.subr.bf16.mxu0 0
    %1939 = vmatpush1.bf16.msra.mxu0 %v1927
    %1940 = vmatprep.subr.bf16.mxu0 0
    %1941 = vmatpush1.bf16.msra.mxu0 %v1928
    %1942 = vmatprep.subr.bf16.mxu0 0
    %1943 = vmatpush1.bf16.msra.mxu0 %v1929
    %1944 = vmatprep.subr.bf16.mxu0 0
    %1945 = vmatpush1.bf16.msra.mxu0 %v1930
    %1946 = vmatprep.subr.bf16.mxu0 0
    %1947 = vmatpush1.bf16.msra.mxu0 0
    %1948 = vmatprep.subr.bf16.mxu0 0
    %1949 = vmatpush1.bf16.msra.mxu0 0
    %1950 = vmatprep.subr.bf16.mxu0 0
    %1951 = vmatpush1.bf16.msra.mxu0 0
    %1952 = vmatprep.subr.bf16.mxu0 0
    %1953 = vmatpush1.bf16.msra.mxu0 0
    %1954 = vmatprep.subr.bf16.mxu0 0
    %1955 = vmatpush1.bf16.msra.mxu0 0
    %1956 = vmatprep.subr.bf16.mxu0 0
    %1957 = vmatpush1.bf16.msra.mxu0 0
    %1958 = vmatprep.subr.bf16.mxu0 0
    %1959 = vmatpush1.bf16.msra.mxu0 0
    %1960 = vmatprep.subr.bf16.mxu0 0
    %1961 = vmatpush1.bf16.msra.mxu0 0
    %1962 = vmatprep.subr.bf16.mxu0 0
    %1963 = vmatpush1.bf16.msra.mxu0 0
    %1964 = vmatprep.subr.bf16.mxu0 0
    %1965 = vmatpush1.bf16.msra.mxu0 0
    %1966 = vmatprep.subr.bf16.mxu0 0
    %1967 = vmatpush1.bf16.msra.mxu0 0
    %1968 = vmatprep.subr.bf16.mxu0 0
    %1969 = vmatpush1.bf16.msra.mxu0 0
    %1970 = vmatprep.mubr.bf16.mxu0 0
    %1971 = vmatmul.mubr.bf16.gmra.mrb[0].mxu0 %v1434
    %v1972 = vpop.f32.mrb[0].mxu0
    %v1973 = vadd.f32 0.0, %v1972
    %v1974 = vpop.f32.mrb[0].mxu0
    %v1975 = vpop.f32.mrb[0].mxu0
    %v1976 = vadd.f32 0.0, %v1975
    %v1977 = vpop.f32.mrb[0].mxu0
    %1978 = vmatprep.mubr.bf16.mxu0 0
    %1979 = vmatmul.mubr.bf16.gmra.mrb[0].mxu0 %v1936
    %v1980 = vpop.f32.mrb[0].mxu0
    %v1981 = vadd.f32 0.0, %v1980
    %v1982 = vpop.f32.mrb[0].mxu0
    %v1983 = vpop.f32.mrb[0].mxu0
    %v1984 = vadd.f32 0.0, %v1983
    %v1985 = vpop.f32.mrb[0].mxu0
    %1986 = vdwg.mxu0
    %v1987 = vadd.f32 %v1905, %v1973
    %v1988 = vadd.f32 %v1906, %v1976
    %v1989 = vadd.f32 %v1907, %v1981
    %v1990 = vadd.f32 %v1908, %v1984
    %v1991 = vld [vmem:[%s5] sm:$0x1]
    %v1993 = vlaneseq
    %v1994 = vshrl.u32 %v1993, 7
    %v1995 = vsub.s32 0, %v1994
    %v1996 = vrot.slane %v1991, %v1995
    %v1998 = vmul.f32 %v1987, %v1996
    %v1999 = vmul.f32 %v1988, %v1996
    %v2000 = vmul.f32 %v1989, %v1996
    %v2001 = vmul.f32 %v1990, %v1996
    %v2002 = vld [vmem:[%s6] sm:$0x1]
    %v2004 = vlaneseq
    %v2005 = vshrl.u32 %v2004, 7
    %v2006 = vsub.s32 0, %v2005
    %v2007 = vrot.slane %v2002, %v2006
    %v2009 = vadd.f32 %v1998, %v2007
    %v2010 = vadd.f32 %v1999, %v2007
    %v2011 = vadd.f32 %v2000, %v2007
    %v2012 = vadd.f32 %v2001, %v2007
    %v2013 = vmax.f32 %v2009, 0.0
    %v2014 = vmax.f32 %v2010, 0.0
    %v2015 = vmax.f32 %v2011, 0.0
    %v2016 = vmax.f32 %v2012, 0.0
    %2017 = vst.msk [vmem:[%s1055 + $0x2] sm:$0xff] %vm66, %v2013
    %2018 = vst.msk [vmem:[%s1055 + $0x12] sm:$0xff] %vm66, %v2014
    %2019 = vst.msk [vmem:[%s1055 + $0x22] sm:$0xff] %vm66, %v2015
    %2020 = vst.msk [vmem:[%s1055 + $0x32] sm:$0xff] %vm66, %v2016
    %v2021 = vld [vmem:[#allocation3] sm:$0xff]
    %v2022 = vld [vmem:[#allocation3 + $0x8] sm:$0xf]
    %v2023 = vld [vmem:[#allocation3 + $0x10] sm:$0xff]
    %v2024 = vld [vmem:[#allocation3 + $0x18] sm:$0xf]
    %v2025 = vld [vmem:[#allocation3 + $0x20] sm:$0xff]
    %v2026 = vld [vmem:[#allocation3 + $0x28] sm:$0xf]
    %v2027 = vld [vmem:[#allocation3 + $0x30] sm:$0xff]
    %v2028 = vld [vmem:[#allocation3 + $0x38] sm:$0xf]
    %v2029 = vld [vmem:[#allocation3 + $0x40] sm:$0xff]
    %v2030 = vld [vmem:[#allocation3 + $0x48] sm:$0xf]
    %v2031 = vld [vmem:[#allocation3 + $0x50] sm:$0xff]
    %v2032 = vld [vmem:[#allocation3 + $0x58] sm:$0xf]
    %v2033 = vpack.c.bf16 %v2022, %v2021
    %v2034 = vpack.c.bf16 %v2024, %v2023
    %v2035 = vpack.c.bf16 %v2026, %v2025
    %v2036 = vpack.c.bf16 %v2028, %v2027
    %v2037 = vpack.c.bf16 %v2030, %v2029
    %v2038 = vpack.c.bf16 %v2032, %v2031
    %v2043 = vunpack.c.l.b16 %v2033
    %v2044 = vunpack.c.h.b16 %v2033
    %v2045 = vunpack.c.l.b16 %v2034
    %v2046 = vunpack.c.h.b16 %v2034
    %v2047 = vunpack.c.l.b16 %v2035
    %v2048 = vunpack.c.h.b16 %v2035
    %v2049 = vunpack.c.l.b16 %v2036
    %v2050 = vunpack.c.h.b16 %v2036
    %v2051 = vpack.c.b16 %v2043, %v2043
    %v2052 = vpack.c.b16 %v2044, %v2044
    %v2053 = vpack.c.b16 %v2045, %v2045
    %v2054 = vpack.c.b16 %v2046, %v2046
    %v2055 = vpack.c.b16 %v2047, %v2047
    %v2056 = vpack.c.b16 %v2048, %v2048
    %v2057 = vpack.c.b16 %v2049, %v2049
    %v2058 = vpack.c.b16 %v2050, %v2050
    %v2059 = vrot.slane %v2051, 5
    %v2060 = vrot.slane %v2059, 4
    %v2061 = vrot.slane %v2052, 5
    %v2062 = vsel %vm1100, %v2060, %v2061
    %v2063 = vrot.slane %v2053, 5
    %v2064 = vrot.slane %v2063, 4
    %v2065 = vrot.slane %v2054, 5
    %v2066 = vsel %vm1100, %v2064, %v2065
    %v2067 = vrot.slane %v2055, 5
    %v2068 = vrot.slane %v2067, 4
    %v2069 = vrot.slane %v2056, 5
    %v2070 = vsel %vm1100, %v2068, %v2069
    %v2071 = vrot.slane %v2057, 5
    %v2072 = vrot.slane %v2071, 4
    %v2073 = vrot.slane %v2058, 5
    %v2074 = vsel %vm1100, %v2072, %v2073
    %v2075 = vrot.slane %v2051, 6
    %v2076 = vrot.slane %v2075, 4
    %v2077 = vrot.slane %v2052, 6
    %v2078 = vsel %vm1119, %v2076, %v2077
    %v2079 = vrot.slane %v2053, 6
    %v2080 = vrot.slane %v2079, 4
    %v2081 = vrot.slane %v2054, 6
    %v2082 = vsel %vm1119, %v2080, %v2081
    %v2083 = vrot.slane %v2055, 6
    %v2084 = vrot.slane %v2083, 4
    %v2085 = vrot.slane %v2056, 6
    %v2086 = vsel %vm1119, %v2084, %v2085
    %v2087 = vrot.slane %v2057, 6
    %v2088 = vrot.slane %v2087, 4
    %v2089 = vrot.slane %v2058, 6
    %v2090 = vsel %vm1119, %v2088, %v2089
    %v2092 = vunpack.c.l.b16 %v2037
    %v2093 = vunpack.c.h.b16 %v2037
    %v2094 = vpack.c.b16 %v2092, %v2092
    %v2095 = vpack.c.b16 %v2093, %v2093
    %v2096 = vrot.slane %v2094, 5
    %v2097 = vrot.slane %v2096, 4
    %v2098 = vrot.slane %v2095, 5
    %v2099 = vsel %vm1100, %v2097, %v2098
    %v2100 = vrot.slane %v2094, 6
    %v2101 = vrot.slane %v2100, 4
    %v2102 = vrot.slane %v2095, 6
    %v2103 = vsel %vm1119, %v2101, %v2102
    %v2105 = vunpack.c.l.b16 %v2038
    %v2106 = vunpack.c.h.b16 %v2038
    %v2107 = vpack.c.b16 %v2105, %v2105
    %v2108 = vpack.c.b16 %v2106, %v2106
    %v2109 = vrot.slane %v2107, 5
    %v2110 = vrot.slane %v2109, 4
    %v2111 = vrot.slane %v2108, 5
    %v2112 = vsel %vm1100, %v2110, %v2111
    %v2113 = vrot.slane %v2107, 6
    %v2114 = vrot.slane %v2113, 4
    %v2115 = vrot.slane %v2108, 6
    %v2116 = vsel %vm1119, %v2114, %v2115
    %v2117 = vld [vmem:[%s7] sm:$0xf]
    %v2118 = vld [vmem:[%s7 + $0x4] sm:$0xf]
    %v2119 = vld [vmem:[%s7 + $0x8] sm:$0xf]
    %v2120 = vld [vmem:[%s7 + $0xc] sm:$0xf]
    %v2121 = vld [vmem:[%s7 + $0x10] sm:$0xf]
    %v2122 = vld [vmem:[%s7 + $0x14] sm:$0xf]
    %v2123 = vld [vmem:[%s7 + $0x18] sm:$0xf]
    %v2124 = vld [vmem:[%s7 + $0x1c] sm:$0xf]
    %v2125 = vld [vmem:[%s7 + $0x20] sm:$0xf]
    %v2126 = vld [vmem:[%s7 + $0x24] sm:$0xf]
    %v2127 = vld [vmem:[%s7 + $0x28] sm:$0xf]
    %v2128 = vld [vmem:[%s7 + $0x2c] sm:$0xf]
    %v2129 = vld [vmem:[%s7 + $0x30] sm:$0xf]
    %v2130 = vld [vmem:[%s7 + $0x34] sm:$0xf]
    %v2131 = vld [vmem:[%s7 + $0x38] sm:$0xf]
    %v2132 = vld [vmem:[%s7 + $0x3c] sm:$0xf]
    %v2133 = vld [vmem:[%s7 + $0x40] sm:$0xf]
    %v2134 = vld [vmem:[%s7 + $0x44] sm:$0xf]
    %v2135 = vld [vmem:[%s7 + $0x48] sm:$0xf]
    %v2136 = vld [vmem:[%s7 + $0x4c] sm:$0xf]
    %v2137 = vld [vmem:[%s7 + $0x50] sm:$0xf]
    %v2138 = vld [vmem:[%s7 + $0x54] sm:$0xf]
    %v2139 = vld [vmem:[%s7 + $0x58] sm:$0xf]
    %v2140 = vld [vmem:[%s7 + $0x5c] sm:$0xf]
    %v2141 = vld [vmem:[%s7 + $0x60] sm:$0xf]
    %v2142 = vld [vmem:[%s7 + $0x64] sm:$0xf]
    %v2143 = vld [vmem:[%s7 + $0x68] sm:$0xf]
    %v2144 = vld [vmem:[%s7 + $0x6c] sm:$0xf]
    %v2145 = vld [vmem:[%s7 + $0x70] sm:$0xf]
    %v2146 = vld [vmem:[%s7 + $0x74] sm:$0xf]
    %v2147 = vld [vmem:[%s7 + $0x78] sm:$0xf]
    %v2148 = vld [vmem:[%s7 + $0x7c] sm:$0xf]
    %v2149 = vld [vmem:[%s7 + $0x80] sm:$0xf]
    %v2150 = vld [vmem:[%s7 + $0x84] sm:$0xf]
    %v2151 = vld [vmem:[%s7 + $0x88] sm:$0xf]
    %v2152 = vld [vmem:[%s7 + $0x8c] sm:$0xf]
    %v2153 = vld [vmem:[%s7 + $0x90] sm:$0xf]
    %v2154 = vld [vmem:[%s7 + $0x94] sm:$0xf]
    %v2155 = vld [vmem:[%s7 + $0x98] sm:$0xf]
    %v2156 = vld [vmem:[%s7 + $0x9c] sm:$0xf]
    %v2157 = vld [vmem:[%s7 + $0xa0] sm:$0xf]
    %v2158 = vld [vmem:[%s7 + $0xa4] sm:$0xf]
    %v2159 = vld [vmem:[%s7 + $0xa8] sm:$0xf]
    %v2160 = vld [vmem:[%s7 + $0xac] sm:$0xf]
    %v2161 = vld [vmem:[%s7 + $0xb0] sm:$0xf]
    %v2162 = vld [vmem:[%s7 + $0xb4] sm:$0xf]
    %v2163 = vld [vmem:[%s7 + $0xb8] sm:$0xf]
    %v2164 = vld [vmem:[%s7 + $0xbc] sm:$0xf]
    %v2165 = vld [vmem:[%s7 + $0xc0] sm:$0xf]
    %v2166 = vld [vmem:[%s7 + $0xc4] sm:$0xf]
    %v2167 = vld [vmem:[%s7 + $0xc8] sm:$0xf]
    %v2168 = vld [vmem:[%s7 + $0xcc] sm:$0xf]
    %v2169 = vld [vmem:[%s7 + $0xd0] sm:$0xf]
    %v2170 = vld [vmem:[%s7 + $0xd4] sm:$0xf]
    %v2171 = vld [vmem:[%s7 + $0xd8] sm:$0xf]
    %v2172 = vld [vmem:[%s7 + $0xdc] sm:$0xf]
    %v2173 = vld [vmem:[%s7 + $0xe0] sm:$0xf]
    %v2174 = vld [vmem:[%s7 + $0xe4] sm:$0xf]
    %v2175 = vld [vmem:[%s7 + $0xe8] sm:$0xf]
    %v2176 = vld [vmem:[%s7 + $0xec] sm:$0xf]
    %v2177 = vld [vmem:[%s7 + $0xf0] sm:$0xf]
    %v2178 = vld [vmem:[%s7 + $0xf4] sm:$0xf]
    %v2179 = vld [vmem:[%s7 + $0xf8] sm:$0xf]
    %v2180 = vld [vmem:[%s7 + $0xfc] sm:$0xf]
    %v2181 = vld [vmem:[%s7 + $0x100] sm:$0xf]
    %v2182 = vld [vmem:[%s7 + $0x104] sm:$0xf]
    %v2183 = vld [vmem:[%s7 + $0x108] sm:$0xf]
    %v2184 = vld [vmem:[%s7 + $0x10c] sm:$0xf]
    %v2185 = vld [vmem:[%s7 + $0x110] sm:$0xf]
    %v2186 = vld [vmem:[%s7 + $0x114] sm:$0xf]
    %v2187 = vld [vmem:[%s7 + $0x118] sm:$0xf]
    %v2188 = vld [vmem:[%s7 + $0x11c] sm:$0xf]
    %v2189 = vunpack.c.l.b16 %v2062
    %v2190 = vunpack.c.l.b16 %v2066
    %v2191 = vunpack.c.l.b16 %v2070
    %v2192 = vunpack.c.l.b16 %v2074
    %v2193 = vpack.c.b16 %v2190, %v2189
    %v2194 = vpack.c.b16 %v2192, %v2191
    %v2203 = vunpack.c.l.b16 %v2125
    %v2204 = vunpack.c.l.b16 %v2126
    %v2205 = vunpack.c.l.b16 %v2127
    %v2206 = vunpack.c.l.b16 %v2128
    %v2207 = vunpack.c.l.b16 %v2129
    %v2208 = vunpack.c.l.b16 %v2130
    %v2209 = vunpack.c.l.b16 %v2131
    %v2210 = vunpack.c.l.b16 %v2132
    %v2211 = vpack.c.b16 %v2204, %v2203
    %v2212 = vpack.c.b16 %v2206, %v2205
    %v2213 = vpack.c.b16 %v2208, %v2207
    %v2214 = vpack.c.b16 %v2210, %v2209
    %v2220 = vsel %vm66, %v2193, 0
    %v2223 = vsel %vm66, %v2194, 0
    %2225 = vmatprep.subr.bf16.mxu0 0
    %2226 = vmatpush1.bf16.msra.mxu0 %v2211
    %2227 = vmatprep.subr.bf16.mxu0 0
    %2228 = vmatpush1.bf16.msra.mxu0 %v2212
    %2229 = vmatprep.subr.bf16.mxu0 0
    %2230 = vmatpush1.bf16.msra.mxu0 %v2213
    %2231 = vmatprep.subr.bf16.mxu0 0
    %2232 = vmatpush1.bf16.msra.mxu0 %v2214
    %2233 = vmatprep.subr.bf16.mxu0 0
    %2234 = vmatpush1.bf16.msra.mxu0 0
    %2235 = vmatprep.subr.bf16.mxu0 0
    %2236 = vmatpush1.bf16.msra.mxu0 0
    %2237 = vmatprep.subr.bf16.mxu0 0
    %2238 = vmatpush1.bf16.msra.mxu0 0
    %2239 = vmatprep.subr.bf16.mxu0 0
    %2240 = vmatpush1.bf16.msra.mxu0 0
    %2241 = vmatprep.subr.bf16.mxu0 0
    %2242 = vmatpush1.bf16.msra.mxu0 0
    %2243 = vmatprep.subr.bf16.mxu0 0
    %2244 = vmatpush1.bf16.msra.mxu0 0
    %2245 = vmatprep.subr.bf16.mxu0 0
    %2246 = vmatpush1.bf16.msra.mxu0 0
    %2247 = vmatprep.subr.bf16.mxu0 0
    %2248 = vmatpush1.bf16.msra.mxu0 0
    %2249 = vmatprep.subr.bf16.mxu0 0
    %2250 = vmatpush1.bf16.msra.mxu0 0
    %2251 = vmatprep.subr.bf16.mxu0 0
    %2252 = vmatpush1.bf16.msra.mxu0 0
    %2253 = vmatprep.subr.bf16.mxu0 0
    %2254 = vmatpush1.bf16.msra.mxu0 0
    %2255 = vmatprep.subr.bf16.mxu0 0
    %2256 = vmatpush1.bf16.msra.mxu0 0
    %2257 = vmatprep.mubr.bf16.mxu0 0
    %2258 = vmatmul.mubr.bf16.gmra.mrb[0].mxu0 %v2220
    %v2259 = vpop.f32.mrb[0].mxu0
    %v2260 = vadd.f32 0.0, %v2259
    %v2261 = vpop.f32.mrb[0].mxu0
    %v2262 = vpop.f32.mrb[0].mxu0
    %v2263 = vadd.f32 0.0, %v2262
    %v2264 = vpop.f32.mrb[0].mxu0
    %2265 = vmatprep.mubr.bf16.mxu0 0
    %2266 = vmatmul.mubr.bf16.gmra.mrb[0].mxu0 %v2223
    %v2267 = vpop.f32.mrb[0].mxu0
    %v2268 = vadd.f32 0.0, %v2267
    %v2269 = vpop.f32.mrb[0].mxu0
    %v2270 = vpop.f32.mrb[0].mxu0
    %v2271 = vadd.f32 0.0, %v2270
    %v2272 = vpop.f32.mrb[0].mxu0
    %2273 = vdwg.mxu0
    %v2274 = vpack.c.b16 %v2045, %v2043
    %v2275 = vpack.c.b16 %v2049, %v2047
    %v2284 = vunpack.c.l.b16 %v2117
    %v2285 = vunpack.c.l.b16 %v2118
    %v2286 = vunpack.c.l.b16 %v2119
    %v2287 = vunpack.c.l.b16 %v2120
    %v2288 = vunpack.c.l.b16 %v2121
    %v2289 = vunpack.c.l.b16 %v2122
    %v2290 = vunpack.c.l.b16 %v2123
    %v2291 = vunpack.c.l.b16 %v2124
    %v2292 = vpack.c.b16 %v2285, %v2284
    %v2293 = vpack.c.b16 %v2287, %v2286
    %v2294 = vpack.c.b16 %v2289, %v2288
    %v2295 = vpack.c.b16 %v2291, %v2290
    %v2301 = vsel %vm66, %v2274, 0
    %v2304 = vsel %vm66, %v2275, 0
    %2306 = vmatprep.subr.bf16.mxu0 0
    %2307 = vmatpush1.bf16.msra.mxu0 %v2292
    %2308 = vmatprep.subr.bf16.mxu0 0
    %2309 = vmatpush1.bf16.msra.mxu0 %v2293
    %2310 = vmatprep.subr.bf16.mxu0 0
    %2311 = vmatpush1.bf16.msra.mxu0 %v2294
    %2312 = vmatprep.subr.bf16.mxu0 0
    %2313 = vmatpush1.bf16.msra.mxu0 %v2295
    %2314 = vmatprep.subr.bf16.mxu0 0
    %2315 = vmatpush1.bf16.msra.mxu0 0
    %2316 = vmatprep.subr.bf16.mxu0 0
    %2317 = vmatpush1.bf16.msra.mxu0 0
    %2318 = vmatprep.subr.bf16.mxu0 0
    %2319 = vmatpush1.bf16.msra.mxu0 0
    %2320 = vmatprep.subr.bf16.mxu0 0
    %2321 = vmatpush1.bf16.msra.mxu0 0
    %2322 = vmatprep.subr.bf16.mxu0 0
    %2323 = vmatpush1.bf16.msra.mxu0 0
    %2324 = vmatprep.subr.bf16.mxu0 0
    %2325 = vmatpush1.bf16.msra.mxu0 0
    %2326 = vmatprep.subr.bf16.mxu0 0
    %2327 = vmatpush1.bf16.msra.mxu0 0
    %2328 = vmatprep.subr.bf16.mxu0 0
    %2329 = vmatpush1.bf16.msra.mxu0 0
    %2330 = vmatprep.subr.bf16.mxu0 0
    %2331 = vmatpush1.bf16.msra.mxu0 0
    %2332 = vmatprep.subr.bf16.mxu0 0
    %2333 = vmatpush1.bf16.msra.mxu0 0
    %2334 = vmatprep.subr.bf16.mxu0 0
    %2335 = vmatpush1.bf16.msra.mxu0 0
    %2336 = vmatprep.subr.bf16.mxu0 0
    %2337 = vmatpush1.bf16.msra.mxu0 0
    %2338 = vmatprep.mubr.bf16.mxu0 0
    %2339 = vmatmul.mubr.bf16.gmra.mrb[0].mxu0 %v2301
    %v2340 = vpop.f32.mrb[0].mxu0
    %v2341 = vadd.f32 %v2260, %v2340
    %v2342 = vpop.f32.mrb[0].mxu0
    %v2343 = vpop.f32.mrb[0].mxu0
    %v2344 = vadd.f32 %v2263, %v2343
    %v2345 = vpop.f32.mrb[0].mxu0
    %2346 = vmatprep.mubr.bf16.mxu0 0
    %2347 = vmatmul.mubr.bf16.gmra.mrb[0].mxu0 %v2304
    %v2348 = vpop.f32.mrb[0].mxu0
    %v2349 = vadd.f32 %v2268, %v2348
    %v2350 = vpop.f32.mrb[0].mxu0
    %v2351 = vpop.f32.mrb[0].mxu0
    %v2352 = vadd.f32 %v2271, %v2351
    %v2353 = vpop.f32.mrb[0].mxu0
    %2354 = vdwg.mxu0
    %v2355 = vunpack.c.l.b16 %v2078
    %v2356 = vunpack.c.l.b16 %v2082
    %v2357 = vunpack.c.l.b16 %v2086
    %v2358 = vunpack.c.l.b16 %v2090
    %v2359 = vpack.c.b16 %v2356, %v2355
    %v2360 = vpack.c.b16 %v2358, %v2357
    %v2369 = vunpack.c.l.b16 %v2133
    %v2370 = vunpack.c.l.b16 %v2134
    %v2371 = vunpack.c.l.b16 %v2135
    %v2372 = vunpack.c.l.b16 %v2136
    %v2373 = vunpack.c.l.b16 %v2137
    %v2374 = vunpack.c.l.b16 %v2138
    %v2375 = vunpack.c.l.b16 %v2139
    %v2376 = vunpack.c.l.b16 %v2140
    %v2377 = vpack.c.b16 %v2370, %v2369
    %v2378 = vpack.c.b16 %v2372, %v2371
    %v2379 = vpack.c.b16 %v2374, %v2373
    %v2380 = vpack.c.b16 %v2376, %v2375
    %v2386 = vsel %vm66, %v2359, 0
    %v2389 = vsel %vm66, %v2360, 0
    %2391 = vmatprep.subr.bf16.mxu0 0
    %2392 = vmatpush1.bf16.msra.mxu0 %v2377
    %2393 = vmatprep.subr.bf16.mxu0 0
    %2394 = vmatpush1.bf16.msra.mxu0 %v2378
    %2395 = vmatprep.subr.bf16.mxu0 0
    %2396 = vmatpush1.bf16.msra.mxu0 %v2379
    %2397 = vmatprep.subr.bf16.mxu0 0
    %2398 = vmatpush1.bf16.msra.mxu0 %v2380
    %2399 = vmatprep.subr.bf16.mxu0 0
    %2400 = vmatpush1.bf16.msra.mxu0 0
    %2401 = vmatprep.subr.bf16.mxu0 0
    %2402 = vmatpush1.bf16.msra.mxu0 0
    %2403 = vmatprep.subr.bf16.mxu0 0
    %2404 = vmatpush1.bf16.msra.mxu0 0
    %2405 = vmatprep.subr.bf16.mxu0 0
    %2406 = vmatpush1.bf16.msra.mxu0 0
    %2407 = vmatprep.subr.bf16.mxu0 0
    %2408 = vmatpush1.bf16.msra.mxu0 0
    %2409 = vmatprep.subr.bf16.mxu0 0
    %2410 = vmatpush1.bf16.msra.mxu0 0
    %2411 = vmatprep.subr.bf16.mxu0 0
    %2412 = vmatpush1.bf16.msra.mxu0 0
    %2413 = vmatprep.subr.bf16.mxu0 0
    %2414 = vmatpush1.bf16.msra.mxu0 0
    %2415 = vmatprep.subr.bf16.mxu0 0
    %2416 = vmatpush1.bf16.msra.mxu0 0
    %2417 = vmatprep.subr.bf16.mxu0 0
    %2418 = vmatpush1.bf16.msra.mxu0 0
    %2419 = vmatprep.subr.bf16.mxu0 0
    %2420 = vmatpush1.bf16.msra.mxu0 0
    %2421 = vmatprep.subr.bf16.mxu0 0
    %2422 = vmatpush1.bf16.msra.mxu0 0
    %2423 = vmatprep.mubr.bf16.mxu0 0
    %2424 = vmatmul.mubr.bf16.gmra.mrb[0].mxu0 %v2386
    %v2425 = vpop.f32.mrb[0].mxu0
    %v2426 = vadd.f32 0.0, %v2425
    %v2427 = vpop.f32.mrb[0].mxu0
    %v2428 = vpop.f32.mrb[0].mxu0
    %v2429 = vadd.f32 0.0, %v2428
    %v2430 = vpop.f32.mrb[0].mxu0
    %2431 = vmatprep.mubr.bf16.mxu0 0
    %2432 = vmatmul.mubr.bf16.gmra.mrb[0].mxu0 %v2389
    %v2433 = vpop.f32.mrb[0].mxu0
    %v2434 = vadd.f32 0.0, %v2433
    %v2435 = vpop.f32.mrb[0].mxu0
    %v2436 = vpop.f32.mrb[0].mxu0
    %v2437 = vadd.f32 0.0, %v2436
    %v2438 = vpop.f32.mrb[0].mxu0
    %2439 = vdwg.mxu0
    %v2440 = vadd.f32 %v2341, %v2426
    %v2441 = vadd.f32 %v2344, %v2429
    %v2442 = vadd.f32 %v2349, %v2434
    %v2443 = vadd.f32 %v2352, %v2437
    %v2444 = vpack.c.b16 %v2047, %v2045
    %v2445 = vpack.c.b16 %v2092, %v2049
    %v2454 = vunpack.c.l.b16 %v2141
    %v2455 = vunpack.c.l.b16 %v2142
    %v2456 = vunpack.c.l.b16 %v2143
    %v2457 = vunpack.c.l.b16 %v2144
    %v2458 = vunpack.c.l.b16 %v2145
    %v2459 = vunpack.c.l.b16 %v2146
    %v2460 = vunpack.c.l.b16 %v2147
    %v2461 = vunpack.c.l.b16 %v2148
    %v2462 = vpack.c.b16 %v2455, %v2454
    %v2463 = vpack.c.b16 %v2457, %v2456
    %v2464 = vpack.c.b16 %v2459, %v2458
    %v2465 = vpack.c.b16 %v2461, %v2460
    %v2471 = vsel %vm66, %v2444, 0
    %v2474 = vsel %vm66, %v2445, 0
    %2476 = vmatprep.subr.bf16.mxu0 0
    %2477 = vmatpush1.bf16.msra.mxu0 %v2462
    %2478 = vmatprep.subr.bf16.mxu0 0
    %2479 = vmatpush1.bf16.msra.mxu0 %v2463
    %2480 = vmatprep.subr.bf16.mxu0 0
    %2481 = vmatpush1.bf16.msra.mxu0 %v2464
    %2482 = vmatprep.subr.bf16.mxu0 0
    %2483 = vmatpush1.bf16.msra.mxu0 %v2465
    %2484 = vmatprep.subr.bf16.mxu0 0
    %2485 = vmatpush1.bf16.msra.mxu0 0
    %2486 = vmatprep.subr.bf16.mxu0 0
    %2487 = vmatpush1.bf16.msra.mxu0 0
    %2488 = vmatprep.subr.bf16.mxu0 0
    %2489 = vmatpush1.bf16.msra.mxu0 0
    %2490 = vmatprep.subr.bf16.mxu0 0
    %2491 = vmatpush1.bf16.msra.mxu0 0
    %2492 = vmatprep.subr.bf16.mxu0 0
    %2493 = vmatpush1.bf16.msra.mxu0 0
    %2494 = vmatprep.subr.bf16.mxu0 0
    %2495 = vmatpush1.bf16.msra.mxu0 0
    %2496 = vmatprep.subr.bf16.mxu0 0
    %2497 = vmatpush1.bf16.msra.mxu0 0
    %2498 = vmatprep.subr.bf16.mxu0 0
    %2499 = vmatpush1.bf16.msra.mxu0 0
    %2500 = vmatprep.subr.bf16.mxu0 0
    %2501 = vmatpush1.bf16.msra.mxu0 0
    %2502 = vmatprep.subr.bf16.mxu0 0
    %2503 = vmatpush1.bf16.msra.mxu0 0
    %2504 = vmatprep.subr.bf16.mxu0 0
    %2505 = vmatpush1.bf16.msra.mxu0 0
    %2506 = vmatprep.subr.bf16.mxu0 0
    %2507 = vmatpush1.bf16.msra.mxu0 0
    %2508 = vmatprep.mubr.bf16.mxu0 0
    %2509 = vmatmul.mubr.bf16.gmra.mrb[0].mxu0 %v2471
    %v2510 = vpop.f32.mrb[0].mxu0
    %v2511 = vadd.f32 0.0, %v2510
    %v2512 = vpop.f32.mrb[0].mxu0
    %v2513 = vpop.f32.mrb[0].mxu0
    %v2514 = vadd.f32 0.0, %v2513
    %v2515 = vpop.f32.mrb[0].mxu0
    %2516 = vmatprep.mubr.bf16.mxu0 0
    %2517 = vmatmul.mubr.bf16.gmra.mrb[0].mxu0 %v2474
    %v2518 = vpop.f32.mrb[0].mxu0
    %v2519 = vadd.f32 0.0, %v2518
    %v2520 = vpop.f32.mrb[0].mxu0
    %v2521 = vpop.f32.mrb[0].mxu0
    %v2522 = vadd.f32 0.0, %v2521
    %v2523 = vpop.f32.mrb[0].mxu0
    %2524 = vdwg.mxu0
    %v2525 = vadd.f32 %v2440, %v2511
    %v2526 = vadd.f32 %v2441, %v2514
    %v2527 = vadd.f32 %v2442, %v2519
    %v2528 = vadd.f32 %v2443, %v2522
    %v2529 = vunpack.c.l.b16 %v2099
    %v2530 = vpack.c.b16 %v2191, %v2190
    %v2531 = vpack.c.b16 %v2529, %v2192
    %v2540 = vunpack.c.l.b16 %v2149
    %v2541 = vunpack.c.l.b16 %v2150
    %v2542 = vunpack.c.l.b16 %v2151
    %v2543 = vunpack.c.l.b16 %v2152
    %v2544 = vunpack.c.l.b16 %v2153
    %v2545 = vunpack.c.l.b16 %v2154
    %v2546 = vunpack.c.l.b16 %v2155
    %v2547 = vunpack.c.l.b16 %v2156
    %v2548 = vpack.c.b16 %v2541, %v2540
    %v2549 = vpack.c.b16 %v2543, %v2542
    %v2550 = vpack.c.b16 %v2545, %v2544
    %v2551 = vpack.c.b16 %v2547, %v2546
    %v2557 = vsel %vm66, %v2530, 0
    %v2560 = vsel %vm66, %v2531, 0
    %2562 = vmatprep.subr.bf16.mxu0 0
    %2563 = vmatpush1.bf16.msra.mxu0 %v2548
    %2564 = vmatprep.subr.bf16.mxu0 0
    %2565 = vmatpush1.bf16.msra.mxu0 %v2549
    %2566 = vmatprep.subr.bf16.mxu0 0
    %2567 = vmatpush1.bf16.msra.mxu0 %v2550
    %2568 = vmatprep.subr.bf16.mxu0 0
    %2569 = vmatpush1.bf16.msra.mxu0 %v2551
    %2570 = vmatprep.subr.bf16.mxu0 0
    %2571 = vmatpush1.bf16.msra.mxu0 0
    %2572 = vmatprep.subr.bf16.mxu0 0
    %2573 = vmatpush1.bf16.msra.mxu0 0
    %2574 = vmatprep.subr.bf16.mxu0 0
    %2575 = vmatpush1.bf16.msra.mxu0 0
    %2576 = vmatprep.subr.bf16.mxu0 0
    %2577 = vmatpush1.bf16.msra.mxu0 0
    %2578 = vmatprep.subr.bf16.mxu0 0
    %2579 = vmatpush1.bf16.msra.mxu0 0
    %2580 = vmatprep.subr.bf16.mxu0 0
    %2581 = vmatpush1.bf16.msra.mxu0 0
    %2582 = vmatprep.subr.bf16.mxu0 0
    %2583 = vmatpush1.bf16.msra.mxu0 0
    %2584 = vmatprep.subr.bf16.mxu0 0
    %2585 = vmatpush1.bf16.msra.mxu0 0
    %2586 = vmatprep.subr.bf16.mxu0 0
    %2587 = vmatpush1.bf16.msra.mxu0 0
    %2588 = vmatprep.subr.bf16.mxu0 0
    %2589 = vmatpush1.bf16.msra.mxu0 0
    %2590 = vmatprep.subr.bf16.mxu0 0
    %2591 = vmatpush1.bf16.msra.mxu0 0
    %2592 = vmatprep.subr.bf16.mxu0 0
    %2593 = vmatpush1.bf16.msra.mxu0 0
    %2594 = vmatprep.mubr.bf16.mxu0 0
    %2595 = vmatmul.mubr.bf16.gmra.mrb[0].mxu0 %v2557
    %v2596 = vpop.f32.mrb[0].mxu0
    %v2597 = vadd.f32 0.0, %v2596
    %v2598 = vpop.f32.mrb[0].mxu0
    %v2599 = vpop.f32.mrb[0].mxu0
    %v2600 = vadd.f32 0.0, %v2599
    %v2601 = vpop.f32.mrb[0].mxu0
    %2602 = vmatprep.mubr.bf16.mxu0 0
    %2603 = vmatmul.mubr.bf16.gmra.mrb[0].mxu0 %v2560
    %v2604 = vpop.f32.mrb[0].mxu0
    %v2605 = vadd.f32 0.0, %v2604
    %v2606 = vpop.f32.mrb[0].mxu0
    %v2607 = vpop.f32.mrb[0].mxu0
    %v2608 = vadd.f32 0.0, %v2607
    %v2609 = vpop.f32.mrb[0].mxu0
    %2610 = vdwg.mxu0
    %v2611 = vadd.f32 %v2525, %v2597
    %v2612 = vadd.f32 %v2526, %v2600
    %v2613 = vadd.f32 %v2527, %v2605
    %v2614 = vadd.f32 %v2528, %v2608
    %v2615 = vunpack.c.l.b16 %v2103
    %v2616 = vpack.c.b16 %v2357, %v2356
    %v2617 = vpack.c.b16 %v2615, %v2358
    %v2626 = vunpack.c.l.b16 %v2157
    %v2627 = vunpack.c.l.b16 %v2158
    %v2628 = vunpack.c.l.b16 %v2159
    %v2629 = vunpack.c.l.b16 %v2160
    %v2630 = vunpack.c.l.b16 %v2161
    %v2631 = vunpack.c.l.b16 %v2162
    %v2632 = vunpack.c.l.b16 %v2163
    %v2633 = vunpack.c.l.b16 %v2164
    %v2634 = vpack.c.b16 %v2627, %v2626
    %v2635 = vpack.c.b16 %v2629, %v2628
    %v2636 = vpack.c.b16 %v2631, %v2630
    %v2637 = vpack.c.b16 %v2633, %v2632
    %v2643 = vsel %vm66, %v2616, 0
    %v2646 = vsel %vm66, %v2617, 0
    %2648 = vmatprep.subr.bf16.mxu0 0
    %2649 = vmatpush1.bf16.msra.mxu0 %v2634
    %2650 = vmatprep.subr.bf16.mxu0 0
    %2651 = vmatpush1.bf16.msra.mxu0 %v2635
    %2652 = vmatprep.subr.bf16.mxu0 0
    %2653 = vmatpush1.bf16.msra.mxu0 %v2636
    %2654 = vmatprep.subr.bf16.mxu0 0
    %2655 = vmatpush1.bf16.msra.mxu0 %v2637
    %2656 = vmatprep.subr.bf16.mxu0 0
    %2657 = vmatpush1.bf16.msra.mxu0 0
    %2658 = vmatprep.subr.bf16.mxu0 0
    %2659 = vmatpush1.bf16.msra.mxu0 0
    %2660 = vmatprep.subr.bf16.mxu0 0
    %2661 = vmatpush1.bf16.msra.mxu0 0
    %2662 = vmatprep.subr.bf16.mxu0 0
    %2663 = vmatpush1.bf16.msra.mxu0 0
    %2664 = vmatprep.subr.bf16.mxu0 0
    %2665 = vmatpush1.bf16.msra.mxu0 0
    %2666 = vmatprep.subr.bf16.mxu0 0
    %2667 = vmatpush1.bf16.msra.mxu0 0
    %2668 = vmatprep.subr.bf16.mxu0 0
    %2669 = vmatpush1.bf16.msra.mxu0 0
    %2670 = vmatprep.subr.bf16.mxu0 0
    %2671 = vmatpush1.bf16.msra.mxu0 0
    %2672 = vmatprep.subr.bf16.mxu0 0
    %2673 = vmatpush1.bf16.msra.mxu0 0
    %2674 = vmatprep.subr.bf16.mxu0 0
    %2675 = vmatpush1.bf16.msra.mxu0 0
    %2676 = vmatprep.subr.bf16.mxu0 0
    %2677 = vmatpush1.bf16.msra.mxu0 0
    %2678 = vmatprep.subr.bf16.mxu0 0
    %2679 = vmatpush1.bf16.msra.mxu0 0
    %2680 = vmatprep.mubr.bf16.mxu0 0
    %2681 = vmatmul.mubr.bf16.gmra.mrb[0].mxu0 %v2643
    %v2682 = vpop.f32.mrb[0].mxu0
    %v2683 = vadd.f32 0.0, %v2682
    %v2684 = vpop.f32.mrb[0].mxu0
    %v2685 = vpop.f32.mrb[0].mxu0
    %v2686 = vadd.f32 0.0, %v2685
    %v2687 = vpop.f32.mrb[0].mxu0
    %2688 = vmatprep.mubr.bf16.mxu0 0
    %2689 = vmatmul.mubr.bf16.gmra.mrb[0].mxu0 %v2646
    %v2690 = vpop.f32.mrb[0].mxu0
    %v2691 = vadd.f32 0.0, %v2690
    %v2692 = vpop.f32.mrb[0].mxu0
    %v2693 = vpop.f32.mrb[0].mxu0
    %v2694 = vadd.f32 0.0, %v2693
    %v2695 = vpop.f32.mrb[0].mxu0
    %2696 = vdwg.mxu0
    %v2697 = vadd.f32 %v2611, %v2683
    %v2698 = vadd.f32 %v2612, %v2686
    %v2699 = vadd.f32 %v2613, %v2691
    %v2700 = vadd.f32 %v2614, %v2694
    %v2701 = vpack.c.b16 %v2105, %v2092
    %v2710 = vunpack.c.l.b16 %v2165
    %v2711 = vunpack.c.l.b16 %v2166
    %v2712 = vunpack.c.l.b16 %v2167
    %v2713 = vunpack.c.l.b16 %v2168
    %v2714 = vunpack.c.l.b16 %v2169
    %v2715 = vunpack.c.l.b16 %v2170
    %v2716 = vunpack.c.l.b16 %v2171
    %v2717 = vunpack.c.l.b16 %v2172
    %v2718 = vpack.c.b16 %v2711, %v2710
    %v2719 = vpack.c.b16 %v2713, %v2712
    %v2720 = vpack.c.b16 %v2715, %v2714
    %v2721 = vpack.c.b16 %v2717, %v2716
    %v2727 = vsel %vm66, %v2701, 0
    %2729 = vmatprep.subr.bf16.mxu0 0
    %2730 = vmatpush1.bf16.msra.mxu0 %v2718
    %2731 = vmatprep.subr.bf16.mxu0 0
    %2732 = vmatpush1.bf16.msra.mxu0 %v2719
    %2733 = vmatprep.subr.bf16.mxu0 0
    %2734 = vmatpush1.bf16.msra.mxu0 %v2720
    %2735 = vmatprep.subr.bf16.mxu0 0
    %2736 = vmatpush1.bf16.msra.mxu0 %v2721
    %2737 = vmatprep.subr.bf16.mxu0 0
    %2738 = vmatpush1.bf16.msra.mxu0 0
    %2739 = vmatprep.subr.bf16.mxu0 0
    %2740 = vmatpush1.bf16.msra.mxu0 0
    %2741 = vmatprep.subr.bf16.mxu0 0
    %2742 = vmatpush1.bf16.msra.mxu0 0
    %2743 = vmatprep.subr.bf16.mxu0 0
    %2744 = vmatpush1.bf16.msra.mxu0 0
    %2745 = vmatprep.subr.bf16.mxu0 0
    %2746 = vmatpush1.bf16.msra.mxu0 0
    %2747 = vmatprep.subr.bf16.mxu0 0
    %2748 = vmatpush1.bf16.msra.mxu0 0
    %2749 = vmatprep.subr.bf16.mxu0 0
    %2750 = vmatpush1.bf16.msra.mxu0 0
    %2751 = vmatprep.subr.bf16.mxu0 0
    %2752 = vmatpush1.bf16.msra.mxu0 0
    %2753 = vmatprep.subr.bf16.mxu0 0
    %2754 = vmatpush1.bf16.msra.mxu0 0
    %2755 = vmatprep.subr.bf16.mxu0 0
    %2756 = vmatpush1.bf16.msra.mxu0 0
    %2757 = vmatprep.subr.bf16.mxu0 0
    %2758 = vmatpush1.bf16.msra.mxu0 0
    %2759 = vmatprep.subr.bf16.mxu0 0
    %2760 = vmatpush1.bf16.msra.mxu0 0
    %2761 = vmatprep.mubr.bf16.mxu0 0
    %2762 = vmatmul.mubr.bf16.gmra.mrb[0].mxu0 %v2304
    %v2763 = vpop.f32.mrb[0].mxu0
    %v2764 = vadd.f32 0.0, %v2763
    %v2765 = vpop.f32.mrb[0].mxu0
    %v2766 = vpop.f32.mrb[0].mxu0
    %v2767 = vadd.f32 0.0, %v2766
    %v2768 = vpop.f32.mrb[0].mxu0
    %2769 = vmatprep.mubr.bf16.mxu0 0
    %2770 = vmatmul.mubr.bf16.gmra.mrb[0].mxu0 %v2727
    %v2771 = vpop.f32.mrb[0].mxu0
    %v2772 = vadd.f32 0.0, %v2771
    %v2773 = vpop.f32.mrb[0].mxu0
    %v2774 = vpop.f32.mrb[0].mxu0
    %v2775 = vadd.f32 0.0, %v2774
    %v2776 = vpop.f32.mrb[0].mxu0
    %2777 = vdwg.mxu0
    %v2778 = vadd.f32 %v2697, %v2764
    %v2779 = vadd.f32 %v2698, %v2767
    %v2780 = vadd.f32 %v2699, %v2772
    %v2781 = vadd.f32 %v2700, %v2775
    %v2782 = vunpack.c.l.b16 %v2112
    %v2783 = vpack.c.b16 %v2782, %v2529
    %v2792 = vunpack.c.l.b16 %v2173
    %v2793 = vunpack.c.l.b16 %v2174
    %v2794 = vunpack.c.l.b16 %v2175
    %v2795 = vunpack.c.l.b16 %v2176
    %v2796 = vunpack.c.l.b16 %v2177
    %v2797 = vunpack.c.l.b16 %v2178
    %v2798 = vunpack.c.l.b16 %v2179
    %v2799 = vunpack.c.l.b16 %v2180
    %v2800 = vpack.c.b16 %v2793, %v2792
    %v2801 = vpack.c.b16 %v2795, %v2794
    %v2802 = vpack.c.b16 %v2797, %v2796
    %v2803 = vpack.c.b16 %v2799, %v2798
    %v2809 = vsel %vm66, %v2783, 0
    %2811 = vmatprep.subr.bf16.mxu0 0
    %2812 = vmatpush1.bf16.msra.mxu0 %v2800
    %2813 = vmatprep.subr.bf16.mxu0 0
    %2814 = vmatpush1.bf16.msra.mxu0 %v2801
    %2815 = vmatprep.subr.bf16.mxu0 0
    %2816 = vmatpush1.bf16.msra.mxu0 %v2802
    %2817 = vmatprep.subr.bf16.mxu0 0
    %2818 = vmatpush1.bf16.msra.mxu0 %v2803
    %2819 = vmatprep.subr.bf16.mxu0 0
    %2820 = vmatpush1.bf16.msra.mxu0 0
    %2821 = vmatprep.subr.bf16.mxu0 0
    %2822 = vmatpush1.bf16.msra.mxu0 0
    %2823 = vmatprep.subr.bf16.mxu0 0
    %2824 = vmatpush1.bf16.msra.mxu0 0
    %2825 = vmatprep.subr.bf16.mxu0 0
    %2826 = vmatpush1.bf16.msra.mxu0 0
    %2827 = vmatprep.subr.bf16.mxu0 0
    %2828 = vmatpush1.bf16.msra.mxu0 0
    %2829 = vmatprep.subr.bf16.mxu0 0
    %2830 = vmatpush1.bf16.msra.mxu0 0
    %2831 = vmatprep.subr.bf16.mxu0 0
    %2832 = vmatpush1.bf16.msra.mxu0 0
    %2833 = vmatprep.subr.bf16.mxu0 0
    %2834 = vmatpush1.bf16.msra.mxu0 0
    %2835 = vmatprep.subr.bf16.mxu0 0
    %2836 = vmatpush1.bf16.msra.mxu0 0
    %2837 = vmatprep.subr.bf16.mxu0 0
    %2838 = vmatpush1.bf16.msra.mxu0 0
    %2839 = vmatprep.subr.bf16.mxu0 0
    %2840 = vmatpush1.bf16.msra.mxu0 0
    %2841 = vmatprep.subr.bf16.mxu0 0
    %2842 = vmatpush1.bf16.msra.mxu0 0
    %2843 = vmatprep.mubr.bf16.mxu0 0
    %2844 = vmatmul.mubr.bf16.gmra.mrb[0].mxu0 %v2223
    %v2845 = vpop.f32.mrb[0].mxu0
    %v2846 = vadd.f32 0.0, %v2845
    %v2847 = vpop.f32.mrb[0].mxu0
    %v2848 = vpop.f32.mrb[0].mxu0
    %v2849 = vadd.f32 0.0, %v2848
    %v2850 = vpop.f32.mrb[0].mxu0
    %2851 = vmatprep.mubr.bf16.mxu0 0
    %2852 = vmatmul.mubr.bf16.gmra.mrb[0].mxu0 %v2809
    %v2853 = vpop.f32.mrb[0].mxu0
    %v2854 = vadd.f32 0.0, %v2853
    %v2855 = vpop.f32.mrb[0].mxu0
    %v2856 = vpop.f32.mrb[0].mxu0
    %v2857 = vadd.f32 0.0, %v2856
    %v2858 = vpop.f32.mrb[0].mxu0
    %2859 = vdwg.mxu0
    %v2860 = vadd.f32 %v2778, %v2846
    %v2861 = vadd.f32 %v2779, %v2849
    %v2862 = vadd.f32 %v2780, %v2854
    %v2863 = vadd.f32 %v2781, %v2857
    %v2864 = vunpack.c.l.b16 %v2116
    %v2865 = vpack.c.b16 %v2864, %v2615
    %v2874 = vunpack.c.l.b16 %v2181
    %v2875 = vunpack.c.l.b16 %v2182
    %v2876 = vunpack.c.l.b16 %v2183
    %v2877 = vunpack.c.l.b16 %v2184
    %v2878 = vunpack.c.l.b16 %v2185
    %v2879 = vunpack.c.l.b16 %v2186
    %v2880 = vunpack.c.l.b16 %v2187
    %v2881 = vunpack.c.l.b16 %v2188
    %v2882 = vpack.c.b16 %v2875, %v2874
    %v2883 = vpack.c.b16 %v2877, %v2876
    %v2884 = vpack.c.b16 %v2879, %v2878
    %v2885 = vpack.c.b16 %v2881, %v2880
    %v2891 = vsel %vm66, %v2865, 0
    %2893 = vmatprep.subr.bf16.mxu0 0
    %2894 = vmatpush1.bf16.msra.mxu0 %v2882
    %2895 = vmatprep.subr.bf16.mxu0 0
    %2896 = vmatpush1.bf16.msra.mxu0 %v2883
    %2897 = vmatprep.subr.bf16.mxu0 0
    %2898 = vmatpush1.bf16.msra.mxu0 %v2884
    %2899 = vmatprep.subr.bf16.mxu0 0
    %2900 = vmatpush1.bf16.msra.mxu0 %v2885
    %2901 = vmatprep.subr.bf16.mxu0 0
    %2902 = vmatpush1.bf16.msra.mxu0 0
    %2903 = vmatprep.subr.bf16.mxu0 0
    %2904 = vmatpush1.bf16.msra.mxu0 0
    %2905 = vmatprep.subr.bf16.mxu0 0
    %2906 = vmatpush1.bf16.msra.mxu0 0
    %2907 = vmatprep.subr.bf16.mxu0 0
    %2908 = vmatpush1.bf16.msra.mxu0 0
    %2909 = vmatprep.subr.bf16.mxu0 0
    %2910 = vmatpush1.bf16.msra.mxu0 0
    %2911 = vmatprep.subr.bf16.mxu0 0
    %2912 = vmatpush1.bf16.msra.mxu0 0
    %2913 = vmatprep.subr.bf16.mxu0 0
    %2914 = vmatpush1.bf16.msra.mxu0 0
    %2915 = vmatprep.subr.bf16.mxu0 0
    %2916 = vmatpush1.bf16.msra.mxu0 0
    %2917 = vmatprep.subr.bf16.mxu0 0
    %2918 = vmatpush1.bf16.msra.mxu0 0
    %2919 = vmatprep.subr.bf16.mxu0 0
    %2920 = vmatpush1.bf16.msra.mxu0 0
    %2921 = vmatprep.subr.bf16.mxu0 0
    %2922 = vmatpush1.bf16.msra.mxu0 0
    %2923 = vmatprep.subr.bf16.mxu0 0
    %2924 = vmatpush1.bf16.msra.mxu0 0
    %2925 = vmatprep.mubr.bf16.mxu0 0
    %2926 = vmatmul.mubr.bf16.gmra.mrb[0].mxu0 %v2389
    %v2927 = vpop.f32.mrb[0].mxu0
    %v2928 = vadd.f32 0.0, %v2927
    %v2929 = vpop.f32.mrb[0].mxu0
    %v2930 = vpop.f32.mrb[0].mxu0
    %v2931 = vadd.f32 0.0, %v2930
    %v2932 = vpop.f32.mrb[0].mxu0
    %2933 = vmatprep.mubr.bf16.mxu0 0
    %2934 = vmatmul.mubr.bf16.gmra.mrb[0].mxu0 %v2891
    %v2935 = vpop.f32.mrb[0].mxu0
    %v2936 = vadd.f32 0.0, %v2935
    %v2937 = vpop.f32.mrb[0].mxu0
    %v2938 = vpop.f32.mrb[0].mxu0
    %v2939 = vadd.f32 0.0, %v2938
    %v2940 = vpop.f32.mrb[0].mxu0
    %2941 = vdwg.mxu0
    %v2942 = vadd.f32 %v2860, %v2928
    %v2943 = vadd.f32 %v2861, %v2931
    %v2944 = vadd.f32 %v2862, %v2936
    %v2945 = vadd.f32 %v2863, %v2939
    %v2946 = vld [vmem:[%s8] sm:$0x1]
    %v2948 = vlaneseq
    %v2949 = vshrl.u32 %v2948, 7
    %v2950 = vsub.s32 0, %v2949
    %v2951 = vrot.slane %v2946, %v2950
    %v2953 = vmul.f32 %v2942, %v2951
    %v2954 = vmul.f32 %v2943, %v2951
    %v2955 = vmul.f32 %v2944, %v2951
    %v2956 = vmul.f32 %v2945, %v2951
    %v2957 = vld [vmem:[%s9] sm:$0x1]
    %v2959 = vlaneseq
    %v2960 = vshrl.u32 %v2959, 7
    %v2961 = vsub.s32 0, %v2960
    %v2962 = vrot.slane %v2957, %v2961
    %v2964 = vadd.f32 %v2953, %v2962
    %v2965 = vadd.f32 %v2954, %v2962
    %v2966 = vadd.f32 %v2955, %v2962
    %v2967 = vadd.f32 %v2956, %v2962
    %v2968 = vmax.f32 %v2964, 0.0
    %v2969 = vmax.f32 %v2965, 0.0
    %v2970 = vmax.f32 %v2966, 0.0
    %v2971 = vmax.f32 %v2967, 0.0
    %s2972 = scalar_lea.vmem [#allocation4], 16
    %2973 = vst [vmem:[%s2972 + $0x2] sm:$0xff] %v2968
    %2974 = vst [vmem:[%s2972 + $0x12] sm:$0xff] %v2969
    %2975 = vst [vmem:[%s2972 + $0x22] sm:$0xff] %v2970
    %2976 = vst [vmem:[%s2972 + $0x32] sm:$0xff] %v2971
    %v2977 = vld [vmem:[#allocation4] sm:$0xff]
    %v2978 = vld [vmem:[#allocation4 + $0x8] sm:$0xf]
    %v2979 = vld [vmem:[#allocation4 + $0x10] sm:$0xff]
    %v2980 = vld [vmem:[#allocation4 + $0x18] sm:$0xf]
    %v2981 = vld [vmem:[#allocation4 + $0x20] sm:$0xff]
    %v2982 = vld [vmem:[#allocation4 + $0x28] sm:$0xf]
    %v2983 = vld [vmem:[#allocation4 + $0x30] sm:$0xff]
    %v2984 = vld [vmem:[#allocation4 + $0x38] sm:$0xf]
    %v2985 = vld [vmem:[#allocation4 + $0x40] sm:$0xff]
    %v2986 = vld [vmem:[#allocation4 + $0x48] sm:$0xf]
    %v2987 = vld [vmem:[#allocation4 + $0x50] sm:$0xff]
    %v2988 = vld [vmem:[#allocation4 + $0x58] sm:$0xf]
    %v2989 = vpack.c.bf16 %v2978, %v2977
    %v2990 = vpack.c.bf16 %v2980, %v2979
    %v2991 = vpack.c.bf16 %v2982, %v2981
    %v2992 = vpack.c.bf16 %v2984, %v2983
    %v2993 = vpack.c.bf16 %v2986, %v2985
    %v2994 = vpack.c.bf16 %v2988, %v2987
    %v2999 = vunpack.c.l.b16 %v2989
    %v3000 = vunpack.c.h.b16 %v2989
    %v3001 = vunpack.c.l.b16 %v2990
    %v3002 = vunpack.c.h.b16 %v2990
    %v3003 = vunpack.c.l.b16 %v2991
    %v3004 = vunpack.c.h.b16 %v2991
    %v3005 = vunpack.c.l.b16 %v2992
    %v3006 = vunpack.c.h.b16 %v2992
    %v3007 = vpack.c.b16 %v2999, %v2999
    %v3008 = vpack.c.b16 %v3000, %v3000
    %v3009 = vpack.c.b16 %v3001, %v3001
    %v3010 = vpack.c.b16 %v3002, %v3002
    %v3011 = vpack.c.b16 %v3003, %v3003
    %v3012 = vpack.c.b16 %v3004, %v3004
    %v3013 = vpack.c.b16 %v3005, %v3005
    %v3014 = vpack.c.b16 %v3006, %v3006
    %v3015 = vrot.slane %v3007, 5
    %v3016 = vrot.slane %v3015, 4
    %v3017 = vrot.slane %v3008, 5
    %v3018 = vsel %vm1100, %v3016, %v3017
    %v3019 = vrot.slane %v3009, 5
    %v3020 = vrot.slane %v3019, 4
    %v3021 = vrot.slane %v3010, 5
    %v3022 = vsel %vm1100, %v3020, %v3021
    %v3023 = vrot.slane %v3011, 5
    %v3024 = vrot.slane %v3023, 4
    %v3025 = vrot.slane %v3012, 5
    %v3026 = vsel %vm1100, %v3024, %v3025
    %v3027 = vrot.slane %v3013, 5
    %v3028 = vrot.slane %v3027, 4
    %v3029 = vrot.slane %v3014, 5
    %v3030 = vsel %vm1100, %v3028, %v3029
    %v3031 = vrot.slane %v3007, 6
    %v3032 = vrot.slane %v3031, 4
    %v3033 = vrot.slane %v3008, 6
    %v3034 = vsel %vm1119, %v3032, %v3033
    %v3035 = vrot.slane %v3009, 6
    %v3036 = vrot.slane %v3035, 4
    %v3037 = vrot.slane %v3010, 6
    %v3038 = vsel %vm1119, %v3036, %v3037
    %v3039 = vrot.slane %v3011, 6
    %v3040 = vrot.slane %v3039, 4
    %v3041 = vrot.slane %v3012, 6
    %v3042 = vsel %vm1119, %v3040, %v3041
    %v3043 = vrot.slane %v3013, 6
    %v3044 = vrot.slane %v3043, 4
    %v3045 = vrot.slane %v3014, 6
    %v3046 = vsel %vm1119, %v3044, %v3045
    %v3048 = vunpack.c.l.b16 %v2993
    %v3049 = vunpack.c.h.b16 %v2993
    %v3050 = vpack.c.b16 %v3048, %v3048
    %v3051 = vpack.c.b16 %v3049, %v3049
    %v3052 = vrot.slane %v3050, 5
    %v3053 = vrot.slane %v3052, 4
    %v3054 = vrot.slane %v3051, 5
    %v3055 = vsel %vm1100, %v3053, %v3054
    %v3056 = vrot.slane %v3050, 6
    %v3057 = vrot.slane %v3056, 4
    %v3058 = vrot.slane %v3051, 6
    %v3059 = vsel %vm1119, %v3057, %v3058
    %v3061 = vunpack.c.l.b16 %v2994
    %v3062 = vunpack.c.h.b16 %v2994
    %v3063 = vpack.c.b16 %v3061, %v3061
    %v3064 = vpack.c.b16 %v3062, %v3062
    %v3065 = vrot.slane %v3063, 5
    %v3066 = vrot.slane %v3065, 4
    %v3067 = vrot.slane %v3064, 5
    %v3068 = vsel %vm1100, %v3066, %v3067
    %v3069 = vrot.slane %v3063, 6
    %v3070 = vrot.slane %v3069, 4
    %v3071 = vrot.slane %v3064, 6
    %v3072 = vsel %vm1119, %v3070, %v3071
    %v3073 = vpack.c.b16 %v3001, %v2999
    %v3074 = vpack.c.b16 %v3005, %v3003
    %v3077 = vunpack.c.l.b16 %v3018
    %v3078 = vunpack.c.l.b16 %v3022
    %v3079 = vunpack.c.l.b16 %v3026
    %v3080 = vunpack.c.l.b16 %v3030
    %v3081 = vpack.c.b16 %v3078, %v3077
    %v3082 = vpack.c.b16 %v3080, %v3079
    %v3085 = vunpack.c.l.b16 %v3034
    %v3086 = vunpack.c.l.b16 %v3038
    %v3087 = vunpack.c.l.b16 %v3042
    %v3088 = vunpack.c.l.b16 %v3046
    %v3089 = vpack.c.b16 %v3086, %v3085
    %v3090 = vpack.c.b16 %v3088, %v3087
    %v3093 = vpack.c.b16 %v3003, %v3001
    %v3094 = vpack.c.b16 %v3048, %v3005
    %v3097 = vunpack.c.l.b16 %v3055
    %v3098 = vpack.c.b16 %v3079, %v3078
    %v3099 = vpack.c.b16 %v3097, %v3080
    %v3102 = vunpack.c.l.b16 %v3059
    %v3103 = vpack.c.b16 %v3087, %v3086
    %v3104 = vpack.c.b16 %v3102, %v3088
    %v3107 = vpack.c.b16 %v3061, %v3048
    %v3109 = vunpack.c.l.b16 %v3068
    %v3110 = vpack.c.b16 %v3109, %v3097
    %v3112 = vunpack.c.l.b16 %v3072
    %v3113 = vpack.c.b16 %v3112, %v3102
    %v3115 = vld [vmem:[%s10] sm:$0xf]
    %v3116 = vld [vmem:[%s10 + $0x4] sm:$0xf]
    %v3117 = vld [vmem:[%s10 + $0x8] sm:$0xf]
    %v3118 = vld [vmem:[%s10 + $0xc] sm:$0xf]
    %v3119 = vld [vmem:[%s10 + $0x10] sm:$0xf]
    %v3120 = vld [vmem:[%s10 + $0x14] sm:$0xf]
    %v3121 = vld [vmem:[%s10 + $0x18] sm:$0xf]
    %v3122 = vld [vmem:[%s10 + $0x1c] sm:$0xf]
    %v3123 = vld [vmem:[%s10 + $0x20] sm:$0xf]
    %v3124 = vld [vmem:[%s10 + $0x24] sm:$0xf]
    %v3125 = vld [vmem:[%s10 + $0x28] sm:$0xf]
    %v3126 = vld [vmem:[%s10 + $0x2c] sm:$0xf]
    %v3127 = vld [vmem:[%s10 + $0x30] sm:$0xf]
    %v3128 = vld [vmem:[%s10 + $0x34] sm:$0xf]
    %v3129 = vld [vmem:[%s10 + $0x38] sm:$0xf]
    %v3130 = vld [vmem:[%s10 + $0x3c] sm:$0xf]
    %v3131 = vld [vmem:[%s10 + $0x40] sm:$0xf]
    %v3132 = vld [vmem:[%s10 + $0x44] sm:$0xf]
    %v3133 = vld [vmem:[%s10 + $0x48] sm:$0xf]
    %v3134 = vld [vmem:[%s10 + $0x4c] sm:$0xf]
    %v3135 = vld [vmem:[%s10 + $0x50] sm:$0xf]
    %v3136 = vld [vmem:[%s10 + $0x54] sm:$0xf]
    %v3137 = vld [vmem:[%s10 + $0x58] sm:$0xf]
    %v3138 = vld [vmem:[%s10 + $0x5c] sm:$0xf]
    %v3139 = vld [vmem:[%s10 + $0x60] sm:$0xf]
    %v3140 = vld [vmem:[%s10 + $0x64] sm:$0xf]
    %v3141 = vld [vmem:[%s10 + $0x68] sm:$0xf]
    %v3142 = vld [vmem:[%s10 + $0x6c] sm:$0xf]
    %v3143 = vld [vmem:[%s10 + $0x70] sm:$0xf]
    %v3144 = vld [vmem:[%s10 + $0x74] sm:$0xf]
    %v3145 = vld [vmem:[%s10 + $0x78] sm:$0xf]
    %v3146 = vld [vmem:[%s10 + $0x7c] sm:$0xf]
    %v3147 = vld [vmem:[%s10 + $0x80] sm:$0xf]
    %v3148 = vld [vmem:[%s10 + $0x84] sm:$0xf]
    %v3149 = vld [vmem:[%s10 + $0x88] sm:$0xf]
    %v3150 = vld [vmem:[%s10 + $0x8c] sm:$0xf]
    %v3151 = vld [vmem:[%s10 + $0x90] sm:$0xf]
    %v3152 = vld [vmem:[%s10 + $0x94] sm:$0xf]
    %v3153 = vld [vmem:[%s10 + $0x98] sm:$0xf]
    %v3154 = vld [vmem:[%s10 + $0x9c] sm:$0xf]
    %v3155 = vld [vmem:[%s10 + $0xa0] sm:$0xf]
    %v3156 = vld [vmem:[%s10 + $0xa4] sm:$0xf]
    %v3157 = vld [vmem:[%s10 + $0xa8] sm:$0xf]
    %v3158 = vld [vmem:[%s10 + $0xac] sm:$0xf]
    %v3159 = vld [vmem:[%s10 + $0xb0] sm:$0xf]
    %v3160 = vld [vmem:[%s10 + $0xb4] sm:$0xf]
    %v3161 = vld [vmem:[%s10 + $0xb8] sm:$0xf]
    %v3162 = vld [vmem:[%s10 + $0xbc] sm:$0xf]
    %v3163 = vld [vmem:[%s10 + $0xc0] sm:$0xf]
    %v3164 = vld [vmem:[%s10 + $0xc4] sm:$0xf]
    %v3165 = vld [vmem:[%s10 + $0xc8] sm:$0xf]
    %v3166 = vld [vmem:[%s10 + $0xcc] sm:$0xf]
    %v3167 = vld [vmem:[%s10 + $0xd0] sm:$0xf]
    %v3168 = vld [vmem:[%s10 + $0xd4] sm:$0xf]
    %v3169 = vld [vmem:[%s10 + $0xd8] sm:$0xf]
    %v3170 = vld [vmem:[%s10 + $0xdc] sm:$0xf]
    %v3171 = vld [vmem:[%s10 + $0xe0] sm:$0xf]
    %v3172 = vld [vmem:[%s10 + $0xe4] sm:$0xf]
    %v3173 = vld [vmem:[%s10 + $0xe8] sm:$0xf]
    %v3174 = vld [vmem:[%s10 + $0xec] sm:$0xf]
    %v3175 = vld [vmem:[%s10 + $0xf0] sm:$0xf]
    %v3176 = vld [vmem:[%s10 + $0xf4] sm:$0xf]
    %v3177 = vld [vmem:[%s10 + $0xf8] sm:$0xf]
    %v3178 = vld [vmem:[%s10 + $0xfc] sm:$0xf]
    %v3179 = vld [vmem:[%s10 + $0x100] sm:$0xf]
    %v3180 = vld [vmem:[%s10 + $0x104] sm:$0xf]
    %v3181 = vld [vmem:[%s10 + $0x108] sm:$0xf]
    %v3182 = vld [vmem:[%s10 + $0x10c] sm:$0xf]
    %v3183 = vld [vmem:[%s10 + $0x110] sm:$0xf]
    %v3184 = vld [vmem:[%s10 + $0x114] sm:$0xf]
    %v3185 = vld [vmem:[%s10 + $0x118] sm:$0xf]
    %v3186 = vld [vmem:[%s10 + $0x11c] sm:$0xf]
    %v3187 = vld [vmem:[%s10 + $0x120] sm:$0xf]
    %v3188 = vld [vmem:[%s10 + $0x124] sm:$0xf]
    %v3189 = vld [vmem:[%s10 + $0x128] sm:$0xf]
    %v3190 = vld [vmem:[%s10 + $0x12c] sm:$0xf]
    %v3191 = vld [vmem:[%s10 + $0x130] sm:$0xf]
    %v3192 = vld [vmem:[%s10 + $0x134] sm:$0xf]
    %v3193 = vld [vmem:[%s10 + $0x138] sm:$0xf]
    %v3194 = vld [vmem:[%s10 + $0x13c] sm:$0xf]
    %v3195 = vld [vmem:[%s10 + $0x140] sm:$0xf]
    %v3196 = vld [vmem:[%s10 + $0x144] sm:$0xf]
    %v3197 = vld [vmem:[%s10 + $0x148] sm:$0xf]
    %v3198 = vld [vmem:[%s10 + $0x14c] sm:$0xf]
    %v3199 = vld [vmem:[%s10 + $0x150] sm:$0xf]
    %v3200 = vld [vmem:[%s10 + $0x154] sm:$0xf]
    %v3201 = vld [vmem:[%s10 + $0x158] sm:$0xf]
    %v3202 = vld [vmem:[%s10 + $0x15c] sm:$0xf]
    %v3203 = vld [vmem:[%s10 + $0x160] sm:$0xf]
    %v3204 = vld [vmem:[%s10 + $0x164] sm:$0xf]
    %v3205 = vld [vmem:[%s10 + $0x168] sm:$0xf]
    %v3206 = vld [vmem:[%s10 + $0x16c] sm:$0xf]
    %v3207 = vld [vmem:[%s10 + $0x170] sm:$0xf]
    %v3208 = vld [vmem:[%s10 + $0x174] sm:$0xf]
    %v3209 = vld [vmem:[%s10 + $0x178] sm:$0xf]
    %v3210 = vld [vmem:[%s10 + $0x17c] sm:$0xf]
    %v3211 = vld [vmem:[%s10 + $0x180] sm:$0xf]
    %v3212 = vld [vmem:[%s10 + $0x184] sm:$0xf]
    %v3213 = vld [vmem:[%s10 + $0x188] sm:$0xf]
    %v3214 = vld [vmem:[%s10 + $0x18c] sm:$0xf]
    %v3215 = vld [vmem:[%s10 + $0x190] sm:$0xf]
    %v3216 = vld [vmem:[%s10 + $0x194] sm:$0xf]
    %v3217 = vld [vmem:[%s10 + $0x198] sm:$0xf]
    %v3218 = vld [vmem:[%s10 + $0x19c] sm:$0xf]
    %v3219 = vld [vmem:[%s10 + $0x1a0] sm:$0xf]
    %v3220 = vld [vmem:[%s10 + $0x1a4] sm:$0xf]
    %v3221 = vld [vmem:[%s10 + $0x1a8] sm:$0xf]
    %v3222 = vld [vmem:[%s10 + $0x1ac] sm:$0xf]
    %v3223 = vld [vmem:[%s10 + $0x1b0] sm:$0xf]
    %v3224 = vld [vmem:[%s10 + $0x1b4] sm:$0xf]
    %v3225 = vld [vmem:[%s10 + $0x1b8] sm:$0xf]
    %v3226 = vld [vmem:[%s10 + $0x1bc] sm:$0xf]
    %v3227 = vld [vmem:[%s10 + $0x1c0] sm:$0xf]
    %v3228 = vld [vmem:[%s10 + $0x1c4] sm:$0xf]
    %v3229 = vld [vmem:[%s10 + $0x1c8] sm:$0xf]
    %v3230 = vld [vmem:[%s10 + $0x1cc] sm:$0xf]
    %v3231 = vld [vmem:[%s10 + $0x1d0] sm:$0xf]
    %v3232 = vld [vmem:[%s10 + $0x1d4] sm:$0xf]
    %v3233 = vld [vmem:[%s10 + $0x1d8] sm:$0xf]
    %v3234 = vld [vmem:[%s10 + $0x1dc] sm:$0xf]
    %v3235 = vld [vmem:[%s10 + $0x1e0] sm:$0xf]
    %v3236 = vld [vmem:[%s10 + $0x1e4] sm:$0xf]
    %v3237 = vld [vmem:[%s10 + $0x1e8] sm:$0xf]
    %v3238 = vld [vmem:[%s10 + $0x1ec] sm:$0xf]
    %v3239 = vld [vmem:[%s10 + $0x1f0] sm:$0xf]
    %v3240 = vld [vmem:[%s10 + $0x1f4] sm:$0xf]
    %v3241 = vld [vmem:[%s10 + $0x1f8] sm:$0xf]
    %v3242 = vld [vmem:[%s10 + $0x1fc] sm:$0xf]
    %v3243 = vld [vmem:[%s10 + $0x200] sm:$0xf]
    %v3244 = vld [vmem:[%s10 + $0x204] sm:$0xf]
    %v3245 = vld [vmem:[%s10 + $0x208] sm:$0xf]
    %v3246 = vld [vmem:[%s10 + $0x20c] sm:$0xf]
    %v3247 = vld [vmem:[%s10 + $0x210] sm:$0xf]
    %v3248 = vld [vmem:[%s10 + $0x214] sm:$0xf]
    %v3249 = vld [vmem:[%s10 + $0x218] sm:$0xf]
    %v3250 = vld [vmem:[%s10 + $0x21c] sm:$0xf]
    %v3251 = vld [vmem:[%s10 + $0x220] sm:$0xf]
    %v3252 = vld [vmem:[%s10 + $0x224] sm:$0xf]
    %v3253 = vld [vmem:[%s10 + $0x228] sm:$0xf]
    %v3254 = vld [vmem:[%s10 + $0x22c] sm:$0xf]
    %v3255 = vld [vmem:[%s10 + $0x230] sm:$0xf]
    %v3256 = vld [vmem:[%s10 + $0x234] sm:$0xf]
    %v3257 = vld [vmem:[%s10 + $0x238] sm:$0xf]
    %v3258 = vld [vmem:[%s10 + $0x23c] sm:$0xf]
    %v3403 = vunpack.c.l.b16 %v3115
    %v3404 = vunpack.c.l.b16 %v3116
    %v3405 = vunpack.c.l.b16 %v3117
    %v3406 = vunpack.c.l.b16 %v3118
    %v3407 = vunpack.c.l.b16 %v3119
    %v3408 = vunpack.c.l.b16 %v3120
    %v3409 = vunpack.c.l.b16 %v3121
    %v3410 = vunpack.c.l.b16 %v3122
    %v3411 = vunpack.c.l.b16 %v3123
    %v3412 = vunpack.c.l.b16 %v3124
    %v3413 = vunpack.c.l.b16 %v3125
    %v3414 = vunpack.c.l.b16 %v3126
    %v3415 = vunpack.c.l.b16 %v3127
    %v3416 = vunpack.c.l.b16 %v3128
    %v3417 = vunpack.c.l.b16 %v3129
    %v3418 = vunpack.c.l.b16 %v3130
    %v3419 = vunpack.c.l.b16 %v3131
    %v3420 = vunpack.c.l.b16 %v3132
    %v3421 = vunpack.c.l.b16 %v3133
    %v3422 = vunpack.c.l.b16 %v3134
    %v3423 = vunpack.c.l.b16 %v3135
    %v3424 = vunpack.c.l.b16 %v3136
    %v3425 = vunpack.c.l.b16 %v3137
    %v3426 = vunpack.c.l.b16 %v3138
    %v3427 = vunpack.c.l.b16 %v3139
    %v3428 = vunpack.c.l.b16 %v3140
    %v3429 = vunpack.c.l.b16 %v3141
    %v3430 = vunpack.c.l.b16 %v3142
    %v3431 = vunpack.c.l.b16 %v3143
    %v3432 = vunpack.c.l.b16 %v3144
    %v3433 = vunpack.c.l.b16 %v3145
    %v3434 = vunpack.c.l.b16 %v3146
    %v3435 = vunpack.c.l.b16 %v3147
    %v3436 = vunpack.c.l.b16 %v3148
    %v3437 = vunpack.c.l.b16 %v3149
    %v3438 = vunpack.c.l.b16 %v3150
    %v3439 = vunpack.c.l.b16 %v3151
    %v3440 = vunpack.c.l.b16 %v3152
    %v3441 = vunpack.c.l.b16 %v3153
    %v3442 = vunpack.c.l.b16 %v3154
    %v3443 = vunpack.c.l.b16 %v3155
    %v3444 = vunpack.c.l.b16 %v3156
    %v3445 = vunpack.c.l.b16 %v3157
    %v3446 = vunpack.c.l.b16 %v3158
    %v3447 = vunpack.c.l.b16 %v3159
    %v3448 = vunpack.c.l.b16 %v3160
    %v3449 = vunpack.c.l.b16 %v3161
    %v3450 = vunpack.c.l.b16 %v3162
    %v3451 = vunpack.c.l.b16 %v3163
    %v3452 = vunpack.c.l.b16 %v3164
    %v3453 = vunpack.c.l.b16 %v3165
    %v3454 = vunpack.c.l.b16 %v3166
    %v3455 = vunpack.c.l.b16 %v3167
    %v3456 = vunpack.c.l.b16 %v3168
    %v3457 = vunpack.c.l.b16 %v3169
    %v3458 = vunpack.c.l.b16 %v3170
    %v3459 = vunpack.c.l.b16 %v3171
    %v3460 = vunpack.c.l.b16 %v3172
    %v3461 = vunpack.c.l.b16 %v3173
    %v3462 = vunpack.c.l.b16 %v3174
    %v3463 = vunpack.c.l.b16 %v3175
    %v3464 = vunpack.c.l.b16 %v3176
    %v3465 = vunpack.c.l.b16 %v3177
    %v3466 = vunpack.c.l.b16 %v3178
    %v3467 = vunpack.c.l.b16 %v3179
    %v3468 = vunpack.c.l.b16 %v3180
    %v3469 = vunpack.c.l.b16 %v3181
    %v3470 = vunpack.c.l.b16 %v3182
    %v3471 = vunpack.c.l.b16 %v3183
    %v3472 = vunpack.c.l.b16 %v3184
    %v3473 = vunpack.c.l.b16 %v3185
    %v3474 = vunpack.c.l.b16 %v3186
    %v3475 = vunpack.c.l.b16 %v3187
    %v3476 = vunpack.c.l.b16 %v3188
    %v3477 = vunpack.c.l.b16 %v3189
    %v3478 = vunpack.c.l.b16 %v3190
    %v3479 = vunpack.c.l.b16 %v3191
    %v3480 = vunpack.c.l.b16 %v3192
    %v3481 = vunpack.c.l.b16 %v3193
    %v3482 = vunpack.c.l.b16 %v3194
    %v3483 = vunpack.c.l.b16 %v3195
    %v3484 = vunpack.c.l.b16 %v3196
    %v3485 = vunpack.c.l.b16 %v3197
    %v3486 = vunpack.c.l.b16 %v3198
    %v3487 = vunpack.c.l.b16 %v3199
    %v3488 = vunpack.c.l.b16 %v3200
    %v3489 = vunpack.c.l.b16 %v3201
    %v3490 = vunpack.c.l.b16 %v3202
    %v3491 = vunpack.c.l.b16 %v3203
    %v3492 = vunpack.c.l.b16 %v3204
    %v3493 = vunpack.c.l.b16 %v3205
    %v3494 = vunpack.c.l.b16 %v3206
    %v3495 = vunpack.c.l.b16 %v3207
    %v3496 = vunpack.c.l.b16 %v3208
    %v3497 = vunpack.c.l.b16 %v3209
    %v3498 = vunpack.c.l.b16 %v3210
    %v3499 = vunpack.c.l.b16 %v3211
    %v3500 = vunpack.c.l.b16 %v3212
    %v3501 = vunpack.c.l.b16 %v3213
    %v3502 = vunpack.c.l.b16 %v3214
    %v3503 = vunpack.c.l.b16 %v3215
    %v3504 = vunpack.c.l.b16 %v3216
    %v3505 = vunpack.c.l.b16 %v3217
    %v3506 = vunpack.c.l.b16 %v3218
    %v3507 = vunpack.c.l.b16 %v3219
    %v3508 = vunpack.c.l.b16 %v3220
    %v3509 = vunpack.c.l.b16 %v3221
    %v3510 = vunpack.c.l.b16 %v3222
    %v3511 = vunpack.c.l.b16 %v3223
    %v3512 = vunpack.c.l.b16 %v3224
    %v3513 = vunpack.c.l.b16 %v3225
    %v3514 = vunpack.c.l.b16 %v3226
    %v3515 = vunpack.c.l.b16 %v3227
    %v3516 = vunpack.c.l.b16 %v3228
    %v3517 = vunpack.c.l.b16 %v3229
    %v3518 = vunpack.c.l.b16 %v3230
    %v3519 = vunpack.c.l.b16 %v3231
    %v3520 = vunpack.c.l.b16 %v3232
    %v3521 = vunpack.c.l.b16 %v3233
    %v3522 = vunpack.c.l.b16 %v3234
    %v3523 = vunpack.c.l.b16 %v3235
    %v3524 = vunpack.c.l.b16 %v3236
    %v3525 = vunpack.c.l.b16 %v3237
    %v3526 = vunpack.c.l.b16 %v3238
    %v3527 = vunpack.c.l.b16 %v3239
    %v3528 = vunpack.c.l.b16 %v3240
    %v3529 = vunpack.c.l.b16 %v3241
    %v3530 = vunpack.c.l.b16 %v3242
    %v3531 = vunpack.c.l.b16 %v3243
    %v3532 = vunpack.c.l.b16 %v3244
    %v3533 = vunpack.c.l.b16 %v3245
    %v3534 = vunpack.c.l.b16 %v3246
    %v3535 = vunpack.c.l.b16 %v3247
    %v3536 = vunpack.c.l.b16 %v3248
    %v3537 = vunpack.c.l.b16 %v3249
    %v3538 = vunpack.c.l.b16 %v3250
    %v3539 = vunpack.c.l.b16 %v3251
    %v3540 = vunpack.c.l.b16 %v3252
    %v3541 = vunpack.c.l.b16 %v3253
    %v3542 = vunpack.c.l.b16 %v3254
    %v3543 = vunpack.c.l.b16 %v3255
    %v3544 = vunpack.c.l.b16 %v3256
    %v3545 = vunpack.c.l.b16 %v3257
    %v3546 = vunpack.c.l.b16 %v3258
    %v3547 = vpack.c.b16 %v3404, %v3403
    %v3548 = vpack.c.b16 %v3406, %v3405
    %v3549 = vpack.c.b16 %v3408, %v3407
    %v3550 = vpack.c.b16 %v3410, %v3409
    %v3551 = vpack.c.b16 %v3412, %v3411
    %v3552 = vpack.c.b16 %v3414, %v3413
    %v3553 = vpack.c.b16 %v3416, %v3415
    %v3554 = vpack.c.b16 %v3418, %v3417
    %v3555 = vpack.c.b16 %v3420, %v3419
    %v3556 = vpack.c.b16 %v3422, %v3421
    %v3557 = vpack.c.b16 %v3424, %v3423
    %v3558 = vpack.c.b16 %v3426, %v3425
    %v3559 = vpack.c.b16 %v3428, %v3427
    %v3560 = vpack.c.b16 %v3430, %v3429
    %v3561 = vpack.c.b16 %v3432, %v3431
    %v3562 = vpack.c.b16 %v3434, %v3433
    %v3563 = vpack.c.b16 %v3436, %v3435
    %v3564 = vpack.c.b16 %v3438, %v3437
    %v3565 = vpack.c.b16 %v3440, %v3439
    %v3566 = vpack.c.b16 %v3442, %v3441
    %v3567 = vpack.c.b16 %v3444, %v3443
    %v3568 = vpack.c.b16 %v3446, %v3445
    %v3569 = vpack.c.b16 %v3448, %v3447
    %v3570 = vpack.c.b16 %v3450, %v3449
    %v3571 = vpack.c.b16 %v3452, %v3451
    %v3572 = vpack.c.b16 %v3454, %v3453
    %v3573 = vpack.c.b16 %v3456, %v3455
    %v3574 = vpack.c.b16 %v3458, %v3457
    %v3575 = vpack.c.b16 %v3460, %v3459
    %v3576 = vpack.c.b16 %v3462, %v3461
    %v3577 = vpack.c.b16 %v3464, %v3463
    %v3578 = vpack.c.b16 %v3466, %v3465
    %v3579 = vpack.c.b16 %v3468, %v3467
    %v3580 = vpack.c.b16 %v3470, %v3469
    %v3581 = vpack.c.b16 %v3472, %v3471
    %v3582 = vpack.c.b16 %v3474, %v3473
    %v3583 = vpack.c.b16 %v3476, %v3475
    %v3584 = vpack.c.b16 %v3478, %v3477
    %v3585 = vpack.c.b16 %v3480, %v3479
    %v3586 = vpack.c.b16 %v3482, %v3481
    %v3587 = vpack.c.b16 %v3484, %v3483
    %v3588 = vpack.c.b16 %v3486, %v3485
    %v3589 = vpack.c.b16 %v3488, %v3487
    %v3590 = vpack.c.b16 %v3490, %v3489
    %v3591 = vpack.c.b16 %v3492, %v3491
    %v3592 = vpack.c.b16 %v3494, %v3493
    %v3593 = vpack.c.b16 %v3496, %v3495
    %v3594 = vpack.c.b16 %v3498, %v3497
    %v3595 = vpack.c.b16 %v3500, %v3499
    %v3596 = vpack.c.b16 %v3502, %v3501
    %v3597 = vpack.c.b16 %v3504, %v3503
    %v3598 = vpack.c.b16 %v3506, %v3505
    %v3599 = vpack.c.b16 %v3508, %v3507
    %v3600 = vpack.c.b16 %v3510, %v3509
    %v3601 = vpack.c.b16 %v3512, %v3511
    %v3602 = vpack.c.b16 %v3514, %v3513
    %v3603 = vpack.c.b16 %v3516, %v3515
    %v3604 = vpack.c.b16 %v3518, %v3517
    %v3605 = vpack.c.b16 %v3520, %v3519
    %v3606 = vpack.c.b16 %v3522, %v3521
    %v3607 = vpack.c.b16 %v3524, %v3523
    %v3608 = vpack.c.b16 %v3526, %v3525
    %v3609 = vpack.c.b16 %v3528, %v3527
    %v3610 = vpack.c.b16 %v3530, %v3529
    %v3611 = vpack.c.b16 %v3532, %v3531
    %v3612 = vpack.c.b16 %v3534, %v3533
    %v3613 = vpack.c.b16 %v3536, %v3535
    %v3614 = vpack.c.b16 %v3538, %v3537
    %v3615 = vpack.c.b16 %v3540, %v3539
    %v3616 = vpack.c.b16 %v3542, %v3541
    %v3617 = vpack.c.b16 %v3544, %v3543
    %v3618 = vpack.c.b16 %v3546, %v3545
    %3691 = vmatprep.subr.bf16.mxu0 0
    %3692 = vmatpush1.bf16.msra.mxu0 %v3547
    %3693 = vmatprep.subr.bf16.mxu0 0
    %3694 = vmatpush1.bf16.msra.mxu0 %v3548
    %3695 = vmatprep.subr.bf16.mxu0 0
    %3696 = vmatpush1.bf16.msra.mxu0 %v3549
    %3697 = vmatprep.subr.bf16.mxu0 0
    %3698 = vmatpush1.bf16.msra.mxu0 %v3550
    %3699 = vmatprep.subr.bf16.mxu0 0
    %3700 = vmatpush1.bf16.msra.mxu0 %v3551
    %3701 = vmatprep.subr.bf16.mxu0 0
    %3702 = vmatpush1.bf16.msra.mxu0 %v3552
    %3703 = vmatprep.subr.bf16.mxu0 0
    %3704 = vmatpush1.bf16.msra.mxu0 %v3553
    %3705 = vmatprep.subr.bf16.mxu0 0
    %3706 = vmatpush1.bf16.msra.mxu0 %v3554
    %3707 = vmatprep.subr.bf16.mxu0 0
    %3708 = vmatpush1.bf16.msra.mxu0 %v3555
    %3709 = vmatprep.subr.bf16.mxu0 0
    %3710 = vmatpush1.bf16.msra.mxu0 %v3556
    %3711 = vmatprep.subr.bf16.mxu0 0
    %3712 = vmatpush1.bf16.msra.mxu0 %v3557
    %3713 = vmatprep.subr.bf16.mxu0 0
    %3714 = vmatpush1.bf16.msra.mxu0 %v3558
    %3715 = vmatprep.subr.bf16.mxu0 0
    %3716 = vmatpush1.bf16.msra.mxu0 %v3559
    %3717 = vmatprep.subr.bf16.mxu0 0
    %3718 = vmatpush1.bf16.msra.mxu0 %v3560
    %3719 = vmatprep.subr.bf16.mxu0 0
    %3720 = vmatpush1.bf16.msra.mxu0 %v3561
    %3721 = vmatprep.subr.bf16.mxu0 0
    %3722 = vmatpush1.bf16.msra.mxu0 %v3562
    %3723 = vmatprep.mubr.bf16.mxu0 %v3081
    %3724 = vmatmul.mubr.bf16.gmra.mrb[0].mxu0 %v3073
    %v3725 = vpop.f32.mrb[0].mxu0
    %v3726 = vadd.f32 0.0, %v3725
    %v3727 = vpop.f32.mrb[0].mxu0
    %v3728 = vpop.f32.mrb[0].mxu0
    %v3729 = vadd.f32 0.0, %v3728
    %v3730 = vpop.f32.mrb[0].mxu0
    %3731 = vmatprep.mubr.bf16.mxu0 %v3082
    %3732 = vmatmul.mubr.bf16.gmra.mrb[0].mxu0 %v3074
    %v3733 = vpop.f32.mrb[0].mxu0
    %v3734 = vadd.f32 0.0, %v3733
    %v3735 = vpop.f32.mrb[0].mxu0
    %v3736 = vpop.f32.mrb[0].mxu0
    %v3737 = vadd.f32 0.0, %v3736
    %v3738 = vpop.f32.mrb[0].mxu0
    %3739 = vdwg.mxu0
    %3740 = vmatprep.subr.bf16.mxu0 0
    %3741 = vmatpush1.bf16.msra.mxu0 %v3563
    %3742 = vmatprep.subr.bf16.mxu0 0
    %3743 = vmatpush1.bf16.msra.mxu0 %v3564
    %3744 = vmatprep.subr.bf16.mxu0 0
    %3745 = vmatpush1.bf16.msra.mxu0 %v3565
    %3746 = vmatprep.subr.bf16.mxu0 0
    %3747 = vmatpush1.bf16.msra.mxu0 %v3566
    %3748 = vmatprep.subr.bf16.mxu0 0
    %3749 = vmatpush1.bf16.msra.mxu0 %v3567
    %3750 = vmatprep.subr.bf16.mxu0 0
    %3751 = vmatpush1.bf16.msra.mxu0 %v3568
    %3752 = vmatprep.subr.bf16.mxu0 0
    %3753 = vmatpush1.bf16.msra.mxu0 %v3569
    %3754 = vmatprep.subr.bf16.mxu0 0
    %3755 = vmatpush1.bf16.msra.mxu0 %v3570
    %3756 = vmatprep.subr.bf16.mxu0 0
    %3757 = vmatpush1.bf16.msra.mxu0 %v3571
    %3758 = vmatprep.subr.bf16.mxu0 0
    %3759 = vmatpush1.bf16.msra.mxu0 %v3572
    %3760 = vmatprep.subr.bf16.mxu0 0
    %3761 = vmatpush1.bf16.msra.mxu0 %v3573
    %3762 = vmatprep.subr.bf16.mxu0 0
    %3763 = vmatpush1.bf16.msra.mxu0 %v3574
    %3764 = vmatprep.subr.bf16.mxu0 0
    %3765 = vmatpush1.bf16.msra.mxu0 %v3575
    %3766 = vmatprep.subr.bf16.mxu0 0
    %3767 = vmatpush1.bf16.msra.mxu0 %v3576
    %3768 = vmatprep.subr.bf16.mxu0 0
    %3769 = vmatpush1.bf16.msra.mxu0 %v3577
    %3770 = vmatprep.subr.bf16.mxu0 0
    %3771 = vmatpush1.bf16.msra.mxu0 %v3578
    %3772 = vmatprep.mubr.bf16.mxu0 %v3093
    %3773 = vmatmul.mubr.bf16.gmra.mrb[0].mxu0 %v3089
    %v3774 = vpop.f32.mrb[0].mxu0
    %v3775 = vadd.f32 %v3726, %v3774
    %v3776 = vpop.f32.mrb[0].mxu0
    %v3777 = vpop.f32.mrb[0].mxu0
    %v3778 = vadd.f32 %v3729, %v3777
    %v3779 = vpop.f32.mrb[0].mxu0
    %3780 = vmatprep.mubr.bf16.mxu0 %v3094
    %3781 = vmatmul.mubr.bf16.gmra.mrb[0].mxu0 %v3090
    %v3782 = vpop.f32.mrb[0].mxu0
    %v3783 = vadd.f32 %v3734, %v3782
    %v3784 = vpop.f32.mrb[0].mxu0
    %v3785 = vpop.f32.mrb[0].mxu0
    %v3786 = vadd.f32 %v3737, %v3785
    %v3787 = vpop.f32.mrb[0].mxu0
    %3788 = vdwg.mxu0
    %3789 = vmatprep.subr.bf16.mxu0 0
    %3790 = vmatpush1.bf16.msra.mxu0 %v3579
    %3791 = vmatprep.subr.bf16.mxu0 0
    %3792 = vmatpush1.bf16.msra.mxu0 %v3580
    %3793 = vmatprep.subr.bf16.mxu0 0
    %3794 = vmatpush1.bf16.msra.mxu0 %v3581
    %3795 = vmatprep.subr.bf16.mxu0 0
    %3796 = vmatpush1.bf16.msra.mxu0 %v3582
    %3797 = vmatprep.subr.bf16.mxu0 0
    %3798 = vmatpush1.bf16.msra.mxu0 %v3583
    %3799 = vmatprep.subr.bf16.mxu0 0
    %3800 = vmatpush1.bf16.msra.mxu0 %v3584
    %3801 = vmatprep.subr.bf16.mxu0 0
    %3802 = vmatpush1.bf16.msra.mxu0 %v3585
    %3803 = vmatprep.subr.bf16.mxu0 0
    %3804 = vmatpush1.bf16.msra.mxu0 %v3586
    %3805 = vmatprep.subr.bf16.mxu0 0
    %3806 = vmatpush1.bf16.msra.mxu0 %v3587
    %3807 = vmatprep.subr.bf16.mxu0 0
    %3808 = vmatpush1.bf16.msra.mxu0 %v3588
    %3809 = vmatprep.subr.bf16.mxu0 0
    %3810 = vmatpush1.bf16.msra.mxu0 %v3589
    %3811 = vmatprep.subr.bf16.mxu0 0
    %3812 = vmatpush1.bf16.msra.mxu0 %v3590
    %3813 = vmatprep.subr.bf16.mxu0 0
    %3814 = vmatpush1.bf16.msra.mxu0 %v3591
    %3815 = vmatprep.subr.bf16.mxu0 0
    %3816 = vmatpush1.bf16.msra.mxu0 %v3592
    %3817 = vmatprep.subr.bf16.mxu0 0
    %3818 = vmatpush1.bf16.msra.mxu0 %v3593
    %3819 = vmatprep.subr.bf16.mxu0 0
    %3820 = vmatpush1.bf16.msra.mxu0 %v3594
    %3821 = vmatprep.mubr.bf16.mxu0 %v3103
    %3822 = vmatmul.mubr.bf16.gmra.mrb[0].mxu0 %v3098
    %v3823 = vpop.f32.mrb[0].mxu0
    %v3824 = vadd.f32 %v3775, %v3823
    %v3825 = vpop.f32.mrb[0].mxu0
    %v3826 = vpop.f32.mrb[0].mxu0
    %v3827 = vadd.f32 %v3778, %v3826
    %v3828 = vpop.f32.mrb[0].mxu0
    %3829 = vmatprep.mubr.bf16.mxu0 %v3104
    %3830 = vmatmul.mubr.bf16.gmra.mrb[0].mxu0 %v3099
    %v3831 = vpop.f32.mrb[0].mxu0
    %v3832 = vadd.f32 %v3783, %v3831
    %v3833 = vpop.f32.mrb[0].mxu0
    %v3834 = vpop.f32.mrb[0].mxu0
    %v3835 = vadd.f32 %v3786, %v3834
    %v3836 = vpop.f32.mrb[0].mxu0
    %3837 = vdwg.mxu0
    %3838 = vmatprep.subr.bf16.mxu0 0
    %3839 = vmatpush1.bf16.msra.mxu0 %v3595
    %3840 = vmatprep.subr.bf16.mxu0 0
    %3841 = vmatpush1.bf16.msra.mxu0 %v3596
    %3842 = vmatprep.subr.bf16.mxu0 0
    %3843 = vmatpush1.bf16.msra.mxu0 %v3597
    %3844 = vmatprep.subr.bf16.mxu0 0
    %3845 = vmatpush1.bf16.msra.mxu0 %v3598
    %3846 = vmatprep.subr.bf16.mxu0 0
    %3847 = vmatpush1.bf16.msra.mxu0 %v3599
    %3848 = vmatprep.subr.bf16.mxu0 0
    %3849 = vmatpush1.bf16.msra.mxu0 %v3600
    %3850 = vmatprep.subr.bf16.mxu0 0
    %3851 = vmatpush1.bf16.msra.mxu0 %v3601
    %3852 = vmatprep.subr.bf16.mxu0 0
    %3853 = vmatpush1.bf16.msra.mxu0 %v3602
    %3854 = vmatprep.subr.bf16.mxu0 0
    %3855 = vmatpush1.bf16.msra.mxu0 %v3603
    %3856 = vmatprep.subr.bf16.mxu0 0
    %3857 = vmatpush1.bf16.msra.mxu0 %v3604
    %3858 = vmatprep.subr.bf16.mxu0 0
    %3859 = vmatpush1.bf16.msra.mxu0 %v3605
    %3860 = vmatprep.subr.bf16.mxu0 0
    %3861 = vmatpush1.bf16.msra.mxu0 %v3606
    %3862 = vmatprep.subr.bf16.mxu0 0
    %3863 = vmatpush1.bf16.msra.mxu0 %v3607
    %3864 = vmatprep.subr.bf16.mxu0 0
    %3865 = vmatpush1.bf16.msra.mxu0 %v3608
    %3866 = vmatprep.subr.bf16.mxu0 0
    %3867 = vmatpush1.bf16.msra.mxu0 %v3609
    %3868 = vmatprep.subr.bf16.mxu0 0
    %3869 = vmatpush1.bf16.msra.mxu0 %v3610
    %3870 = vmatprep.mubr.bf16.mxu0 %v3082
    %3871 = vmatmul.mubr.bf16.gmra.mrb[0].mxu0 %v3074
    %v3872 = vpop.f32.mrb[0].mxu0
    %v3873 = vadd.f32 %v3824, %v3872
    %v3874 = vpop.f32.mrb[0].mxu0
    %v3875 = vpop.f32.mrb[0].mxu0
    %v3876 = vadd.f32 %v3827, %v3875
    %v3877 = vpop.f32.mrb[0].mxu0
    %3878 = vmatprep.mubr.bf16.mxu0 %v3110
    %3879 = vmatmul.mubr.bf16.gmra.mrb[0].mxu0 %v3107
    %v3880 = vpop.f32.mrb[0].mxu0
    %v3881 = vadd.f32 %v3832, %v3880
    %v3882 = vpop.f32.mrb[0].mxu0
    %v3883 = vpop.f32.mrb[0].mxu0
    %v3884 = vadd.f32 %v3835, %v3883
    %v3885 = vpop.f32.mrb[0].mxu0
    %3886 = vdwg.mxu0
    %3887 = vmatprep.subr.bf16.mxu0 0
    %3888 = vmatpush1.bf16.msra.mxu0 %v3611
    %3889 = vmatprep.subr.bf16.mxu0 0
    %3890 = vmatpush1.bf16.msra.mxu0 %v3612
    %3891 = vmatprep.subr.bf16.mxu0 0
    %3892 = vmatpush1.bf16.msra.mxu0 %v3613
    %3893 = vmatprep.subr.bf16.mxu0 0
    %3894 = vmatpush1.bf16.msra.mxu0 %v3614
    %3895 = vmatprep.subr.bf16.mxu0 0
    %3896 = vmatpush1.bf16.msra.mxu0 %v3615
    %3897 = vmatprep.subr.bf16.mxu0 0
    %3898 = vmatpush1.bf16.msra.mxu0 %v3616
    %3899 = vmatprep.subr.bf16.mxu0 0
    %3900 = vmatpush1.bf16.msra.mxu0 %v3617
    %3901 = vmatprep.subr.bf16.mxu0 0
    %3902 = vmatpush1.bf16.msra.mxu0 %v3618
    %3903 = vmatprep.subr.bf16.mxu0 0
    %3904 = vmatpush1.bf16.msra.mxu0 0
    %3905 = vmatprep.subr.bf16.mxu0 0
    %3906 = vmatpush1.bf16.msra.mxu0 0
    %3907 = vmatprep.subr.bf16.mxu0 0
    %3908 = vmatpush1.bf16.msra.mxu0 0
    %3909 = vmatprep.subr.bf16.mxu0 0
    %3910 = vmatpush1.bf16.msra.mxu0 0
    %3911 = vmatprep.subr.bf16.mxu0 0
    %3912 = vmatpush1.bf16.msra.mxu0 0
    %3913 = vmatprep.subr.bf16.mxu0 0
    %3914 = vmatpush1.bf16.msra.mxu0 0
    %3915 = vmatprep.subr.bf16.mxu0 0
    %3916 = vmatpush1.bf16.msra.mxu0 0
    %3917 = vmatprep.subr.bf16.mxu0 0
    %3918 = vmatpush1.bf16.msra.mxu0 0
    %3919 = vmatprep.mubr.bf16.mxu0 0
    %3920 = vmatmul.mubr.bf16.gmra.mrb[0].mxu0 %v3090
    %v3921 = vpop.f32.mrb[0].mxu0
    %v3922 = vadd.f32 %v3873, %v3921
    %v3923 = vpop.f32.mrb[0].mxu0
    %v3924 = vpop.f32.mrb[0].mxu0
    %v3925 = vadd.f32 %v3876, %v3924
    %v3926 = vpop.f32.mrb[0].mxu0
    %3927 = vmatprep.mubr.bf16.mxu0 0
    %3928 = vmatmul.mubr.bf16.gmra.mrb[0].mxu0 %v3113
    %v3929 = vpop.f32.mrb[0].mxu0
    %v3930 = vadd.f32 %v3881, %v3929
    %v3931 = vpop.f32.mrb[0].mxu0
    %v3932 = vpop.f32.mrb[0].mxu0
    %v3933 = vadd.f32 %v3884, %v3932
    %v3934 = vpop.f32.mrb[0].mxu0
    %3935 = vdwg.mxu0
    %v3936 = vld [vmem:[%s11] sm:$0x1]
    %v3938 = vlaneseq
    %v3939 = vshrl.u32 %v3938, 7
    %v3940 = vsub.s32 0, %v3939
    %v3941 = vrot.slane %v3936, %v3940
    %v3943 = vmul.f32 %v3922, %v3941
    %v3944 = vmul.f32 %v3925, %v3941
    %v3945 = vmul.f32 %v3930, %v3941
    %v3946 = vmul.f32 %v3933, %v3941
    %v3947 = vld [vmem:[%s12] sm:$0x1]
    %v3949 = vlaneseq
    %v3950 = vshrl.u32 %v3949, 7
    %v3951 = vsub.s32 0, %v3950
    %v3952 = vrot.slane %v3947, %v3951
    %v3954 = vadd.f32 %v3943, %v3952
    %v3955 = vadd.f32 %v3944, %v3952
    %v3956 = vadd.f32 %v3945, %v3952
    %v3957 = vadd.f32 %v3946, %v3952
    %v3958 = vmax.f32 %v3954, 0.0
    %v3959 = vmax.f32 %v3955, 0.0
    %v3960 = vmax.f32 %v3956, 0.0
    %v3961 = vmax.f32 %v3957, 0.0
    %v3966 = vcombine.high %v3958, %v3958
    %v3968 = vunpack.c.l.s4 1983009808
    %v3969 = vunpack.c.0.s8 %v3968
    %v3970 = vlaneseq
    %v3971 = vshrl.u32 %v3970, 7
    %v3972 = vsub.s32 %v3969, %v3971
    %v3973 = vrot.slane %v3958, %v3972
    %v3975 = vunpack.c.l.s4 1983009808
    %v3976 = vunpack.c.0.s8 %v3975
    %v3977 = vlaneseq
    %v3978 = vshrl.u32 %v3977, 7
    %v3979 = vsub.s32 %v3976, %v3978
    %v3980 = vrot.slane %v3966, %v3979
    %v3981 = vcombine.high %v3973, %v3973
    %v3982 = vcombine.high %v3980, %v3980
    %v3983 = vcombine.high %v3959, %v3959
    %v3985 = vunpack.c.l.s4 1983009808
    %v3986 = vunpack.c.0.s8 %v3985
    %v3987 = vlaneseq
    %v3988 = vshrl.u32 %v3987, 7
    %v3989 = vsub.s32 %v3986, %v3988
    %v3990 = vrot.slane %v3959, %v3989
    %v3992 = vunpack.c.l.s4 1983009808
    %v3993 = vunpack.c.0.s8 %v3992
    %v3994 = vlaneseq
    %v3995 = vshrl.u32 %v3994, 7
    %v3996 = vsub.s32 %v3993, %v3995
    %v3997 = vrot.slane %v3983, %v3996
    %v3998 = vcombine.high %v3990, %v3990
    %v3999 = vcombine.high %v3997, %v3997
    %v4000 = vcombine.high %v3960, %v3960
    %v4002 = vunpack.c.l.s4 1983009808
    %v4003 = vunpack.c.0.s8 %v4002
    %v4004 = vlaneseq
    %v4005 = vshrl.u32 %v4004, 7
    %v4006 = vsub.s32 %v4003, %v4005
    %v4007 = vrot.slane %v3960, %v4006
    %v4009 = vunpack.c.l.s4 1983009808
    %v4010 = vunpack.c.0.s8 %v4009
    %v4011 = vlaneseq
    %v4012 = vshrl.u32 %v4011, 7
    %v4013 = vsub.s32 %v4010, %v4012
    %v4014 = vrot.slane %v4000, %v4013
    %v4015 = vcombine.high %v4007, %v4007
    %v4016 = vcombine.high %v4014, %v4014
    %v4017 = vcombine.high %v3961, %v3961
    %v4019 = vunpack.c.l.s4 1983009808
    %v4020 = vunpack.c.0.s8 %v4019
    %v4021 = vlaneseq
    %v4022 = vshrl.u32 %v4021, 7
    %v4023 = vsub.s32 %v4020, %v4022
    %v4024 = vrot.slane %v3961, %v4023
    %v4026 = vunpack.c.l.s4 1983009808
    %v4027 = vunpack.c.0.s8 %v4026
    %v4028 = vlaneseq
    %v4029 = vshrl.u32 %v4028, 7
    %v4030 = vsub.s32 %v4027, %v4029
    %v4031 = vrot.slane %v4017, %v4030
    %v4032 = vcombine.high %v4024, %v4024
    %v4033 = vcombine.high %v4031, %v4031
    %v4050 = vld [vmem:[%s13] sm:$0xff]
    %v4051 = vld [vmem:[%s13 + $0x8] sm:$0xff]
    %v4052 = vld [vmem:[%s13 + $0x10] sm:$0xff]
    %v4053 = vld [vmem:[%s13 + $0x18] sm:$0xff]
    %v4054 = vld [vmem:[%s13 + $0x20] sm:$0xff]
    %v4055 = vld [vmem:[%s13 + $0x28] sm:$0xff]
    %v4056 = vld [vmem:[%s13 + $0x30] sm:$0xff]
    %v4057 = vld [vmem:[%s13 + $0x38] sm:$0xff]
    %v4058 = vld [vmem:[%s13 + $0x40] sm:$0xff]
    %v4059 = vld [vmem:[%s13 + $0x48] sm:$0xff]
    %v4060 = vld [vmem:[%s13 + $0x50] sm:$0xff]
    %v4061 = vld [vmem:[%s13 + $0x58] sm:$0xff]
    %v4062 = vld [vmem:[%s13 + $0x60] sm:$0xff]
    %v4063 = vld [vmem:[%s13 + $0x68] sm:$0xff]
    %v4064 = vld [vmem:[%s13 + $0x70] sm:$0xff]
    %v4065 = vld [vmem:[%s13 + $0x78] sm:$0xff]
    %v4066 = vld [vmem:[%s13 + $0x80] sm:$0xff]
    %v4067 = vld [vmem:[%s13 + $0x88] sm:$0xff]
    %v4068 = vld [vmem:[%s13 + $0x90] sm:$0xff]
    %v4069 = vld [vmem:[%s13 + $0x98] sm:$0xff]
    %v4070 = vld [vmem:[%s13 + $0xa0] sm:$0xff]
    %v4071 = vld [vmem:[%s13 + $0xa8] sm:$0xff]
    %v4072 = vld [vmem:[%s13 + $0xb0] sm:$0xff]
    %v4073 = vld [vmem:[%s13 + $0xb8] sm:$0xff]
    %v4074 = vld [vmem:[%s13 + $0xc0] sm:$0xff]
    %v4075 = vld [vmem:[%s13 + $0xc8] sm:$0xff]
    %v4076 = vld [vmem:[%s13 + $0xd0] sm:$0xff]
    %v4077 = vld [vmem:[%s13 + $0xd8] sm:$0xff]
    %v4078 = vld [vmem:[%s13 + $0xe0] sm:$0xff]
    %v4079 = vld [vmem:[%s13 + $0xe8] sm:$0xff]
    %v4080 = vld [vmem:[%s13 + $0xf0] sm:$0xff]
    %v4081 = vld [vmem:[%s13 + $0xf8] sm:$0xff]
    %v4082 = vld [vmem:[%s13 + $0x100] sm:$0xff]
    %v4083 = vld [vmem:[%s13 + $0x108] sm:$0xff]
    %v4084 = vld [vmem:[%s13 + $0x110] sm:$0xff]
    %v4085 = vld [vmem:[%s13 + $0x118] sm:$0xff]
    %v4086 = vld [vmem:[%s13 + $0x120] sm:$0xff]
    %v4087 = vld [vmem:[%s13 + $0x128] sm:$0xff]
    %v4088 = vld [vmem:[%s13 + $0x130] sm:$0xff]
    %v4089 = vld [vmem:[%s13 + $0x138] sm:$0xff]
    %v4090 = vld [vmem:[%s13 + $0x140] sm:$0xff]
    %v4091 = vld [vmem:[%s13 + $0x148] sm:$0xff]
    %v4092 = vld [vmem:[%s13 + $0x150] sm:$0xff]
    %v4093 = vld [vmem:[%s13 + $0x158] sm:$0xff]
    %v4094 = vld [vmem:[%s13 + $0x160] sm:$0xff]
    %v4095 = vld [vmem:[%s13 + $0x168] sm:$0xff]
    %v4096 = vld [vmem:[%s13 + $0x170] sm:$0xff]
    %v4097 = vld [vmem:[%s13 + $0x178] sm:$0xff]
    %v4098 = vld [vmem:[%s13 + $0x180] sm:$0xff]
    %v4099 = vld [vmem:[%s13 + $0x188] sm:$0xff]
    %v4100 = vld [vmem:[%s13 + $0x190] sm:$0xff]
    %v4101 = vld [vmem:[%s13 + $0x198] sm:$0xff]
    %v4102 = vld [vmem:[%s13 + $0x1a0] sm:$0xff]
    %v4103 = vld [vmem:[%s13 + $0x1a8] sm:$0xff]
    %v4104 = vld [vmem:[%s13 + $0x1b0] sm:$0xff]
    %v4105 = vld [vmem:[%s13 + $0x1b8] sm:$0xff]
    %v4106 = vld [vmem:[%s13 + $0x1c0] sm:$0xff]
    %v4107 = vld [vmem:[%s13 + $0x1c8] sm:$0xff]
    %v4108 = vld [vmem:[%s13 + $0x1d0] sm:$0xff]
    %v4109 = vld [vmem:[%s13 + $0x1d8] sm:$0xff]
    %v4110 = vld [vmem:[%s13 + $0x1e0] sm:$0xff]
    %v4111 = vld [vmem:[%s13 + $0x1e8] sm:$0xff]
    %v4112 = vld [vmem:[%s13 + $0x1f0] sm:$0xff]
    %v4113 = vld [vmem:[%s13 + $0x1f8] sm:$0xff]
    %v4114 = vld [vmem:[%s13 + $0x200] sm:$0xff]
    %v4115 = vld [vmem:[%s13 + $0x208] sm:$0xff]
    %v4116 = vld [vmem:[%s13 + $0x210] sm:$0xff]
    %v4117 = vld [vmem:[%s13 + $0x218] sm:$0xff]
    %v4118 = vld [vmem:[%s13 + $0x220] sm:$0xff]
    %v4119 = vld [vmem:[%s13 + $0x228] sm:$0xff]
    %v4120 = vld [vmem:[%s13 + $0x230] sm:$0xff]
    %v4121 = vld [vmem:[%s13 + $0x238] sm:$0xff]
    %v4122 = vld [vmem:[%s13 + $0x240] sm:$0xff]
    %v4123 = vld [vmem:[%s13 + $0x248] sm:$0xff]
    %v4124 = vld [vmem:[%s13 + $0x250] sm:$0xff]
    %v4125 = vld [vmem:[%s13 + $0x258] sm:$0xff]
    %v4126 = vld [vmem:[%s13 + $0x260] sm:$0xff]
    %v4127 = vld [vmem:[%s13 + $0x268] sm:$0xff]
    %v4128 = vld [vmem:[%s13 + $0x270] sm:$0xff]
    %v4129 = vld [vmem:[%s13 + $0x278] sm:$0xff]
    %v4130 = vld [vmem:[%s13 + $0x280] sm:$0xff]
    %v4131 = vld [vmem:[%s13 + $0x288] sm:$0xff]
    %v4132 = vld [vmem:[%s13 + $0x290] sm:$0xff]
    %v4133 = vld [vmem:[%s13 + $0x298] sm:$0xff]
    %v4134 = vld [vmem:[%s13 + $0x2a0] sm:$0xff]
    %v4135 = vld [vmem:[%s13 + $0x2a8] sm:$0xff]
    %v4136 = vld [vmem:[%s13 + $0x2b0] sm:$0xff]
    %v4137 = vld [vmem:[%s13 + $0x2b8] sm:$0xff]
    %v4138 = vld [vmem:[%s13 + $0x2c0] sm:$0xff]
    %v4139 = vld [vmem:[%s13 + $0x2c8] sm:$0xff]
    %v4140 = vld [vmem:[%s13 + $0x2d0] sm:$0xff]
    %v4141 = vld [vmem:[%s13 + $0x2d8] sm:$0xff]
    %v4142 = vld [vmem:[%s13 + $0x2e0] sm:$0xff]
    %v4143 = vld [vmem:[%s13 + $0x2e8] sm:$0xff]
    %v4144 = vld [vmem:[%s13 + $0x2f0] sm:$0xff]
    %v4145 = vld [vmem:[%s13 + $0x2f8] sm:$0xff]
    %v4146 = vld [vmem:[%s13 + $0x300] sm:$0xff]
    %v4147 = vld [vmem:[%s13 + $0x308] sm:$0xff]
    %v4148 = vld [vmem:[%s13 + $0x310] sm:$0xff]
    %v4149 = vld [vmem:[%s13 + $0x318] sm:$0xff]
    %v4150 = vld [vmem:[%s13 + $0x320] sm:$0xff]
    %v4151 = vld [vmem:[%s13 + $0x328] sm:$0xff]
    %v4152 = vld [vmem:[%s13 + $0x330] sm:$0xff]
    %v4153 = vld [vmem:[%s13 + $0x338] sm:$0xff]
    %v4154 = vld [vmem:[%s13 + $0x340] sm:$0xff]
    %v4155 = vld [vmem:[%s13 + $0x348] sm:$0xff]
    %v4156 = vld [vmem:[%s13 + $0x350] sm:$0xff]
    %v4157 = vld [vmem:[%s13 + $0x358] sm:$0xff]
    %v4158 = vld [vmem:[%s13 + $0x360] sm:$0xff]
    %v4159 = vld [vmem:[%s13 + $0x368] sm:$0xff]
    %v4160 = vld [vmem:[%s13 + $0x370] sm:$0xff]
    %v4161 = vld [vmem:[%s13 + $0x378] sm:$0xff]
    %v4162 = vld [vmem:[%s13 + $0x380] sm:$0xff]
    %v4163 = vld [vmem:[%s13 + $0x388] sm:$0xff]
    %v4164 = vld [vmem:[%s13 + $0x390] sm:$0xff]
    %v4165 = vld [vmem:[%s13 + $0x398] sm:$0xff]
    %v4166 = vld [vmem:[%s13 + $0x3a0] sm:$0xff]
    %v4167 = vld [vmem:[%s13 + $0x3a8] sm:$0xff]
    %v4168 = vld [vmem:[%s13 + $0x3b0] sm:$0xff]
    %v4169 = vld [vmem:[%s13 + $0x3b8] sm:$0xff]
    %v4170 = vld [vmem:[%s13 + $0x3c0] sm:$0xff]
    %v4171 = vld [vmem:[%s13 + $0x3c8] sm:$0xff]
    %v4172 = vld [vmem:[%s13 + $0x3d0] sm:$0xff]
    %v4173 = vld [vmem:[%s13 + $0x3d8] sm:$0xff]
    %v4174 = vld [vmem:[%s13 + $0x3e0] sm:$0xff]
    %v4175 = vld [vmem:[%s13 + $0x3e8] sm:$0xff]
    %v4176 = vld [vmem:[%s13 + $0x3f0] sm:$0xff]
    %v4177 = vld [vmem:[%s13 + $0x3f8] sm:$0xff]
    %v4178 = vld [vmem:[%s13 + $0x400] sm:$0xff]
    %v4179 = vld [vmem:[%s13 + $0x408] sm:$0xff]
    %v4180 = vld [vmem:[%s13 + $0x410] sm:$0xff]
    %v4181 = vld [vmem:[%s13 + $0x418] sm:$0xff]
    %v4182 = vld [vmem:[%s13 + $0x420] sm:$0xff]
    %v4183 = vld [vmem:[%s13 + $0x428] sm:$0xff]
    %v4184 = vld [vmem:[%s13 + $0x430] sm:$0xff]
    %v4185 = vld [vmem:[%s13 + $0x438] sm:$0xff]
    %v4186 = vld [vmem:[%s13 + $0x440] sm:$0xff]
    %v4187 = vld [vmem:[%s13 + $0x448] sm:$0xff]
    %v4188 = vld [vmem:[%s13 + $0x450] sm:$0xff]
    %v4189 = vld [vmem:[%s13 + $0x458] sm:$0xff]
    %v4190 = vld [vmem:[%s13 + $0x460] sm:$0xff]
    %v4191 = vld [vmem:[%s13 + $0x468] sm:$0xff]
    %v4192 = vld [vmem:[%s13 + $0x470] sm:$0xff]
    %v4193 = vld [vmem:[%s13 + $0x478] sm:$0xff]
    %v4194 = vld [vmem:[%s13 + $0x480] sm:$0xff]
    %v4195 = vld [vmem:[%s13 + $0x488] sm:$0xff]
    %v4196 = vld [vmem:[%s13 + $0x490] sm:$0xff]
    %v4197 = vld [vmem:[%s13 + $0x498] sm:$0xff]
    %v4198 = vld [vmem:[%s13 + $0x4a0] sm:$0xff]
    %v4199 = vld [vmem:[%s13 + $0x4a8] sm:$0xff]
    %v4200 = vld [vmem:[%s13 + $0x4b0] sm:$0xff]
    %v4201 = vld [vmem:[%s13 + $0x4b8] sm:$0xff]
    %v4202 = vld [vmem:[%s13 + $0x4c0] sm:$0xff]
    %v4203 = vld [vmem:[%s13 + $0x4c8] sm:$0xff]
    %v4204 = vld [vmem:[%s13 + $0x4d0] sm:$0xff]
    %v4205 = vld [vmem:[%s13 + $0x4d8] sm:$0xff]
    %v4206 = vld [vmem:[%s13 + $0x4e0] sm:$0xff]
    %v4207 = vld [vmem:[%s13 + $0x4e8] sm:$0xff]
    %v4208 = vld [vmem:[%s13 + $0x4f0] sm:$0xff]
    %v4209 = vld [vmem:[%s13 + $0x4f8] sm:$0xff]
    %v4210 = vld [vmem:[%s13 + $0x500] sm:$0xff]
    %v4211 = vld [vmem:[%s13 + $0x508] sm:$0xff]
    %v4212 = vld [vmem:[%s13 + $0x510] sm:$0xff]
    %v4213 = vld [vmem:[%s13 + $0x518] sm:$0xff]
    %v4214 = vld [vmem:[%s13 + $0x520] sm:$0xff]
    %v4215 = vld [vmem:[%s13 + $0x528] sm:$0xff]
    %v4216 = vld [vmem:[%s13 + $0x530] sm:$0xff]
    %v4217 = vld [vmem:[%s13 + $0x538] sm:$0xff]
    %v4218 = vld [vmem:[%s13 + $0x540] sm:$0xff]
    %v4219 = vld [vmem:[%s13 + $0x548] sm:$0xff]
    %v4220 = vld [vmem:[%s13 + $0x550] sm:$0xff]
    %v4221 = vld [vmem:[%s13 + $0x558] sm:$0xff]
    %v4222 = vld [vmem:[%s13 + $0x560] sm:$0xff]
    %v4223 = vld [vmem:[%s13 + $0x568] sm:$0xff]
    %v4224 = vld [vmem:[%s13 + $0x570] sm:$0xff]
    %v4225 = vld [vmem:[%s13 + $0x578] sm:$0xff]
    %v4226 = vld [vmem:[%s13 + $0x580] sm:$0xff]
    %v4227 = vld [vmem:[%s13 + $0x588] sm:$0xff]
    %v4228 = vld [vmem:[%s13 + $0x590] sm:$0xff]
    %v4229 = vld [vmem:[%s13 + $0x598] sm:$0xff]
    %v4230 = vld [vmem:[%s13 + $0x5a0] sm:$0xff]
    %v4231 = vld [vmem:[%s13 + $0x5a8] sm:$0xff]
    %v4232 = vld [vmem:[%s13 + $0x5b0] sm:$0xff]
    %v4233 = vld [vmem:[%s13 + $0x5b8] sm:$0xff]
    %v4234 = vld [vmem:[%s13 + $0x5c0] sm:$0xff]
    %v4235 = vld [vmem:[%s13 + $0x5c8] sm:$0xff]
    %v4236 = vld [vmem:[%s13 + $0x5d0] sm:$0xff]
    %v4237 = vld [vmem:[%s13 + $0x5d8] sm:$0xff]
    %v4238 = vld [vmem:[%s13 + $0x5e0] sm:$0xff]
    %v4239 = vld [vmem:[%s13 + $0x5e8] sm:$0xff]
    %v4240 = vld [vmem:[%s13 + $0x5f0] sm:$0xff]
    %v4241 = vld [vmem:[%s13 + $0x5f8] sm:$0xff]
    %v4242 = vld [vmem:[%s13 + $0x600] sm:$0xff]
    %v4243 = vld [vmem:[%s13 + $0x608] sm:$0xff]
    %v4244 = vld [vmem:[%s13 + $0x610] sm:$0xff]
    %v4245 = vld [vmem:[%s13 + $0x618] sm:$0xff]
    %v4246 = vld [vmem:[%s13 + $0x620] sm:$0xff]
    %v4247 = vld [vmem:[%s13 + $0x628] sm:$0xff]
    %v4248 = vld [vmem:[%s13 + $0x630] sm:$0xff]
    %v4249 = vld [vmem:[%s13 + $0x638] sm:$0xff]
    %v4250 = vld [vmem:[%s13 + $0x640] sm:$0xff]
    %v4251 = vld [vmem:[%s13 + $0x648] sm:$0xff]
    %v4252 = vld [vmem:[%s13 + $0x650] sm:$0xff]
    %v4253 = vld [vmem:[%s13 + $0x658] sm:$0xff]
    %v4254 = vld [vmem:[%s13 + $0x660] sm:$0xff]
    %v4255 = vld [vmem:[%s13 + $0x668] sm:$0xff]
    %v4256 = vld [vmem:[%s13 + $0x670] sm:$0xff]
    %v4257 = vld [vmem:[%s13 + $0x678] sm:$0xff]
    %v4258 = vld [vmem:[%s13 + $0x680] sm:$0xff]
    %v4259 = vld [vmem:[%s13 + $0x688] sm:$0xff]
    %v4260 = vld [vmem:[%s13 + $0x690] sm:$0xff]
    %v4261 = vld [vmem:[%s13 + $0x698] sm:$0xff]
    %v4262 = vld [vmem:[%s13 + $0x6a0] sm:$0xff]
    %v4263 = vld [vmem:[%s13 + $0x6a8] sm:$0xff]
    %v4264 = vld [vmem:[%s13 + $0x6b0] sm:$0xff]
    %v4265 = vld [vmem:[%s13 + $0x6b8] sm:$0xff]
    %v4266 = vld [vmem:[%s13 + $0x6c0] sm:$0xff]
    %v4267 = vld [vmem:[%s13 + $0x6c8] sm:$0xff]
    %v4268 = vld [vmem:[%s13 + $0x6d0] sm:$0xff]
    %v4269 = vld [vmem:[%s13 + $0x6d8] sm:$0xff]
    %v4270 = vld [vmem:[%s13 + $0x6e0] sm:$0xff]
    %v4271 = vld [vmem:[%s13 + $0x6e8] sm:$0xff]
    %v4272 = vld [vmem:[%s13 + $0x6f0] sm:$0xff]
    %v4273 = vld [vmem:[%s13 + $0x6f8] sm:$0xff]
    %v4274 = vld [vmem:[%s13 + $0x700] sm:$0xff]
    %v4275 = vld [vmem:[%s13 + $0x708] sm:$0xff]
    %v4276 = vld [vmem:[%s13 + $0x710] sm:$0xff]
    %v4277 = vld [vmem:[%s13 + $0x718] sm:$0xff]
    %v4278 = vld [vmem:[%s13 + $0x720] sm:$0xff]
    %v4279 = vld [vmem:[%s13 + $0x728] sm:$0xff]
    %v4280 = vld [vmem:[%s13 + $0x730] sm:$0xff]
    %v4281 = vld [vmem:[%s13 + $0x738] sm:$0xff]
    %v4282 = vld [vmem:[%s13 + $0x740] sm:$0xff]
    %v4283 = vld [vmem:[%s13 + $0x748] sm:$0xff]
    %v4284 = vld [vmem:[%s13 + $0x750] sm:$0xff]
    %v4285 = vld [vmem:[%s13 + $0x758] sm:$0xff]
    %v4286 = vld [vmem:[%s13 + $0x760] sm:$0xff]
    %v4287 = vld [vmem:[%s13 + $0x768] sm:$0xff]
    %v4288 = vld [vmem:[%s13 + $0x770] sm:$0xff]
    %v4289 = vld [vmem:[%s13 + $0x778] sm:$0xff]
    %v4290 = vld [vmem:[%s13 + $0x780] sm:$0xff]
    %v4291 = vld [vmem:[%s13 + $0x788] sm:$0xff]
    %v4292 = vld [vmem:[%s13 + $0x790] sm:$0xff]
    %v4293 = vld [vmem:[%s13 + $0x798] sm:$0xff]
    %v4294 = vld [vmem:[%s13 + $0x7a0] sm:$0xff]
    %v4295 = vld [vmem:[%s13 + $0x7a8] sm:$0xff]
    %v4296 = vld [vmem:[%s13 + $0x7b0] sm:$0xff]
    %v4297 = vld [vmem:[%s13 + $0x7b8] sm:$0xff]
    %v4298 = vld [vmem:[%s13 + $0x7c0] sm:$0xff]
    %v4299 = vld [vmem:[%s13 + $0x7c8] sm:$0xff]
    %v4300 = vld [vmem:[%s13 + $0x7d0] sm:$0xff]
    %v4301 = vld [vmem:[%s13 + $0x7d8] sm:$0xff]
    %v4302 = vld [vmem:[%s13 + $0x7e0] sm:$0xff]
    %v4303 = vld [vmem:[%s13 + $0x7e8] sm:$0xff]
    %v4304 = vld [vmem:[%s13 + $0x7f0] sm:$0xff]
    %v4305 = vld [vmem:[%s13 + $0x7f8] sm:$0xff]
    %4306 = vmatprep.subr.mxu0 0.0
    %4307 = vmatpush1.msra.mxu0 %v4066
    %4308 = vmatprep.subr.mxu0 0.0
    %4309 = vmatpush1.msra.mxu0 %v4067
    %4310 = vmatprep.subr.mxu0 0.0
    %4311 = vmatpush1.msra.mxu0 %v4068
    %4312 = vmatprep.subr.mxu0 0.0
    %4313 = vmatpush1.msra.mxu0 %v4069
    %4314 = vmatprep.subr.mxu0 0.0
    %4315 = vmatpush1.msra.mxu0 %v4070
    %4316 = vmatprep.subr.mxu0 0.0
    %4317 = vmatpush1.msra.mxu0 %v4071
    %4318 = vmatprep.subr.mxu0 0.0
    %4319 = vmatpush1.msra.mxu0 %v4072
    %4320 = vmatprep.subr.mxu0 0.0
    %4321 = vmatpush1.msra.mxu0 %v4073
    %4322 = vmatprep.subr.mxu0 0.0
    %4323 = vmatpush1.msra.mxu0 %v4074
    %4324 = vmatprep.subr.mxu0 0.0
    %4325 = vmatpush1.msra.mxu0 %v4075
    %4326 = vmatprep.subr.mxu0 0.0
    %4327 = vmatpush1.msra.mxu0 %v4076
    %4328 = vmatprep.subr.mxu0 0.0
    %4329 = vmatpush1.msra.mxu0 %v4077
    %4330 = vmatprep.subr.mxu0 0.0
    %4331 = vmatpush1.msra.mxu0 %v4078
    %4332 = vmatprep.subr.mxu0 0.0
    %4333 = vmatpush1.msra.mxu0 %v4079
    %4334 = vmatprep.subr.mxu0 0.0
    %4335 = vmatpush1.msra.mxu0 %v4080
    %4336 = vmatprep.subr.mxu0 0.0
    %4337 = vmatpush1.msra.mxu0 %v4081
    %4338 = vmatprep.subr.mxu0 0.0
    %4339 = vmatpush1.msra.mxu0 0.0
    %4340 = vmatprep.subr.mxu0 0.0
    %4341 = vmatpush1.msra.mxu0 0.0
    %4342 = vmatprep.subr.mxu0 0.0
    %4343 = vmatpush1.msra.mxu0 0.0
    %4344 = vmatprep.subr.mxu0 0.0
    %4345 = vmatpush1.msra.mxu0 0.0
    %4346 = vmatprep.subr.mxu0 0.0
    %4347 = vmatpush1.msra.mxu0 0.0
    %4348 = vmatprep.subr.mxu0 0.0
    %4349 = vmatpush1.msra.mxu0 0.0
    %4350 = vmatprep.subr.mxu0 0.0
    %4351 = vmatpush1.msra.mxu0 0.0
    %4352 = vmatprep.subr.mxu0 0.0
    %4353 = vmatpush1.msra.mxu0 0.0
    %4354 = vmatprep.subr.mxu0 0.0
    %4355 = vmatpush1.msra.mxu0 0.0
    %4356 = vmatprep.subr.mxu0 0.0
    %4357 = vmatpush1.msra.mxu0 0.0
    %4358 = vmatprep.subr.mxu0 0.0
    %4359 = vmatpush1.msra.mxu0 0.0
    %4360 = vmatprep.subr.mxu0 0.0
    %4361 = vmatpush1.msra.mxu0 0.0
    %4362 = vmatprep.subr.mxu0 0.0
    %4363 = vmatpush1.msra.mxu0 0.0
    %4364 = vmatprep.subr.mxu0 0.0
    %4365 = vmatpush1.msra.mxu0 0.0
    %4366 = vmatprep.subr.mxu0 0.0
    %4367 = vmatpush1.msra.mxu0 0.0
    %4368 = vmatprep.subr.mxu0 0.0
    %4369 = vmatpush1.msra.mxu0 0.0
    %4370 = vmatprep.mubr.f32.mxu0 0.0
    %4371 = vmatmul.mubr.f32.gmra.mrb[0].mxu0 %v3981
    %v4372 = vpop.f32.mrb[0].mxu0
    %v4373 = vadd.f32 0.0, %v4372
    %v4374 = vpop.f32.mrb[0].mxu0
    %4375 = vdwg.mxu0
    %4376 = vmatprep.subr.mxu0 0.0
    %4377 = vmatpush1.msra.mxu0 %v4050
    %4378 = vmatprep.subr.mxu0 0.0
    %4379 = vmatpush1.msra.mxu0 %v4051
    %4380 = vmatprep.subr.mxu0 0.0
    %4381 = vmatpush1.msra.mxu0 %v4052
    %4382 = vmatprep.subr.mxu0 0.0
    %4383 = vmatpush1.msra.mxu0 %v4053
    %4384 = vmatprep.subr.mxu0 0.0
    %4385 = vmatpush1.msra.mxu0 %v4054
    %4386 = vmatprep.subr.mxu0 0.0
    %4387 = vmatpush1.msra.mxu0 %v4055
    %4388 = vmatprep.subr.mxu0 0.0
    %4389 = vmatpush1.msra.mxu0 %v4056
    %4390 = vmatprep.subr.mxu0 0.0
    %4391 = vmatpush1.msra.mxu0 %v4057
    %4392 = vmatprep.subr.mxu0 0.0
    %4393 = vmatpush1.msra.mxu0 %v4058
    %4394 = vmatprep.subr.mxu0 0.0
    %4395 = vmatpush1.msra.mxu0 %v4059
    %4396 = vmatprep.subr.mxu0 0.0
    %4397 = vmatpush1.msra.mxu0 %v4060
    %4398 = vmatprep.subr.mxu0 0.0
    %4399 = vmatpush1.msra.mxu0 %v4061
    %4400 = vmatprep.subr.mxu0 0.0
    %4401 = vmatpush1.msra.mxu0 %v4062
    %4402 = vmatprep.subr.mxu0 0.0
    %4403 = vmatpush1.msra.mxu0 %v4063
    %4404 = vmatprep.subr.mxu0 0.0
    %4405 = vmatpush1.msra.mxu0 %v4064
    %4406 = vmatprep.subr.mxu0 0.0
    %4407 = vmatpush1.msra.mxu0 %v4065
    %4408 = vmatprep.subr.mxu0 0.0
    %4409 = vmatpush1.msra.mxu0 0.0
    %4410 = vmatprep.subr.mxu0 0.0
    %4411 = vmatpush1.msra.mxu0 0.0
    %4412 = vmatprep.subr.mxu0 0.0
    %4413 = vmatpush1.msra.mxu0 0.0
    %4414 = vmatprep.subr.mxu0 0.0
    %4415 = vmatpush1.msra.mxu0 0.0
    %4416 = vmatprep.subr.mxu0 0.0
    %4417 = vmatpush1.msra.mxu0 0.0
    %4418 = vmatprep.subr.mxu0 0.0
    %4419 = vmatpush1.msra.mxu0 0.0
    %4420 = vmatprep.subr.mxu0 0.0
    %4421 = vmatpush1.msra.mxu0 0.0
    %4422 = vmatprep.subr.mxu0 0.0
    %4423 = vmatpush1.msra.mxu0 0.0
    %4424 = vmatprep.subr.mxu0 0.0
    %4425 = vmatpush1.msra.mxu0 0.0
    %4426 = vmatprep.subr.mxu0 0.0
    %4427 = vmatpush1.msra.mxu0 0.0
    %4428 = vmatprep.subr.mxu0 0.0
    %4429 = vmatpush1.msra.mxu0 0.0
    %4430 = vmatprep.subr.mxu0 0.0
    %4431 = vmatpush1.msra.mxu0 0.0
    %4432 = vmatprep.subr.mxu0 0.0
    %4433 = vmatpush1.msra.mxu0 0.0
    %4434 = vmatprep.subr.mxu0 0.0
    %4435 = vmatpush1.msra.mxu0 0.0
    %4436 = vmatprep.subr.mxu0 0.0
    %4437 = vmatpush1.msra.mxu0 0.0
    %4438 = vmatprep.subr.mxu0 0.0
    %4439 = vmatpush1.msra.mxu0 0.0
    %4440 = vmatprep.mubr.f32.mxu0 0.0
    %4441 = vmatmul.mubr.f32.gmra.mrb[0].mxu0 %v3973
    %v4442 = vpop.f32.mrb[0].mxu0
    %v4443 = vadd.f32 %v4373, %v4442
    %v4444 = vpop.f32.mrb[0].mxu0
    %4445 = vdwg.mxu0
    %4446 = vmatprep.subr.mxu0 0.0
    %4447 = vmatpush1.msra.mxu0 %v4082
    %4448 = vmatprep.subr.mxu0 0.0
    %4449 = vmatpush1.msra.mxu0 %v4083
    %4450 = vmatprep.subr.mxu0 0.0
    %4451 = vmatpush1.msra.mxu0 %v4084
    %4452 = vmatprep.subr.mxu0 0.0
    %4453 = vmatpush1.msra.mxu0 %v4085
    %4454 = vmatprep.subr.mxu0 0.0
    %4455 = vmatpush1.msra.mxu0 %v4086
    %4456 = vmatprep.subr.mxu0 0.0
    %4457 = vmatpush1.msra.mxu0 %v4087
    %4458 = vmatprep.subr.mxu0 0.0
    %4459 = vmatpush1.msra.mxu0 %v4088
    %4460 = vmatprep.subr.mxu0 0.0
    %4461 = vmatpush1.msra.mxu0 %v4089
    %4462 = vmatprep.subr.mxu0 0.0
    %4463 = vmatpush1.msra.mxu0 %v4090
    %4464 = vmatprep.subr.mxu0 0.0
    %4465 = vmatpush1.msra.mxu0 %v4091
    %4466 = vmatprep.subr.mxu0 0.0
    %4467 = vmatpush1.msra.mxu0 %v4092
    %4468 = vmatprep.subr.mxu0 0.0
    %4469 = vmatpush1.msra.mxu0 %v4093
    %4470 = vmatprep.subr.mxu0 0.0
    %4471 = vmatpush1.msra.mxu0 %v4094
    %4472 = vmatprep.subr.mxu0 0.0
    %4473 = vmatpush1.msra.mxu0 %v4095
    %4474 = vmatprep.subr.mxu0 0.0
    %4475 = vmatpush1.msra.mxu0 %v4096
    %4476 = vmatprep.subr.mxu0 0.0
    %4477 = vmatpush1.msra.mxu0 %v4097
    %4478 = vmatprep.subr.mxu0 0.0
    %4479 = vmatpush1.msra.mxu0 0.0
    %4480 = vmatprep.subr.mxu0 0.0
    %4481 = vmatpush1.msra.mxu0 0.0
    %4482 = vmatprep.subr.mxu0 0.0
    %4483 = vmatpush1.msra.mxu0 0.0
    %4484 = vmatprep.subr.mxu0 0.0
    %4485 = vmatpush1.msra.mxu0 0.0
    %4486 = vmatprep.subr.mxu0 0.0
    %4487 = vmatpush1.msra.mxu0 0.0
    %4488 = vmatprep.subr.mxu0 0.0
    %4489 = vmatpush1.msra.mxu0 0.0
    %4490 = vmatprep.subr.mxu0 0.0
    %4491 = vmatpush1.msra.mxu0 0.0
    %4492 = vmatprep.subr.mxu0 0.0
    %4493 = vmatpush1.msra.mxu0 0.0
    %4494 = vmatprep.subr.mxu0 0.0
    %4495 = vmatpush1.msra.mxu0 0.0
    %4496 = vmatprep.subr.mxu0 0.0
    %4497 = vmatpush1.msra.mxu0 0.0
    %4498 = vmatprep.subr.mxu0 0.0
    %4499 = vmatpush1.msra.mxu0 0.0
    %4500 = vmatprep.subr.mxu0 0.0
    %4501 = vmatpush1.msra.mxu0 0.0
    %4502 = vmatprep.subr.mxu0 0.0
    %4503 = vmatpush1.msra.mxu0 0.0
    %4504 = vmatprep.subr.mxu0 0.0
    %4505 = vmatpush1.msra.mxu0 0.0
    %4506 = vmatprep.subr.mxu0 0.0
    %4507 = vmatpush1.msra.mxu0 0.0
    %4508 = vmatprep.subr.mxu0 0.0
    %4509 = vmatpush1.msra.mxu0 0.0
    %4510 = vmatprep.mubr.f32.mxu0 0.0
    %4511 = vmatmul.mubr.f32.gmra.mrb[0].mxu0 %v3980
    %v4512 = vpop.f32.mrb[0].mxu0
    %v4513 = vadd.f32 0.0, %v4512
    %v4514 = vpop.f32.mrb[0].mxu0
    %4515 = vdwg.mxu0
    %v4516 = vadd.f32 %v4443, %v4513
    %4517 = vmatprep.subr.mxu0 0.0
    %4518 = vmatpush1.msra.mxu0 %v4098
    %4519 = vmatprep.subr.mxu0 0.0
    %4520 = vmatpush1.msra.mxu0 %v4099
    %4521 = vmatprep.subr.mxu0 0.0
    %4522 = vmatpush1.msra.mxu0 %v4100
    %4523 = vmatprep.subr.mxu0 0.0
    %4524 = vmatpush1.msra.mxu0 %v4101
    %4525 = vmatprep.subr.mxu0 0.0
    %4526 = vmatpush1.msra.mxu0 %v4102
    %4527 = vmatprep.subr.mxu0 0.0
    %4528 = vmatpush1.msra.mxu0 %v4103
    %4529 = vmatprep.subr.mxu0 0.0
    %4530 = vmatpush1.msra.mxu0 %v4104
    %4531 = vmatprep.subr.mxu0 0.0
    %4532 = vmatpush1.msra.mxu0 %v4105
    %4533 = vmatprep.subr.mxu0 0.0
    %4534 = vmatpush1.msra.mxu0 %v4106
    %4535 = vmatprep.subr.mxu0 0.0
    %4536 = vmatpush1.msra.mxu0 %v4107
    %4537 = vmatprep.subr.mxu0 0.0
    %4538 = vmatpush1.msra.mxu0 %v4108
    %4539 = vmatprep.subr.mxu0 0.0
    %4540 = vmatpush1.msra.mxu0 %v4109
    %4541 = vmatprep.subr.mxu0 0.0
    %4542 = vmatpush1.msra.mxu0 %v4110
    %4543 = vmatprep.subr.mxu0 0.0
    %4544 = vmatpush1.msra.mxu0 %v4111
    %4545 = vmatprep.subr.mxu0 0.0
    %4546 = vmatpush1.msra.mxu0 %v4112
    %4547 = vmatprep.subr.mxu0 0.0
    %4548 = vmatpush1.msra.mxu0 %v4113
    %4549 = vmatprep.subr.mxu0 0.0
    %4550 = vmatpush1.msra.mxu0 0.0
    %4551 = vmatprep.subr.mxu0 0.0
    %4552 = vmatpush1.msra.mxu0 0.0
    %4553 = vmatprep.subr.mxu0 0.0
    %4554 = vmatpush1.msra.mxu0 0.0
    %4555 = vmatprep.subr.mxu0 0.0
    %4556 = vmatpush1.msra.mxu0 0.0
    %4557 = vmatprep.subr.mxu0 0.0
    %4558 = vmatpush1.msra.mxu0 0.0
    %4559 = vmatprep.subr.mxu0 0.0
    %4560 = vmatpush1.msra.mxu0 0.0
    %4561 = vmatprep.subr.mxu0 0.0
    %4562 = vmatpush1.msra.mxu0 0.0
    %4563 = vmatprep.subr.mxu0 0.0
    %4564 = vmatpush1.msra.mxu0 0.0
    %4565 = vmatprep.subr.mxu0 0.0
    %4566 = vmatpush1.msra.mxu0 0.0
    %4567 = vmatprep.subr.mxu0 0.0
    %4568 = vmatpush1.msra.mxu0 0.0
    %4569 = vmatprep.subr.mxu0 0.0
    %4570 = vmatpush1.msra.mxu0 0.0
    %4571 = vmatprep.subr.mxu0 0.0
    %4572 = vmatpush1.msra.mxu0 0.0
    %4573 = vmatprep.subr.mxu0 0.0
    %4574 = vmatpush1.msra.mxu0 0.0
    %4575 = vmatprep.subr.mxu0 0.0
    %4576 = vmatpush1.msra.mxu0 0.0
    %4577 = vmatprep.subr.mxu0 0.0
    %4578 = vmatpush1.msra.mxu0 0.0
    %4579 = vmatprep.subr.mxu0 0.0
    %4580 = vmatpush1.msra.mxu0 0.0
    %4581 = vmatprep.mubr.f32.mxu0 0.0
    %4582 = vmatmul.mubr.f32.gmra.mrb[0].mxu0 %v3982
    %v4583 = vpop.f32.mrb[0].mxu0
    %v4584 = vadd.f32 0.0, %v4583
    %v4585 = vpop.f32.mrb[0].mxu0
    %4586 = vdwg.mxu0
    %v4587 = vadd.f32 %v4516, %v4584
    %4588 = vmatprep.subr.mxu0 0.0
    %4589 = vmatpush1.msra.mxu0 %v4114
    %4590 = vmatprep.subr.mxu0 0.0
    %4591 = vmatpush1.msra.mxu0 %v4115
    %4592 = vmatprep.subr.mxu0 0.0
    %4593 = vmatpush1.msra.mxu0 %v4116
    %4594 = vmatprep.subr.mxu0 0.0
    %4595 = vmatpush1.msra.mxu0 %v4117
    %4596 = vmatprep.subr.mxu0 0.0
    %4597 = vmatpush1.msra.mxu0 %v4118
    %4598 = vmatprep.subr.mxu0 0.0
    %4599 = vmatpush1.msra.mxu0 %v4119
    %4600 = vmatprep.subr.mxu0 0.0
    %4601 = vmatpush1.msra.mxu0 %v4120
    %4602 = vmatprep.subr.mxu0 0.0
    %4603 = vmatpush1.msra.mxu0 %v4121
    %4604 = vmatprep.subr.mxu0 0.0
    %4605 = vmatpush1.msra.mxu0 %v4122
    %4606 = vmatprep.subr.mxu0 0.0
    %4607 = vmatpush1.msra.mxu0 %v4123
    %4608 = vmatprep.subr.mxu0 0.0
    %4609 = vmatpush1.msra.mxu0 %v4124
    %4610 = vmatprep.subr.mxu0 0.0
    %4611 = vmatpush1.msra.mxu0 %v4125
    %4612 = vmatprep.subr.mxu0 0.0
    %4613 = vmatpush1.msra.mxu0 %v4126
    %4614 = vmatprep.subr.mxu0 0.0
    %4615 = vmatpush1.msra.mxu0 %v4127
    %4616 = vmatprep.subr.mxu0 0.0
    %4617 = vmatpush1.msra.mxu0 %v4128
    %4618 = vmatprep.subr.mxu0 0.0
    %4619 = vmatpush1.msra.mxu0 %v4129
    %4620 = vmatprep.subr.mxu0 0.0
    %4621 = vmatpush1.msra.mxu0 0.0
    %4622 = vmatprep.subr.mxu0 0.0
    %4623 = vmatpush1.msra.mxu0 0.0
    %4624 = vmatprep.subr.mxu0 0.0
    %4625 = vmatpush1.msra.mxu0 0.0
    %4626 = vmatprep.subr.mxu0 0.0
    %4627 = vmatpush1.msra.mxu0 0.0
    %4628 = vmatprep.subr.mxu0 0.0
    %4629 = vmatpush1.msra.mxu0 0.0
    %4630 = vmatprep.subr.mxu0 0.0
    %4631 = vmatpush1.msra.mxu0 0.0
    %4632 = vmatprep.subr.mxu0 0.0
    %4633 = vmatpush1.msra.mxu0 0.0
    %4634 = vmatprep.subr.mxu0 0.0
    %4635 = vmatpush1.msra.mxu0 0.0
    %4636 = vmatprep.subr.mxu0 0.0
    %4637 = vmatpush1.msra.mxu0 0.0
    %4638 = vmatprep.subr.mxu0 0.0
    %4639 = vmatpush1.msra.mxu0 0.0
    %4640 = vmatprep.subr.mxu0 0.0
    %4641 = vmatpush1.msra.mxu0 0.0
    %4642 = vmatprep.subr.mxu0 0.0
    %4643 = vmatpush1.msra.mxu0 0.0
    %4644 = vmatprep.subr.mxu0 0.0
    %4645 = vmatpush1.msra.mxu0 0.0
    %4646 = vmatprep.subr.mxu0 0.0
    %4647 = vmatpush1.msra.mxu0 0.0
    %4648 = vmatprep.subr.mxu0 0.0
    %4649 = vmatpush1.msra.mxu0 0.0
    %4650 = vmatprep.subr.mxu0 0.0
    %4651 = vmatpush1.msra.mxu0 0.0
    %4652 = vmatprep.mubr.f32.mxu0 0.0
    %4653 = vmatmul.mubr.f32.gmra.mrb[0].mxu0 %v3990
    %v4654 = vpop.f32.mrb[0].mxu0
    %v4655 = vadd.f32 0.0, %v4654
    %v4656 = vpop.f32.mrb[0].mxu0
    %4657 = vdwg.mxu0
    %v4658 = vadd.f32 %v4587, %v4655
    %4659 = vmatprep.subr.mxu0 0.0
    %4660 = vmatpush1.msra.mxu0 %v4130
    %4661 = vmatprep.subr.mxu0 0.0
    %4662 = vmatpush1.msra.mxu0 %v4131
    %4663 = vmatprep.subr.mxu0 0.0
    %4664 = vmatpush1.msra.mxu0 %v4132
    %4665 = vmatprep.subr.mxu0 0.0
    %4666 = vmatpush1.msra.mxu0 %v4133
    %4667 = vmatprep.subr.mxu0 0.0
    %4668 = vmatpush1.msra.mxu0 %v4134
    %4669 = vmatprep.subr.mxu0 0.0
    %4670 = vmatpush1.msra.mxu0 %v4135
    %4671 = vmatprep.subr.mxu0 0.0
    %4672 = vmatpush1.msra.mxu0 %v4136
    %4673 = vmatprep.subr.mxu0 0.0
    %4674 = vmatpush1.msra.mxu0 %v4137
    %4675 = vmatprep.subr.mxu0 0.0
    %4676 = vmatpush1.msra.mxu0 %v4138
    %4677 = vmatprep.subr.mxu0 0.0
    %4678 = vmatpush1.msra.mxu0 %v4139
    %4679 = vmatprep.subr.mxu0 0.0
    %4680 = vmatpush1.msra.mxu0 %v4140
    %4681 = vmatprep.subr.mxu0 0.0
    %4682 = vmatpush1.msra.mxu0 %v4141
    %4683 = vmatprep.subr.mxu0 0.0
    %4684 = vmatpush1.msra.mxu0 %v4142
    %4685 = vmatprep.subr.mxu0 0.0
    %4686 = vmatpush1.msra.mxu0 %v4143
    %4687 = vmatprep.subr.mxu0 0.0
    %4688 = vmatpush1.msra.mxu0 %v4144
    %4689 = vmatprep.subr.mxu0 0.0
    %4690 = vmatpush1.msra.mxu0 %v4145
    %4691 = vmatprep.subr.mxu0 0.0
    %4692 = vmatpush1.msra.mxu0 0.0
    %4693 = vmatprep.subr.mxu0 0.0
    %4694 = vmatpush1.msra.mxu0 0.0
    %4695 = vmatprep.subr.mxu0 0.0
    %4696 = vmatpush1.msra.mxu0 0.0
    %4697 = vmatprep.subr.mxu0 0.0
    %4698 = vmatpush1.msra.mxu0 0.0
    %4699 = vmatprep.subr.mxu0 0.0
    %4700 = vmatpush1.msra.mxu0 0.0
    %4701 = vmatprep.subr.mxu0 0.0
    %4702 = vmatpush1.msra.mxu0 0.0
    %4703 = vmatprep.subr.mxu0 0.0
    %4704 = vmatpush1.msra.mxu0 0.0
    %4705 = vmatprep.subr.mxu0 0.0
    %4706 = vmatpush1.msra.mxu0 0.0
    %4707 = vmatprep.subr.mxu0 0.0
    %4708 = vmatpush1.msra.mxu0 0.0
    %4709 = vmatprep.subr.mxu0 0.0
    %4710 = vmatpush1.msra.mxu0 0.0
    %4711 = vmatprep.subr.mxu0 0.0
    %4712 = vmatpush1.msra.mxu0 0.0
    %4713 = vmatprep.subr.mxu0 0.0
    %4714 = vmatpush1.msra.mxu0 0.0
    %4715 = vmatprep.subr.mxu0 0.0
    %4716 = vmatpush1.msra.mxu0 0.0
    %4717 = vmatprep.subr.mxu0 0.0
    %4718 = vmatpush1.msra.mxu0 0.0
    %4719 = vmatprep.subr.mxu0 0.0
    %4720 = vmatpush1.msra.mxu0 0.0
    %4721 = vmatprep.subr.mxu0 0.0
    %4722 = vmatpush1.msra.mxu0 0.0
    %4723 = vmatprep.mubr.f32.mxu0 0.0
    %4724 = vmatmul.mubr.f32.gmra.mrb[0].mxu0 %v3998
    %v4725 = vpop.f32.mrb[0].mxu0
    %v4726 = vadd.f32 0.0, %v4725
    %v4727 = vpop.f32.mrb[0].mxu0
    %4728 = vdwg.mxu0
    %v4729 = vadd.f32 %v4658, %v4726
    %4730 = vmatprep.subr.mxu0 0.0
    %4731 = vmatpush1.msra.mxu0 %v4146
    %4732 = vmatprep.subr.mxu0 0.0
    %4733 = vmatpush1.msra.mxu0 %v4147
    %4734 = vmatprep.subr.mxu0 0.0
    %4735 = vmatpush1.msra.mxu0 %v4148
    %4736 = vmatprep.subr.mxu0 0.0
    %4737 = vmatpush1.msra.mxu0 %v4149
    %4738 = vmatprep.subr.mxu0 0.0
    %4739 = vmatpush1.msra.mxu0 %v4150
    %4740 = vmatprep.subr.mxu0 0.0
    %4741 = vmatpush1.msra.mxu0 %v4151
    %4742 = vmatprep.subr.mxu0 0.0
    %4743 = vmatpush1.msra.mxu0 %v4152
    %4744 = vmatprep.subr.mxu0 0.0
    %4745 = vmatpush1.msra.mxu0 %v4153
    %4746 = vmatprep.subr.mxu0 0.0
    %4747 = vmatpush1.msra.mxu0 %v4154
    %4748 = vmatprep.subr.mxu0 0.0
    %4749 = vmatpush1.msra.mxu0 %v4155
    %4750 = vmatprep.subr.mxu0 0.0
    %4751 = vmatpush1.msra.mxu0 %v4156
    %4752 = vmatprep.subr.mxu0 0.0
    %4753 = vmatpush1.msra.mxu0 %v4157
    %4754 = vmatprep.subr.mxu0 0.0
    %4755 = vmatpush1.msra.mxu0 %v4158
    %4756 = vmatprep.subr.mxu0 0.0
    %4757 = vmatpush1.msra.mxu0 %v4159
    %4758 = vmatprep.subr.mxu0 0.0
    %4759 = vmatpush1.msra.mxu0 %v4160
    %4760 = vmatprep.subr.mxu0 0.0
    %4761 = vmatpush1.msra.mxu0 %v4161
    %4762 = vmatprep.subr.mxu0 0.0
    %4763 = vmatpush1.msra.mxu0 0.0
    %4764 = vmatprep.subr.mxu0 0.0
    %4765 = vmatpush1.msra.mxu0 0.0
    %4766 = vmatprep.subr.mxu0 0.0
    %4767 = vmatpush1.msra.mxu0 0.0
    %4768 = vmatprep.subr.mxu0 0.0
    %4769 = vmatpush1.msra.mxu0 0.0
    %4770 = vmatprep.subr.mxu0 0.0
    %4771 = vmatpush1.msra.mxu0 0.0
    %4772 = vmatprep.subr.mxu0 0.0
    %4773 = vmatpush1.msra.mxu0 0.0
    %4774 = vmatprep.subr.mxu0 0.0
    %4775 = vmatpush1.msra.mxu0 0.0
    %4776 = vmatprep.subr.mxu0 0.0
    %4777 = vmatpush1.msra.mxu0 0.0
    %4778 = vmatprep.subr.mxu0 0.0
    %4779 = vmatpush1.msra.mxu0 0.0
    %4780 = vmatprep.subr.mxu0 0.0
    %4781 = vmatpush1.msra.mxu0 0.0
    %4782 = vmatprep.subr.mxu0 0.0
    %4783 = vmatpush1.msra.mxu0 0.0
    %4784 = vmatprep.subr.mxu0 0.0
    %4785 = vmatpush1.msra.mxu0 0.0
    %4786 = vmatprep.subr.mxu0 0.0
    %4787 = vmatpush1.msra.mxu0 0.0
    %4788 = vmatprep.subr.mxu0 0.0
    %4789 = vmatpush1.msra.mxu0 0.0
    %4790 = vmatprep.subr.mxu0 0.0
    %4791 = vmatpush1.msra.mxu0 0.0
    %4792 = vmatprep.subr.mxu0 0.0
    %4793 = vmatpush1.msra.mxu0 0.0
    %4794 = vmatprep.mubr.f32.mxu0 0.0
    %4795 = vmatmul.mubr.f32.gmra.mrb[0].mxu0 %v3997
    %v4796 = vpop.f32.mrb[0].mxu0
    %v4797 = vadd.f32 0.0, %v4796
    %v4798 = vpop.f32.mrb[0].mxu0
    %4799 = vdwg.mxu0
    %v4800 = vadd.f32 %v4729, %v4797
    %4801 = vmatprep.subr.mxu0 0.0
    %4802 = vmatpush1.msra.mxu0 %v4162
    %4803 = vmatprep.subr.mxu0 0.0
    %4804 = vmatpush1.msra.mxu0 %v4163
    %4805 = vmatprep.subr.mxu0 0.0
    %4806 = vmatpush1.msra.mxu0 %v4164
    %4807 = vmatprep.subr.mxu0 0.0
    %4808 = vmatpush1.msra.mxu0 %v4165
    %4809 = vmatprep.subr.mxu0 0.0
    %4810 = vmatpush1.msra.mxu0 %v4166
    %4811 = vmatprep.subr.mxu0 0.0
    %4812 = vmatpush1.msra.mxu0 %v4167
    %4813 = vmatprep.subr.mxu0 0.0
    %4814 = vmatpush1.msra.mxu0 %v4168
    %4815 = vmatprep.subr.mxu0 0.0
    %4816 = vmatpush1.msra.mxu0 %v4169
    %4817 = vmatprep.subr.mxu0 0.0
    %4818 = vmatpush1.msra.mxu0 %v4170
    %4819 = vmatprep.subr.mxu0 0.0
    %4820 = vmatpush1.msra.mxu0 %v4171
    %4821 = vmatprep.subr.mxu0 0.0
    %4822 = vmatpush1.msra.mxu0 %v4172
    %4823 = vmatprep.subr.mxu0 0.0
    %4824 = vmatpush1.msra.mxu0 %v4173
    %4825 = vmatprep.subr.mxu0 0.0
    %4826 = vmatpush1.msra.mxu0 %v4174
    %4827 = vmatprep.subr.mxu0 0.0
    %4828 = vmatpush1.msra.mxu0 %v4175
    %4829 = vmatprep.subr.mxu0 0.0
    %4830 = vmatpush1.msra.mxu0 %v4176
    %4831 = vmatprep.subr.mxu0 0.0
    %4832 = vmatpush1.msra.mxu0 %v4177
    %4833 = vmatprep.subr.mxu0 0.0
    %4834 = vmatpush1.msra.mxu0 0.0
    %4835 = vmatprep.subr.mxu0 0.0
    %4836 = vmatpush1.msra.mxu0 0.0
    %4837 = vmatprep.subr.mxu0 0.0
    %4838 = vmatpush1.msra.mxu0 0.0
    %4839 = vmatprep.subr.mxu0 0.0
    %4840 = vmatpush1.msra.mxu0 0.0
    %4841 = vmatprep.subr.mxu0 0.0
    %4842 = vmatpush1.msra.mxu0 0.0
    %4843 = vmatprep.subr.mxu0 0.0
    %4844 = vmatpush1.msra.mxu0 0.0
    %4845 = vmatprep.subr.mxu0 0.0
    %4846 = vmatpush1.msra.mxu0 0.0
    %4847 = vmatprep.subr.mxu0 0.0
    %4848 = vmatpush1.msra.mxu0 0.0
    %4849 = vmatprep.subr.mxu0 0.0
    %4850 = vmatpush1.msra.mxu0 0.0
    %4851 = vmatprep.subr.mxu0 0.0
    %4852 = vmatpush1.msra.mxu0 0.0
    %4853 = vmatprep.subr.mxu0 0.0
    %4854 = vmatpush1.msra.mxu0 0.0
    %4855 = vmatprep.subr.mxu0 0.0
    %4856 = vmatpush1.msra.mxu0 0.0
    %4857 = vmatprep.subr.mxu0 0.0
    %4858 = vmatpush1.msra.mxu0 0.0
    %4859 = vmatprep.subr.mxu0 0.0
    %4860 = vmatpush1.msra.mxu0 0.0
    %4861 = vmatprep.subr.mxu0 0.0
    %4862 = vmatpush1.msra.mxu0 0.0
    %4863 = vmatprep.subr.mxu0 0.0
    %4864 = vmatpush1.msra.mxu0 0.0
    %4865 = vmatprep.mubr.f32.mxu0 0.0
    %4866 = vmatmul.mubr.f32.gmra.mrb[0].mxu0 %v3999
    %v4867 = vpop.f32.mrb[0].mxu0
    %v4868 = vadd.f32 0.0, %v4867
    %v4869 = vpop.f32.mrb[0].mxu0
    %4870 = vdwg.mxu0
    %v4871 = vadd.f32 %v4800, %v4868
    %4872 = vmatprep.subr.mxu0 0.0
    %4873 = vmatpush1.msra.mxu0 %v4178
    %4874 = vmatprep.subr.mxu0 0.0
    %4875 = vmatpush1.msra.mxu0 %v4179
    %4876 = vmatprep.subr.mxu0 0.0
    %4877 = vmatpush1.msra.mxu0 %v4180
    %4878 = vmatprep.subr.mxu0 0.0
    %4879 = vmatpush1.msra.mxu0 %v4181
    %4880 = vmatprep.subr.mxu0 0.0
    %4881 = vmatpush1.msra.mxu0 %v4182
    %4882 = vmatprep.subr.mxu0 0.0
    %4883 = vmatpush1.msra.mxu0 %v4183
    %4884 = vmatprep.subr.mxu0 0.0
    %4885 = vmatpush1.msra.mxu0 %v4184
    %4886 = vmatprep.subr.mxu0 0.0
    %4887 = vmatpush1.msra.mxu0 %v4185
    %4888 = vmatprep.subr.mxu0 0.0
    %4889 = vmatpush1.msra.mxu0 %v4186
    %4890 = vmatprep.subr.mxu0 0.0
    %4891 = vmatpush1.msra.mxu0 %v4187
    %4892 = vmatprep.subr.mxu0 0.0
    %4893 = vmatpush1.msra.mxu0 %v4188
    %4894 = vmatprep.subr.mxu0 0.0
    %4895 = vmatpush1.msra.mxu0 %v4189
    %4896 = vmatprep.subr.mxu0 0.0
    %4897 = vmatpush1.msra.mxu0 %v4190
    %4898 = vmatprep.subr.mxu0 0.0
    %4899 = vmatpush1.msra.mxu0 %v4191
    %4900 = vmatprep.subr.mxu0 0.0
    %4901 = vmatpush1.msra.mxu0 %v4192
    %4902 = vmatprep.subr.mxu0 0.0
    %4903 = vmatpush1.msra.mxu0 %v4193
    %4904 = vmatprep.subr.mxu0 0.0
    %4905 = vmatpush1.msra.mxu0 0.0
    %4906 = vmatprep.subr.mxu0 0.0
    %4907 = vmatpush1.msra.mxu0 0.0
    %4908 = vmatprep.subr.mxu0 0.0
    %4909 = vmatpush1.msra.mxu0 0.0
    %4910 = vmatprep.subr.mxu0 0.0
    %4911 = vmatpush1.msra.mxu0 0.0
    %4912 = vmatprep.subr.mxu0 0.0
    %4913 = vmatpush1.msra.mxu0 0.0
    %4914 = vmatprep.subr.mxu0 0.0
    %4915 = vmatpush1.msra.mxu0 0.0
    %4916 = vmatprep.subr.mxu0 0.0
    %4917 = vmatpush1.msra.mxu0 0.0
    %4918 = vmatprep.subr.mxu0 0.0
    %4919 = vmatpush1.msra.mxu0 0.0
    %4920 = vmatprep.subr.mxu0 0.0
    %4921 = vmatpush1.msra.mxu0 0.0
    %4922 = vmatprep.subr.mxu0 0.0
    %4923 = vmatpush1.msra.mxu0 0.0
    %4924 = vmatprep.subr.mxu0 0.0
    %4925 = vmatpush1.msra.mxu0 0.0
    %4926 = vmatprep.subr.mxu0 0.0
    %4927 = vmatpush1.msra.mxu0 0.0
    %4928 = vmatprep.subr.mxu0 0.0
    %4929 = vmatpush1.msra.mxu0 0.0
    %4930 = vmatprep.subr.mxu0 0.0
    %4931 = vmatpush1.msra.mxu0 0.0
    %4932 = vmatprep.subr.mxu0 0.0
    %4933 = vmatpush1.msra.mxu0 0.0
    %4934 = vmatprep.subr.mxu0 0.0
    %4935 = vmatpush1.msra.mxu0 0.0
    %4936 = vmatprep.mubr.f32.mxu0 0.0
    %4937 = vmatmul.mubr.f32.gmra.mrb[0].mxu0 %v4007
    %v4938 = vpop.f32.mrb[0].mxu0
    %v4939 = vadd.f32 0.0, %v4938
    %v4940 = vpop.f32.mrb[0].mxu0
    %4941 = vdwg.mxu0
    %v4942 = vadd.f32 %v4871, %v4939
    %4943 = vmatprep.subr.mxu0 0.0
    %4944 = vmatpush1.msra.mxu0 %v4194
    %4945 = vmatprep.subr.mxu0 0.0
    %4946 = vmatpush1.msra.mxu0 %v4195
    %4947 = vmatprep.subr.mxu0 0.0
    %4948 = vmatpush1.msra.mxu0 %v4196
    %4949 = vmatprep.subr.mxu0 0.0
    %4950 = vmatpush1.msra.mxu0 %v4197
    %4951 = vmatprep.subr.mxu0 0.0
    %4952 = vmatpush1.msra.mxu0 %v4198
    %4953 = vmatprep.subr.mxu0 0.0
    %4954 = vmatpush1.msra.mxu0 %v4199
    %4955 = vmatprep.subr.mxu0 0.0
    %4956 = vmatpush1.msra.mxu0 %v4200
    %4957 = vmatprep.subr.mxu0 0.0
    %4958 = vmatpush1.msra.mxu0 %v4201
    %4959 = vmatprep.subr.mxu0 0.0
    %4960 = vmatpush1.msra.mxu0 %v4202
    %4961 = vmatprep.subr.mxu0 0.0
    %4962 = vmatpush1.msra.mxu0 %v4203
    %4963 = vmatprep.subr.mxu0 0.0
    %4964 = vmatpush1.msra.mxu0 %v4204
    %4965 = vmatprep.subr.mxu0 0.0
    %4966 = vmatpush1.msra.mxu0 %v4205
    %4967 = vmatprep.subr.mxu0 0.0
    %4968 = vmatpush1.msra.mxu0 %v4206
    %4969 = vmatprep.subr.mxu0 0.0
    %4970 = vmatpush1.msra.mxu0 %v4207
    %4971 = vmatprep.subr.mxu0 0.0
    %4972 = vmatpush1.msra.mxu0 %v4208
    %4973 = vmatprep.subr.mxu0 0.0
    %4974 = vmatpush1.msra.mxu0 %v4209
    %4975 = vmatprep.subr.mxu0 0.0
    %4976 = vmatpush1.msra.mxu0 0.0
    %4977 = vmatprep.subr.mxu0 0.0
    %4978 = vmatpush1.msra.mxu0 0.0
    %4979 = vmatprep.subr.mxu0 0.0
    %4980 = vmatpush1.msra.mxu0 0.0
    %4981 = vmatprep.subr.mxu0 0.0
    %4982 = vmatpush1.msra.mxu0 0.0
    %4983 = vmatprep.subr.mxu0 0.0
    %4984 = vmatpush1.msra.mxu0 0.0
    %4985 = vmatprep.subr.mxu0 0.0
    %4986 = vmatpush1.msra.mxu0 0.0
    %4987 = vmatprep.subr.mxu0 0.0
    %4988 = vmatpush1.msra.mxu0 0.0
    %4989 = vmatprep.subr.mxu0 0.0
    %4990 = vmatpush1.msra.mxu0 0.0
    %4991 = vmatprep.subr.mxu0 0.0
    %4992 = vmatpush1.msra.mxu0 0.0
    %4993 = vmatprep.subr.mxu0 0.0
    %4994 = vmatpush1.msra.mxu0 0.0
    %4995 = vmatprep.subr.mxu0 0.0
    %4996 = vmatpush1.msra.mxu0 0.0
    %4997 = vmatprep.subr.mxu0 0.0
    %4998 = vmatpush1.msra.mxu0 0.0
    %4999 = vmatprep.subr.mxu0 0.0
    %5000 = vmatpush1.msra.mxu0 0.0
    %5001 = vmatprep.subr.mxu0 0.0
    %5002 = vmatpush1.msra.mxu0 0.0
    %5003 = vmatprep.subr.mxu0 0.0
    %5004 = vmatpush1.msra.mxu0 0.0
    %5005 = vmatprep.subr.mxu0 0.0
    %5006 = vmatpush1.msra.mxu0 0.0
    %5007 = vmatprep.mubr.f32.mxu0 0.0
    %5008 = vmatmul.mubr.f32.gmra.mrb[0].mxu0 %v4015
    %v5009 = vpop.f32.mrb[0].mxu0
    %v5010 = vadd.f32 0.0, %v5009
    %v5011 = vpop.f32.mrb[0].mxu0
    %5012 = vdwg.mxu0
    %v5013 = vadd.f32 %v4942, %v5010
    %5014 = vmatprep.subr.mxu0 0.0
    %5015 = vmatpush1.msra.mxu0 %v4210
    %5016 = vmatprep.subr.mxu0 0.0
    %5017 = vmatpush1.msra.mxu0 %v4211
    %5018 = vmatprep.subr.mxu0 0.0
    %5019 = vmatpush1.msra.mxu0 %v4212
    %5020 = vmatprep.subr.mxu0 0.0
    %5021 = vmatpush1.msra.mxu0 %v4213
    %5022 = vmatprep.subr.mxu0 0.0
    %5023 = vmatpush1.msra.mxu0 %v4214
    %5024 = vmatprep.subr.mxu0 0.0
    %5025 = vmatpush1.msra.mxu0 %v4215
    %5026 = vmatprep.subr.mxu0 0.0
    %5027 = vmatpush1.msra.mxu0 %v4216
    %5028 = vmatprep.subr.mxu0 0.0
    %5029 = vmatpush1.msra.mxu0 %v4217
    %5030 = vmatprep.subr.mxu0 0.0
    %5031 = vmatpush1.msra.mxu0 %v4218
    %5032 = vmatprep.subr.mxu0 0.0
    %5033 = vmatpush1.msra.mxu0 %v4219
    %5034 = vmatprep.subr.mxu0 0.0
    %5035 = vmatpush1.msra.mxu0 %v4220
    %5036 = vmatprep.subr.mxu0 0.0
    %5037 = vmatpush1.msra.mxu0 %v4221
    %5038 = vmatprep.subr.mxu0 0.0
    %5039 = vmatpush1.msra.mxu0 %v4222
    %5040 = vmatprep.subr.mxu0 0.0
    %5041 = vmatpush1.msra.mxu0 %v4223
    %5042 = vmatprep.subr.mxu0 0.0
    %5043 = vmatpush1.msra.mxu0 %v4224
    %5044 = vmatprep.subr.mxu0 0.0
    %5045 = vmatpush1.msra.mxu0 %v4225
    %5046 = vmatprep.subr.mxu0 0.0
    %5047 = vmatpush1.msra.mxu0 0.0
    %5048 = vmatprep.subr.mxu0 0.0
    %5049 = vmatpush1.msra.mxu0 0.0
    %5050 = vmatprep.subr.mxu0 0.0
    %5051 = vmatpush1.msra.mxu0 0.0
    %5052 = vmatprep.subr.mxu0 0.0
    %5053 = vmatpush1.msra.mxu0 0.0
    %5054 = vmatprep.subr.mxu0 0.0
    %5055 = vmatpush1.msra.mxu0 0.0
    %5056 = vmatprep.subr.mxu0 0.0
    %5057 = vmatpush1.msra.mxu0 0.0
    %5058 = vmatprep.subr.mxu0 0.0
    %5059 = vmatpush1.msra.mxu0 0.0
    %5060 = vmatprep.subr.mxu0 0.0
    %5061 = vmatpush1.msra.mxu0 0.0
    %5062 = vmatprep.subr.mxu0 0.0
    %5063 = vmatpush1.msra.mxu0 0.0
    %5064 = vmatprep.subr.mxu0 0.0
    %5065 = vmatpush1.msra.mxu0 0.0
    %5066 = vmatprep.subr.mxu0 0.0
    %5067 = vmatpush1.msra.mxu0 0.0
    %5068 = vmatprep.subr.mxu0 0.0
    %5069 = vmatpush1.msra.mxu0 0.0
    %5070 = vmatprep.subr.mxu0 0.0
    %5071 = vmatpush1.msra.mxu0 0.0
    %5072 = vmatprep.subr.mxu0 0.0
    %5073 = vmatpush1.msra.mxu0 0.0
    %5074 = vmatprep.subr.mxu0 0.0
    %5075 = vmatpush1.msra.mxu0 0.0
    %5076 = vmatprep.subr.mxu0 0.0
    %5077 = vmatpush1.msra.mxu0 0.0
    %5078 = vmatprep.mubr.f32.mxu0 0.0
    %5079 = vmatmul.mubr.f32.gmra.mrb[0].mxu0 %v4014
    %v5080 = vpop.f32.mrb[0].mxu0
    %v5081 = vadd.f32 0.0, %v5080
    %v5082 = vpop.f32.mrb[0].mxu0
    %5083 = vdwg.mxu0
    %v5084 = vadd.f32 %v5013, %v5081
    %5085 = vmatprep.subr.mxu0 0.0
    %5086 = vmatpush1.msra.mxu0 %v4226
    %5087 = vmatprep.subr.mxu0 0.0
    %5088 = vmatpush1.msra.mxu0 %v4227
    %5089 = vmatprep.subr.mxu0 0.0
    %5090 = vmatpush1.msra.mxu0 %v4228
    %5091 = vmatprep.subr.mxu0 0.0
    %5092 = vmatpush1.msra.mxu0 %v4229
    %5093 = vmatprep.subr.mxu0 0.0
    %5094 = vmatpush1.msra.mxu0 %v4230
    %5095 = vmatprep.subr.mxu0 0.0
    %5096 = vmatpush1.msra.mxu0 %v4231
    %5097 = vmatprep.subr.mxu0 0.0
    %5098 = vmatpush1.msra.mxu0 %v4232
    %5099 = vmatprep.subr.mxu0 0.0
    %5100 = vmatpush1.msra.mxu0 %v4233
    %5101 = vmatprep.subr.mxu0 0.0
    %5102 = vmatpush1.msra.mxu0 %v4234
    %5103 = vmatprep.subr.mxu0 0.0
    %5104 = vmatpush1.msra.mxu0 %v4235
    %5105 = vmatprep.subr.mxu0 0.0
    %5106 = vmatpush1.msra.mxu0 %v4236
    %5107 = vmatprep.subr.mxu0 0.0
    %5108 = vmatpush1.msra.mxu0 %v4237
    %5109 = vmatprep.subr.mxu0 0.0
    %5110 = vmatpush1.msra.mxu0 %v4238
    %5111 = vmatprep.subr.mxu0 0.0
    %5112 = vmatpush1.msra.mxu0 %v4239
    %5113 = vmatprep.subr.mxu0 0.0
    %5114 = vmatpush1.msra.mxu0 %v4240
    %5115 = vmatprep.subr.mxu0 0.0
    %5116 = vmatpush1.msra.mxu0 %v4241
    %5117 = vmatprep.subr.mxu0 0.0
    %5118 = vmatpush1.msra.mxu0 0.0
    %5119 = vmatprep.subr.mxu0 0.0
    %5120 = vmatpush1.msra.mxu0 0.0
    %5121 = vmatprep.subr.mxu0 0.0
    %5122 = vmatpush1.msra.mxu0 0.0
    %5123 = vmatprep.subr.mxu0 0.0
    %5124 = vmatpush1.msra.mxu0 0.0
    %5125 = vmatprep.subr.mxu0 0.0
    %5126 = vmatpush1.msra.mxu0 0.0
    %5127 = vmatprep.subr.mxu0 0.0
    %5128 = vmatpush1.msra.mxu0 0.0
    %5129 = vmatprep.subr.mxu0 0.0
    %5130 = vmatpush1.msra.mxu0 0.0
    %5131 = vmatprep.subr.mxu0 0.0
    %5132 = vmatpush1.msra.mxu0 0.0
    %5133 = vmatprep.subr.mxu0 0.0
    %5134 = vmatpush1.msra.mxu0 0.0
    %5135 = vmatprep.subr.mxu0 0.0
    %5136 = vmatpush1.msra.mxu0 0.0
    %5137 = vmatprep.subr.mxu0 0.0
    %5138 = vmatpush1.msra.mxu0 0.0
    %5139 = vmatprep.subr.mxu0 0.0
    %5140 = vmatpush1.msra.mxu0 0.0
    %5141 = vmatprep.subr.mxu0 0.0
    %5142 = vmatpush1.msra.mxu0 0.0
    %5143 = vmatprep.subr.mxu0 0.0
    %5144 = vmatpush1.msra.mxu0 0.0
    %5145 = vmatprep.subr.mxu0 0.0
    %5146 = vmatpush1.msra.mxu0 0.0
    %5147 = vmatprep.subr.mxu0 0.0
    %5148 = vmatpush1.msra.mxu0 0.0
    %5149 = vmatprep.mubr.f32.mxu0 0.0
    %5150 = vmatmul.mubr.f32.gmra.mrb[0].mxu0 %v4016
    %v5151 = vpop.f32.mrb[0].mxu0
    %v5152 = vadd.f32 0.0, %v5151
    %v5153 = vpop.f32.mrb[0].mxu0
    %5154 = vdwg.mxu0
    %v5155 = vadd.f32 %v5084, %v5152
    %5156 = vmatprep.subr.mxu0 0.0
    %5157 = vmatpush1.msra.mxu0 %v4242
    %5158 = vmatprep.subr.mxu0 0.0
    %5159 = vmatpush1.msra.mxu0 %v4243
    %5160 = vmatprep.subr.mxu0 0.0
    %5161 = vmatpush1.msra.mxu0 %v4244
    %5162 = vmatprep.subr.mxu0 0.0
    %5163 = vmatpush1.msra.mxu0 %v4245
    %5164 = vmatprep.subr.mxu0 0.0
    %5165 = vmatpush1.msra.mxu0 %v4246
    %5166 = vmatprep.subr.mxu0 0.0
    %5167 = vmatpush1.msra.mxu0 %v4247
    %5168 = vmatprep.subr.mxu0 0.0
    %5169 = vmatpush1.msra.mxu0 %v4248
    %5170 = vmatprep.subr.mxu0 0.0
    %5171 = vmatpush1.msra.mxu0 %v4249
    %5172 = vmatprep.subr.mxu0 0.0
    %5173 = vmatpush1.msra.mxu0 %v4250
    %5174 = vmatprep.subr.mxu0 0.0
    %5175 = vmatpush1.msra.mxu0 %v4251
    %5176 = vmatprep.subr.mxu0 0.0
    %5177 = vmatpush1.msra.mxu0 %v4252
    %5178 = vmatprep.subr.mxu0 0.0
    %5179 = vmatpush1.msra.mxu0 %v4253
    %5180 = vmatprep.subr.mxu0 0.0
    %5181 = vmatpush1.msra.mxu0 %v4254
    %5182 = vmatprep.subr.mxu0 0.0
    %5183 = vmatpush1.msra.mxu0 %v4255
    %5184 = vmatprep.subr.mxu0 0.0
    %5185 = vmatpush1.msra.mxu0 %v4256
    %5186 = vmatprep.subr.mxu0 0.0
    %5187 = vmatpush1.msra.mxu0 %v4257
    %5188 = vmatprep.subr.mxu0 0.0
    %5189 = vmatpush1.msra.mxu0 0.0
    %5190 = vmatprep.subr.mxu0 0.0
    %5191 = vmatpush1.msra.mxu0 0.0
    %5192 = vmatprep.subr.mxu0 0.0
    %5193 = vmatpush1.msra.mxu0 0.0
    %5194 = vmatprep.subr.mxu0 0.0
    %5195 = vmatpush1.msra.mxu0 0.0
    %5196 = vmatprep.subr.mxu0 0.0
    %5197 = vmatpush1.msra.mxu0 0.0
    %5198 = vmatprep.subr.mxu0 0.0
    %5199 = vmatpush1.msra.mxu0 0.0
    %5200 = vmatprep.subr.mxu0 0.0
    %5201 = vmatpush1.msra.mxu0 0.0
    %5202 = vmatprep.subr.mxu0 0.0
    %5203 = vmatpush1.msra.mxu0 0.0
    %5204 = vmatprep.subr.mxu0 0.0
    %5205 = vmatpush1.msra.mxu0 0.0
    %5206 = vmatprep.subr.mxu0 0.0
    %5207 = vmatpush1.msra.mxu0 0.0
    %5208 = vmatprep.subr.mxu0 0.0
    %5209 = vmatpush1.msra.mxu0 0.0
    %5210 = vmatprep.subr.mxu0 0.0
    %5211 = vmatpush1.msra.mxu0 0.0
    %5212 = vmatprep.subr.mxu0 0.0
    %5213 = vmatpush1.msra.mxu0 0.0
    %5214 = vmatprep.subr.mxu0 0.0
    %5215 = vmatpush1.msra.mxu0 0.0
    %5216 = vmatprep.subr.mxu0 0.0
    %5217 = vmatpush1.msra.mxu0 0.0
    %5218 = vmatprep.subr.mxu0 0.0
    %5219 = vmatpush1.msra.mxu0 0.0
    %5220 = vmatprep.mubr.f32.mxu0 0.0
    %5221 = vmatmul.mubr.f32.gmra.mrb[0].mxu0 %v4024
    %v5222 = vpop.f32.mrb[0].mxu0
    %v5223 = vadd.f32 0.0, %v5222
    %v5224 = vpop.f32.mrb[0].mxu0
    %5225 = vdwg.mxu0
    %v5226 = vadd.f32 %v5155, %v5223
    %5227 = vmatprep.subr.mxu0 0.0
    %5228 = vmatpush1.msra.mxu0 %v4258
    %5229 = vmatprep.subr.mxu0 0.0
    %5230 = vmatpush1.msra.mxu0 %v4259
    %5231 = vmatprep.subr.mxu0 0.0
    %5232 = vmatpush1.msra.mxu0 %v4260
    %5233 = vmatprep.subr.mxu0 0.0
    %5234 = vmatpush1.msra.mxu0 %v4261
    %5235 = vmatprep.subr.mxu0 0.0
    %5236 = vmatpush1.msra.mxu0 %v4262
    %5237 = vmatprep.subr.mxu0 0.0
    %5238 = vmatpush1.msra.mxu0 %v4263
    %5239 = vmatprep.subr.mxu0 0.0
    %5240 = vmatpush1.msra.mxu0 %v4264
    %5241 = vmatprep.subr.mxu0 0.0
    %5242 = vmatpush1.msra.mxu0 %v4265
    %5243 = vmatprep.subr.mxu0 0.0
    %5244 = vmatpush1.msra.mxu0 %v4266
    %5245 = vmatprep.subr.mxu0 0.0
    %5246 = vmatpush1.msra.mxu0 %v4267
    %5247 = vmatprep.subr.mxu0 0.0
    %5248 = vmatpush1.msra.mxu0 %v4268
    %5249 = vmatprep.subr.mxu0 0.0
    %5250 = vmatpush1.msra.mxu0 %v4269
    %5251 = vmatprep.subr.mxu0 0.0
    %5252 = vmatpush1.msra.mxu0 %v4270
    %5253 = vmatprep.subr.mxu0 0.0
    %5254 = vmatpush1.msra.mxu0 %v4271
    %5255 = vmatprep.subr.mxu0 0.0
    %5256 = vmatpush1.msra.mxu0 %v4272
    %5257 = vmatprep.subr.mxu0 0.0
    %5258 = vmatpush1.msra.mxu0 %v4273
    %5259 = vmatprep.subr.mxu0 0.0
    %5260 = vmatpush1.msra.mxu0 0.0
    %5261 = vmatprep.subr.mxu0 0.0
    %5262 = vmatpush1.msra.mxu0 0.0
    %5263 = vmatprep.subr.mxu0 0.0
    %5264 = vmatpush1.msra.mxu0 0.0
    %5265 = vmatprep.subr.mxu0 0.0
    %5266 = vmatpush1.msra.mxu0 0.0
    %5267 = vmatprep.subr.mxu0 0.0
    %5268 = vmatpush1.msra.mxu0 0.0
    %5269 = vmatprep.subr.mxu0 0.0
    %5270 = vmatpush1.msra.mxu0 0.0
    %5271 = vmatprep.subr.mxu0 0.0
    %5272 = vmatpush1.msra.mxu0 0.0
    %5273 = vmatprep.subr.mxu0 0.0
    %5274 = vmatpush1.msra.mxu0 0.0
    %5275 = vmatprep.subr.mxu0 0.0
    %5276 = vmatpush1.msra.mxu0 0.0
    %5277 = vmatprep.subr.mxu0 0.0
    %5278 = vmatpush1.msra.mxu0 0.0
    %5279 = vmatprep.subr.mxu0 0.0
    %5280 = vmatpush1.msra.mxu0 0.0
    %5281 = vmatprep.subr.mxu0 0.0
    %5282 = vmatpush1.msra.mxu0 0.0
    %5283 = vmatprep.subr.mxu0 0.0
    %5284 = vmatpush1.msra.mxu0 0.0
    %5285 = vmatprep.subr.mxu0 0.0
    %5286 = vmatpush1.msra.mxu0 0.0
    %5287 = vmatprep.subr.mxu0 0.0
    %5288 = vmatpush1.msra.mxu0 0.0
    %5289 = vmatprep.subr.mxu0 0.0
    %5290 = vmatpush1.msra.mxu0 0.0
    %5291 = vmatprep.mubr.f32.mxu0 0.0
    %5292 = vmatmul.mubr.f32.gmra.mrb[0].mxu0 %v4032
    %v5293 = vpop.f32.mrb[0].mxu0
    %v5294 = vadd.f32 0.0, %v5293
    %v5295 = vpop.f32.mrb[0].mxu0
    %5296 = vdwg.mxu0
    %v5297 = vadd.f32 %v5226, %v5294
    %5298 = vmatprep.subr.mxu0 0.0
    %5299 = vmatpush1.msra.mxu0 %v4274
    %5300 = vmatprep.subr.mxu0 0.0
    %5301 = vmatpush1.msra.mxu0 %v4275
    %5302 = vmatprep.subr.mxu0 0.0
    %5303 = vmatpush1.msra.mxu0 %v4276
    %5304 = vmatprep.subr.mxu0 0.0
    %5305 = vmatpush1.msra.mxu0 %v4277
    %5306 = vmatprep.subr.mxu0 0.0
    %5307 = vmatpush1.msra.mxu0 %v4278
    %5308 = vmatprep.subr.mxu0 0.0
    %5309 = vmatpush1.msra.mxu0 %v4279
    %5310 = vmatprep.subr.mxu0 0.0
    %5311 = vmatpush1.msra.mxu0 %v4280
    %5312 = vmatprep.subr.mxu0 0.0
    %5313 = vmatpush1.msra.mxu0 %v4281
    %5314 = vmatprep.subr.mxu0 0.0
    %5315 = vmatpush1.msra.mxu0 %v4282
    %5316 = vmatprep.subr.mxu0 0.0
    %5317 = vmatpush1.msra.mxu0 %v4283
    %5318 = vmatprep.subr.mxu0 0.0
    %5319 = vmatpush1.msra.mxu0 %v4284
    %5320 = vmatprep.subr.mxu0 0.0
    %5321 = vmatpush1.msra.mxu0 %v4285
    %5322 = vmatprep.subr.mxu0 0.0
    %5323 = vmatpush1.msra.mxu0 %v4286
    %5324 = vmatprep.subr.mxu0 0.0
    %5325 = vmatpush1.msra.mxu0 %v4287
    %5326 = vmatprep.subr.mxu0 0.0
    %5327 = vmatpush1.msra.mxu0 %v4288
    %5328 = vmatprep.subr.mxu0 0.0
    %5329 = vmatpush1.msra.mxu0 %v4289
    %5330 = vmatprep.subr.mxu0 0.0
    %5331 = vmatpush1.msra.mxu0 0.0
    %5332 = vmatprep.subr.mxu0 0.0
    %5333 = vmatpush1.msra.mxu0 0.0
    %5334 = vmatprep.subr.mxu0 0.0
    %5335 = vmatpush1.msra.mxu0 0.0
    %5336 = vmatprep.subr.mxu0 0.0
    %5337 = vmatpush1.msra.mxu0 0.0
    %5338 = vmatprep.subr.mxu0 0.0
    %5339 = vmatpush1.msra.mxu0 0.0
    %5340 = vmatprep.subr.mxu0 0.0
    %5341 = vmatpush1.msra.mxu0 0.0
    %5342 = vmatprep.subr.mxu0 0.0
    %5343 = vmatpush1.msra.mxu0 0.0
    %5344 = vmatprep.subr.mxu0 0.0
    %5345 = vmatpush1.msra.mxu0 0.0
    %5346 = vmatprep.subr.mxu0 0.0
    %5347 = vmatpush1.msra.mxu0 0.0
    %5348 = vmatprep.subr.mxu0 0.0
    %5349 = vmatpush1.msra.mxu0 0.0
    %5350 = vmatprep.subr.mxu0 0.0
    %5351 = vmatpush1.msra.mxu0 0.0
    %5352 = vmatprep.subr.mxu0 0.0
    %5353 = vmatpush1.msra.mxu0 0.0
    %5354 = vmatprep.subr.mxu0 0.0
    %5355 = vmatpush1.msra.mxu0 0.0
    %5356 = vmatprep.subr.mxu0 0.0
    %5357 = vmatpush1.msra.mxu0 0.0
    %5358 = vmatprep.subr.mxu0 0.0
    %5359 = vmatpush1.msra.mxu0 0.0
    %5360 = vmatprep.subr.mxu0 0.0
    %5361 = vmatpush1.msra.mxu0 0.0
    %5362 = vmatprep.mubr.f32.mxu0 0.0
    %5363 = vmatmul.mubr.f32.gmra.mrb[0].mxu0 %v4031
    %v5364 = vpop.f32.mrb[0].mxu0
    %v5365 = vadd.f32 0.0, %v5364
    %v5366 = vpop.f32.mrb[0].mxu0
    %5367 = vdwg.mxu0
    %v5368 = vadd.f32 %v5297, %v5365
    %5369 = vmatprep.subr.mxu0 0.0
    %5370 = vmatpush1.msra.mxu0 %v4290
    %5371 = vmatprep.subr.mxu0 0.0
    %5372 = vmatpush1.msra.mxu0 %v4291
    %5373 = vmatprep.subr.mxu0 0.0
    %5374 = vmatpush1.msra.mxu0 %v4292
    %5375 = vmatprep.subr.mxu0 0.0
    %5376 = vmatpush1.msra.mxu0 %v4293
    %5377 = vmatprep.subr.mxu0 0.0
    %5378 = vmatpush1.msra.mxu0 %v4294
    %5379 = vmatprep.subr.mxu0 0.0
    %5380 = vmatpush1.msra.mxu0 %v4295
    %5381 = vmatprep.subr.mxu0 0.0
    %5382 = vmatpush1.msra.mxu0 %v4296
    %5383 = vmatprep.subr.mxu0 0.0
    %5384 = vmatpush1.msra.mxu0 %v4297
    %5385 = vmatprep.subr.mxu0 0.0
    %5386 = vmatpush1.msra.mxu0 %v4298
    %5387 = vmatprep.subr.mxu0 0.0
    %5388 = vmatpush1.msra.mxu0 %v4299
    %5389 = vmatprep.subr.mxu0 0.0
    %5390 = vmatpush1.msra.mxu0 %v4300
    %5391 = vmatprep.subr.mxu0 0.0
    %5392 = vmatpush1.msra.mxu0 %v4301
    %5393 = vmatprep.subr.mxu0 0.0
    %5394 = vmatpush1.msra.mxu0 %v4302
    %5395 = vmatprep.subr.mxu0 0.0
    %5396 = vmatpush1.msra.mxu0 %v4303
    %5397 = vmatprep.subr.mxu0 0.0
    %5398 = vmatpush1.msra.mxu0 %v4304
    %5399 = vmatprep.subr.mxu0 0.0
    %5400 = vmatpush1.msra.mxu0 %v4305
    %5401 = vmatprep.subr.mxu0 0.0
    %5402 = vmatpush1.msra.mxu0 0.0
    %5403 = vmatprep.subr.mxu0 0.0
    %5404 = vmatpush1.msra.mxu0 0.0
    %5405 = vmatprep.subr.mxu0 0.0
    %5406 = vmatpush1.msra.mxu0 0.0
    %5407 = vmatprep.subr.mxu0 0.0
    %5408 = vmatpush1.msra.mxu0 0.0
    %5409 = vmatprep.subr.mxu0 0.0
    %5410 = vmatpush1.msra.mxu0 0.0
    %5411 = vmatprep.subr.mxu0 0.0
    %5412 = vmatpush1.msra.mxu0 0.0
    %5413 = vmatprep.subr.mxu0 0.0
    %5414 = vmatpush1.msra.mxu0 0.0
    %5415 = vmatprep.subr.mxu0 0.0
    %5416 = vmatpush1.msra.mxu0 0.0
    %5417 = vmatprep.subr.mxu0 0.0
    %5418 = vmatpush1.msra.mxu0 0.0
    %5419 = vmatprep.subr.mxu0 0.0
    %5420 = vmatpush1.msra.mxu0 0.0
    %5421 = vmatprep.subr.mxu0 0.0
    %5422 = vmatpush1.msra.mxu0 0.0
    %5423 = vmatprep.subr.mxu0 0.0
    %5424 = vmatpush1.msra.mxu0 0.0
    %5425 = vmatprep.subr.mxu0 0.0
    %5426 = vmatpush1.msra.mxu0 0.0
    %5427 = vmatprep.subr.mxu0 0.0
    %5428 = vmatpush1.msra.mxu0 0.0
    %5429 = vmatprep.subr.mxu0 0.0
    %5430 = vmatpush1.msra.mxu0 0.0
    %5431 = vmatprep.subr.mxu0 0.0
    %5432 = vmatpush1.msra.mxu0 0.0
    %5433 = vmatprep.mubr.f32.mxu0 0.0
    %5434 = vmatmul.mubr.f32.gmra.mrb[0].mxu0 %v4033
    %v5435 = vpop.f32.mrb[0].mxu0
    %v5436 = vadd.f32 0.0, %v5435
    %v5437 = vpop.f32.mrb[0].mxu0
    %5438 = vdwg.mxu0
    %v5439 = vadd.f32 %v5368, %v5436
    %v5440 = vld [vmem:[%s14] sm:$0x1]
    %v5442 = vlaneseq
    %v5443 = vshrl.u32 %v5442, 7
    %v5444 = vsub.s32 0, %v5443
    %v5445 = vrot.slane %v5440, %v5444
    %v5447 = vadd.f32 %v5439, %v5445
    %vm5448 = vcmask 74752
    %5449 = vst.msk [vmem:[#allocation5] sm:$0x3] %vm5448, %v5447
    // Predicated region
    $region62: #{net_forward_pallas.1} parent=1 // pred_check
      _
    $region63: #{net_forward_pallas.1} parent=1 // pred_check_branch
      %5451 = sbr.rel (0) target = $region65
    $region64: #{net_forward_pallas.1} parent=1 // pred_region
      %s5453 = ssub.s32 32, 32
      %5454 = vsyncadd [#allocation6], %s5453
      %s5456 = sshll.u32 [#allocation5], 4
      %s5457 = int_to_ptr.vmem [resolvable:$true] %s5456
      %5459 = dma.vmem_to_hbm [thread:$0]  %s5457, 32, %s15, [#allocation6]
    $region65: #{net_forward_pallas.1} parent=1 // pred_fallthru
      _
    // Predicated region
    $region66: #{net_forward_pallas.1} parent=1 // pred_check
      _
    $region67: #{net_forward_pallas.1} parent=1 // pred_check_branch
      %5461 = sbr.rel (0) target = $region69
    $region68: #{net_forward_pallas.1} parent=1 // pred_region
      %5462 = dma.done [#allocation6], 32
    $region69: #{net_forward_pallas.1} parent=1 // pred_fallthru
      _
    %5463 = vsyncpa [#allocation6], 1

</llo_original>
